<compile_context>
chip_gen: v7x
topology: tpu7x:2x2x1
jax: 0.10.0
libtpu: 0.0.40
codegen_flags: <defaults>
</compile_context>

<pallas_src>
import jax
import jax.numpy as jnp
from jax.experimental import pallas as pl
from jax.experimental.pallas import tpu as pltpu


def _round_up(x, m):
    return (x + m - 1) // m * m


def conv_stats_kernel(p_ref, w_ref, conv_ref, stats_ref):
    """One im2col matmul tile + partial BN statistics.

    p_ref     : (TM, K9C)      bf16 im2col patches (zero-padded rows past M)
    w_ref     : (K9C, TCO)     bf16 weight matrix
    conv_ref  : (TM, TCO)      f32 conv output tile
    stats_ref : (1, 2, TCO)    f32 per-tile [sum, sum_sq] partials
    """
    acc = jnp.dot(p_ref[...], w_ref[...], preferred_element_type=jnp.float32)
    conv_ref[...] = acc
    # Padded (zero) patch rows produce zero conv rows -> contribute 0 to both sums.
    stats_ref[0, 0:1, :] = jnp.sum(acc, axis=0, keepdims=True)
    stats_ref[0, 1:2, :] = jnp.sum(acc * acc, axis=0, keepdims=True)


def conv2d_batchnorm(x_nchw, w_oihw, gamma, beta, *, eps=1e-5):
    """x_nchw: (N, Cin, H, W) f32; w_oihw: (Cout, Cin, 3, 3) f32.
    Returns (N, Cout, H, W) f32 = BatchNorm(Conv(x)) with training-mode batch stats."""
    N, Cin, H, W = x_nchw.shape
    Cout, Cin2, KH, KW = w_oihw.shape
    assert Cin2 == Cin and (KH, KW) == (3, 3)

    # ---- layout prep (cheap vs. the matmul): NCHW -> NHWC, bf16, zero pad=1 ----
    x_nhwc = jnp.transpose(x_nchw, (0, 2, 3, 1)).astype(jnp.bfloat16)
    x_pad = jnp.pad(x_nhwc, ((0, 0), (1, 1), (1, 1), (0, 0)))

    # ---- im2col: (N, H, W, 9*Cin) with column index (kh, kw, cin) ----
    taps = [
        x_pad[:, kh:kh + H, kw:kw + W, :]
        for kh in range(KH)
        for kw in range(KW)
    ]
    K9C = KH * KW * Cin
    M = N * H * W
    patches = jnp.concatenate(taps, axis=-1).reshape(M, K9C)

    # M tiling: fill the MXU rows; pad M with zero rows to the tile.
    TM = 512 if M >= 512 else _round_up(M, 8)
    M_pad = _round_up(M, TM)
    if M_pad != M:
        patches = jnp.pad(patches, ((0, M_pad - M), (0, 0)))
    grid_m = M_pad // TM

    # Cout tiling: 256 gives a 2-way "parallel" axis (both v7x TensorCores busy);
    # on v5e/v6e the resulting extra patch re-read is ~1 MiB for this shape.
    if Cout % 256 == 0:
        TCO = 256
    elif Cout % 128 == 0:
        TCO = 128
    else:
        TCO = Cout
    n_co = Cout // TCO

    # Weights OIHW -> (kh, kw, cin, cout) -> (9*Cin, Cout), bf16 (matches patch layout).
    w_mat = (
        jnp.transpose(w_oihw, (2, 3, 1, 0)).reshape(K9C, Cout).astype(jnp.bfloat16)
    )

    flops = 2 * M_pad * K9C * Cout
    bytes_accessed = (
        patches.size * 2 + w_mat.size * 2 + M_pad * Cout * 4 + grid_m * 2 * Cout * 4
    )

    conv_flat, stats = pl.pallas_call(
        conv_stats_kernel,
        grid=(n_co, grid_m),
        in_specs=[
            pl.BlockSpec((TM, K9C), lambda co, m: (m, 0)),
            pl.BlockSpec((K9C, TCO), lambda co, m: (0, co)),
        ],
        out_specs=[
            pl.BlockSpec((TM, TCO), lambda co, m: (m, co)),
            pl.BlockSpec((1, 2, TCO), lambda co, m: (m, 0, co)),
        ],
        out_shape=[
            jax.ShapeDtypeStruct((M_pad, Cout), jnp.float32),
            jax.ShapeDtypeStruct((grid_m, 2, Cout), jnp.float32),
        ],
        compiler_params=pltpu.CompilerParams(
            dimension_semantics=("parallel", "parallel"),
            vmem_limit_bytes=32 * 1024 * 1024,
        ),
        cost_estimate=pl.CostEstimate(
            flops=flops, transcendentals=0, bytes_accessed=bytes_accessed
        ),
    )(patches, w_mat)

    # ---- BN finalize + apply (plain JAX; XLA fuses the FMA into the transpose) ----
    # TODO(synk): for very large N*H*W, switch E[x^2]-mean^2 to a centered/Welford
    # accumulation to avoid f32 cancellation (fine at this problem size).
    stats_tot = jnp.sum(stats, axis=0)                       # (2, Cout)
    count = float(M)                                         # padded rows excluded
    mean = stats_tot[0] / count
    var = jnp.maximum(stats_tot[1] / count - mean * mean, 0.0)
    scale = gamma * jax.lax.rsqrt(var + eps)
    shift = beta - mean * scale

    conv_nhwc = conv_flat[:M].reshape(N, H, W, Cout)
    out_nhwc = conv_nhwc * scale.reshape(1, 1, 1, Cout) + shift.reshape(1, 1, 1, Cout)
    return jnp.transpose(out_nhwc, (0, 3, 1, 2))             # NHWC -> NCHW


def _reference(x_nchw, w_oihw, gamma, beta, eps=1e-5):
    """Pure-JAX reference: bf16-operand conv (matching MXU precision) with f32
    accumulation, followed by training-mode BatchNorm in f32."""
    y = jax.lax.conv_general_dilated(
        x_nchw.astype(jnp.bfloat16),
        w_oihw.astype(jnp.bfloat16),
        window_strides=(1, 1),
        padding=((1, 1), (1, 1)),
        dimension_numbers=("NCHW", "OIHW", "NCHW"),
        preferred_element_type=jnp.float32,
    )
    mean = jnp.mean(y, axis=(0, 2, 3), keepdims=True)
    var = jnp.mean((y - mean) ** 2, axis=(0, 2, 3), keepdims=True)
    g = gamma.reshape(1, -1, 1, 1)
    b = beta.reshape(1, -1, 1, 1)
    return (y - mean) * jax.lax.rsqrt(var + eps) * g + b


if __name__ == "__main__":
    # Module configuration (512 channels, 7x7 spatial); batch=2 exercises cross-image
    # BN statistics and the flattened-M matmul path.
    N, C, H, W = 2, 512, 7, 7
    key = jax.random.PRNGKey(0)
    kx, kw, kg, kb = jax.random.split(key, 4)

    x = jax.random.normal(kx, (N, C, H, W), dtype=jnp.float32)          # NCHW input
    w = jax.random.normal(kw, (C, C, 3, 3), dtype=jnp.float32) * 0.05   # OIHW weights
    gamma = 1.0 + 0.1 * jax.random.normal(kg, (C,), dtype=jnp.float32)  # BN weight
    beta = 0.1 * jax.random.normal(kb, (C,), dtype=jnp.float32)         # BN bias

    out = jax.block_until_ready(conv2d_batchnorm(x, w, gamma, beta))

    ref = _reference(x, w, gamma, beta)
    assert out.shape == (N, C, H, W)
    assert jnp.allclose(out, ref, atol=1e-2, rtol=1e-2)

    print("KERNEL_OK")
</pallas_src>

<mosaic_0001>
module attributes {stable_mosaic.version = 11 : i64} {
  func.func @conv_stats_kernel(%arg0: i32, %arg1: i32, %arg2: memref<104x4608xbf16, #tpu.memory_space<vmem>>, %arg3: memref<4608x256xbf16, #tpu.memory_space<vmem>>, %arg4: memref<104x256xf32, #tpu.memory_space<vmem>>, %arg5: memref<1x2x256xf32, #tpu.memory_space<vmem>>) attributes {dimension_semantics = [#tpu.dimension_semantics<parallel>, #tpu.dimension_semantics<parallel>], iteration_bounds = array<i64: 2, 1>, scalar_prefetch = 0 : i64, scratch_operands = 0 : i64, tpu.core_type = #tpu.core_type<tc>, window_params = [{transform_indices = @transform_0, window_bounds = array<i64: 104, 4608>}, {transform_indices = @transform_1, window_bounds = array<i64: 4608, 256>}, {transform_indices = @transform_2, window_bounds = array<i64: 104, 256>}, {transform_indices = @transform_3, window_bounds = array<i64: 1, 2, 256>}]} {
    %c0 = arith.constant 0 : index
    %c0_0 = arith.constant 0 : index
    %0 = vector.load %arg2[%c0, %c0_0] : memref<104x4608xbf16, #tpu.memory_space<vmem>>, vector<104x4608xbf16>
    %c0_1 = arith.constant 0 : index
    %c0_2 = arith.constant 0 : index
    %1 = vector.load %arg3[%c0_1, %c0_2] : memref<4608x256xbf16, #tpu.memory_space<vmem>>, vector<4608x256xbf16>
    %cst = arith.constant dense<0.000000e+00> : vector<104x256xf32>
    %2 = tpu.matmul %0, %1, %cst {dimension_numbers = #tpu.dot_dimension_numbers<[1], [0], [0], [1], [0, 0, 1, 1], [], []>} : vector<104x4608xbf16>, vector<4608x256xbf16>, vector<104x256xf32> -> vector<104x256xf32>
    %c0_3 = arith.constant 0 : index
    %c0_4 = arith.constant 0 : index
    %3 = vector.load %arg4[%c0_3, %c0_4] : memref<104x256xf32, #tpu.memory_space<vmem>>, vector<104x256xf32>
    tpu.vector_store %arg4[%c0_3, %c0_4], %2 {strides = array<i32>} : memref<104x256xf32, #tpu.memory_space<vmem>>, vector<104x256xf32>,
    %cst_5 = arith.constant dense<0.000000e+00> : vector<256xf32>
    %4 = vector.multi_reduction <add>, %2, %cst_5 [0] : vector<104x256xf32> to vector<256xf32>
    %5 = vector.shape_cast %4 : vector<256xf32> to vector<1x256xf32>
    %c0_6 = arith.constant 0 : index
    %c0_7 = arith.constant 0 : index
    %c0_8 = arith.constant 0 : index
    %6 = vector.load %arg5[%c0_6, %c0_7, %c0_8] : memref<1x2x256xf32, #tpu.memory_space<vmem>>, vector<1x1x256xf32>
    %7 = vector.shape_cast %6 : vector<1x1x256xf32> to vector<1x256xf32>
    %8 = vector.shape_cast %5 : vector<1x256xf32> to vector<1x1x256xf32>
    tpu.vector_store %arg5[%c0_6, %c0_7, %c0_8], %8 {strides = array<i32>} : memref<1x2x256xf32, #tpu.memory_space<vmem>>, vector<1x1x256xf32>,
    %9 = arith.mulf %2, %2 : vector<104x256xf32>
    %cst_9 = arith.constant dense<0.000000e+00> : vector<256xf32>
    %10 = vector.multi_reduction <add>, %9, %cst_9 [0] : vector<104x256xf32> to vector<256xf32>
    %11 = vector.shape_cast %10 : vector<256xf32> to vector<1x256xf32>
    %c0_10 = arith.constant 0 : index
    %c1 = arith.constant 1 : index
    %c0_11 = arith.constant 0 : index
    %12 = vector.load %arg5[%c0_10, %c1, %c0_11] : memref<1x2x256xf32, #tpu.memory_space<vmem>>, vector<1x1x256xf32>
    %13 = vector.shape_cast %12 : vector<1x1x256xf32> to vector<1x256xf32>
    %14 = vector.shape_cast %11 : vector<1x256xf32> to vector<1x1x256xf32>
    tpu.vector_store %arg5[%c0_10, %c1, %c0_11], %14 {strides = array<i32>} : memref<1x2x256xf32, #tpu.memory_space<vmem>>, vector<1x1x256xf32>,
    return
  }
  func.func @transform_0(%arg0: i32, %arg1: i32) -> (i32, i32) {
    %c0_i32 = arith.constant 0 : i32
    %c0_i32_0 = arith.constant 0 : i32
    return %arg1, %c0_i32 : i32, i32
  }
  func.func @transform_1(%arg0: i32, %arg1: i32) -> (i32, i32) {
    %c0_i32 = arith.constant 0 : i32
    %c0_i32_0 = arith.constant 0 : i32
    return %c0_i32, %arg0 : i32, i32
  }
  func.func @transform_2(%arg0: i32, %arg1: i32) -> (i32, i32) {
    %c0_i32 = arith.constant 0 : i32
    return %arg1, %arg0 : i32, i32
  }
  func.func @transform_3(%arg0: i32, %arg1: i32) -> (i32, i32, i32) {
    %c0_i32 = arith.constant 0 : i32
    %c0_i32_0 = arith.constant 0 : i32
    return %arg1, %c0_i32, %arg0 : i32, i32, i32
  }
}

</mosaic_0001>

<llo_original>
// kernel: tpu_custom_call.1
$region0: #{tpu_custom_call.1}
  #allocation0 [shape = 'u32[]', space=smem, size = 0x4, offset = 0x4, fixed_abs, tag = 'smem constant byte address 0x4 - core index']
  #allocation1 [shape = 'u32[144,128]{1,0:T(1,128)}', space=vmem, size = 0x12000, scoped, tag = 'internal scratch']
  %s0 = inlined_call_operand.hbm [shape: bf16[104,4608], index: 0, kind: input, shape index: {}]
  %s1 = inlined_call_operand.hbm [shape: bf16[4608,512], index: 1, kind: input, shape index: {}]
  %s2 = inlined_call_operand.hbm [shape: f32[104,512], index: 2, kind: output, shape index: {0}]
  %s3 = inlined_call_operand.hbm [shape: f32[1,2,512], index: 3, kind: output, shape index: {1}]
  %4 = xla_tuple %s2, %s3
  %s5 = sld [smem:[#allocation0]]
  $region57: #{tpu_custom_call.1} parent=0
    _
  %s7 = ssub.s32 1, %s5
  %s8 = scalar_select 0, %s7, %s5
  $region1: #{tpu_custom_call.1} parent=0
    #allocation2 [shape = 'u8[958464]{0}', space=vmem, size = 0xea000, scoped, tag = 'input window, operand 0, single buffered']
    #allocation3 [shape = 's32[2]{0}', space=sflag, size = 0x8, scoped, tag = 'scoped memory for tpu_custom_call.1']
    #allocation4 [shape = 's32[2]{0}', space=sflag, size = 0x8, scoped, tag = 'scoped memory for tpu_custom_call.1']
    #allocation5 [shape = 'u8[4718592]{0}', space=vmem, size = 0x480000, scoped, tag = 'input window, operand 1']
    #allocation6 [shape = 's32[2]{0}', space=sflag, size = 0x8, scoped, tag = 'scoped memory for tpu_custom_call.1']
    #allocation7 [shape = 'u8[212992]{0}', space=vmem, size = 0x34000, scoped, tag = 'output window, operand 0']
    #allocation8 [shape = 'u8[4096]{0}', space=vmem, size = 0x1000, scoped, tag = 'output window, operand 1']
    #allocation9 [shape = 's32[2]{0}', space=sflag, size = 0x8, scoped, tag = 'scoped memory for tpu_custom_call.1']
    %9 = vsyncpa [#allocation3], 0
    %10 = vsyncpa [#allocation6], 0
    %s11 = scalar_lea.sflag [#allocation6], 1
    %12 = vsyncpa %s11, 0
    %13 = vsyncpa [#allocation4], 0
    %s14 = scalar_lea.sflag [#allocation4], 1
    %15 = vsyncpa %s14, 0
    %16 = vsyncpa [#allocation9], 0
    %s17 = scalar_lea.sflag [#allocation9], 1
    %18 = vsyncpa %s17, 0
    loop: start=0, step=1, limit=4
    $region2: #{tpu_custom_call.1} parent=1 // loop_pre_header
      _
    $region3: #{tpu_custom_call.1} parent=1 // loop_header
      %s20 = sphi 0, %s24
      %p21 = scmp.ge.s32.totalorder %s20, 4
      %s27 = sphi 0, %s39
      %s28 = sphi 0, %s35
      %s29 = sphi 0, %s27
      %s30 = sphi 0, %s28
      %s31 = sphi 0, %s29
      %s32 = sphi 0, %s30
      %s42 = sphi 0, %s44
      %s45 = sphi 0, %s42
      %s46 = sphi 0, %s45
      %s62 = sphi 0, %s46
      %s68 = sphi 0, %s70
      %s71 = sphi 0, %s68
      %s72 = sphi 0, %s71
      %s88 = sphi 0, %s72
      %s96 = sphi 0, %s98
      %s99 = sphi 0, %s96
      %s100 = sphi 0, %s99
      %s116 = sphi 0, %s100
      %s124 = sphi 0, %s126
      %s127 = sphi 0, %s124
      %s128 = sphi 0, %s127
      %s144 = sphi 0, %s128
    $region4: #{tpu_custom_call.1} parent=1 // loop_header_branch
      %23 = sbr.rel (%p21) target = $region8
    $region5: #{tpu_custom_call.1} parent=1 // loop_body
      %s25 = ssub.s32 %s20, 1
      %s26 = ssub.s32 %s20, 2
      %s33 = sadd.s32 1, %s28
      %p34 = scmp.ge.s32.totalorder %s33, 1
      %s35 = scalar_select %p34, 0, %s33
      %s36 = sadd.s32 1, %s27
      %s37 = scalar_select %p34, %s36, %s27
      %p38 = scmp.ge.s32.totalorder %s37, 2
      %s39 = scalar_select %p38, 0, %s37
      %s40 = ssub.s32 %s28, %s35
      %p41 = scmp.eq.s32.totalorder %s40, 0
      %s43 = sadd.s32 %s42, 1
      %s44 = scalar_select %p41, %s42, %s43
      %p47 = pneg %p41
      %p48 = scmp.eq.s32.totalorder %s20, 1
      %p49 = por %p47, %p48
      %p50 = scmp.ne.s32.totalorder %s42, %s45
      %p51 = scmp.eq.s32.totalorder %s20, 0
      %p52 = por %p50, %p51
      %p53 = scmp.ne.s32.totalorder %s42, %s45
      %p54 = scmp.eq.s32.totalorder %s25, 1
      %p55 = por %p53, %p54
      %p56 = scmp.ne.s32.totalorder %s45, %s46
      %p57 = scmp.eq.s32.totalorder %s25, 0
      %p58 = por %p56, %p57
      %p59 = scmp.ne.s32.totalorder %s45, %s46
      %p60 = scmp.eq.s32.totalorder %s26, 1
      %p61 = por %p59, %p60
      %p63 = scmp.ne.s32.totalorder %s46, %s62
      %p64 = scmp.eq.s32.totalorder %s26, 0
      %p65 = por %p63, %p64
      %s66 = ssub.s32 %s27, %s39
      %p67 = scmp.eq.s32.totalorder %s66, 0
      %s69 = sadd.s32 %s68, 1
      %s70 = scalar_select %p67, %s68, %s69
      %p73 = pneg %p67
      %p74 = scmp.eq.s32.totalorder %s20, 1
      %p75 = por %p73, %p74
      %p76 = scmp.ne.s32.totalorder %s68, %s71
      %p77 = scmp.eq.s32.totalorder %s20, 0
      %p78 = por %p76, %p77
      %p79 = scmp.ne.s32.totalorder %s68, %s71
      %p80 = scmp.eq.s32.totalorder %s25, 1
      %p81 = por %p79, %p80
      %p82 = scmp.ne.s32.totalorder %s71, %s72
      %p83 = scmp.eq.s32.totalorder %s25, 0
      %p84 = por %p82, %p83
      %p85 = scmp.ne.s32.totalorder %s71, %s72
      %p86 = scmp.eq.s32.totalorder %s26, 1
      %p87 = por %p85, %p86
      %p89 = scmp.ne.s32.totalorder %s72, %s88
      %p90 = scmp.eq.s32.totalorder %s26, 0
      %p91 = por %p89, %p90
      %s92 = ssub.s32 %s28, %s35
      %s93 = ssub.s32 %s27, %s39
      %s94 = sor.u32 %s92, %s93
      %p95 = scmp.eq.s32.totalorder %s94, 0
      %s97 = sadd.s32 %s96, 1
      %s98 = scalar_select %p95, %s96, %s97
      %p101 = pneg %p95
      %p102 = scmp.eq.s32.totalorder %s20, 1
      %p103 = por %p101, %p102
      %p104 = scmp.ne.s32.totalorder %s96, %s99
      %p105 = scmp.eq.s32.totalorder %s20, 0
      %p106 = por %p104, %p105
      %p107 = scmp.ne.s32.totalorder %s96, %s99
      %p108 = scmp.eq.s32.totalorder %s25, 1
      %p109 = por %p107, %p108
      %p110 = scmp.ne.s32.totalorder %s99, %s100
      %p111 = scmp.eq.s32.totalorder %s25, 0
      %p112 = por %p110, %p111
      %p113 = scmp.ne.s32.totalorder %s99, %s100
      %p114 = scmp.eq.s32.totalorder %s26, 1
      %p115 = por %p113, %p114
      %p117 = scmp.ne.s32.totalorder %s100, %s116
      %p118 = scmp.eq.s32.totalorder %s26, 0
      %p119 = por %p117, %p118
      %s120 = ssub.s32 %s28, %s35
      %s121 = ssub.s32 %s27, %s39
      %s122 = sor.u32 %s120, %s121
      %p123 = scmp.eq.s32.totalorder %s122, 0
      %s125 = sadd.s32 %s124, 1
      %s126 = scalar_select %p123, %s124, %s125
      %p129 = pneg %p123
      %p130 = scmp.eq.s32.totalorder %s20, 1
      %p131 = por %p129, %p130
      %p132 = scmp.ne.s32.totalorder %s124, %s127
      %p133 = scmp.eq.s32.totalorder %s20, 0
      %p134 = por %p132, %p133
      %p135 = scmp.ne.s32.totalorder %s124, %s127
      %p136 = scmp.eq.s32.totalorder %s25, 1
      %p137 = por %p135, %p136
      %p138 = scmp.ne.s32.totalorder %s127, %s128
      %p139 = scmp.eq.s32.totalorder %s25, 0
      %p140 = por %p138, %p139
      %p141 = scmp.ne.s32.totalorder %s127, %s128
      %p142 = scmp.eq.s32.totalorder %s26, 1
      %p143 = por %p141, %p142
      %p145 = scmp.ne.s32.totalorder %s128, %s144
      %p146 = scmp.eq.s32.totalorder %s26, 0
      %p147 = por %p145, %p146
      %p148 = scmp.le.s32.totalorder 1, %s20
      %p149 = scmp.lt.s32.totalorder %s20, 3
      %p150 = pnand %p148, %p149
      %p151 = pneg %p150
      // Predicated region
      $region9: #{tpu_custom_call.1} parent=5 // pred_check
        _
      $region10: #{tpu_custom_call.1} parent=5 // pred_check_branch
        %153 = sbr.rel (%p150) target = $region12
      $region11: #{tpu_custom_call.1} parent=5 // pred_region
        %s154 = ssub.s32 %s20, 1
        // Predicated region
        $region13: #{tpu_custom_call.1} parent=11 // pred_check
          %p155 = pneg %p58
        $region14: #{tpu_custom_call.1} parent=11 // pred_check_branch
          %157 = sbr.rel (%p155) target = $region16
        $region15: #{tpu_custom_call.1} parent=11 // pred_region
          %s158 = smul.u32 13, %s30
          %s160 = ssub.s32 29952, 29952
          %161 = vsyncadd [#allocation3], %s160
          %s162 = smul.addr %s158, 36
          %s163 = smul.addr %s162, 64
          %s164 = scalar_lea.hbm %s0, %s163
          %s165 = sshll.u32 [#allocation2], 4
          %s166 = int_to_ptr.vmem [resolvable:$true] %s165
          %171 = dma.hbm_to_vmem [thread:$0]  %s164, 29952, %s166, [#allocation3], 2304, 2304, 144
        $region16: #{tpu_custom_call.1} parent=11 // pred_fallthru
          _
      $region12: #{tpu_custom_call.1} parent=5 // pred_fallthru
        _
      %p172 = scmp.lt.s32.totalorder %s20, 2
      // Predicated region
      $region17: #{tpu_custom_call.1} parent=5 // pred_check
        %p173 = pneg %p172
      $region18: #{tpu_custom_call.1} parent=5 // pred_check_branch
        %175 = sbr.rel (%p173) target = $region20
      $region19: #{tpu_custom_call.1} parent=5 // pred_region
        // Predicated region
        $region21: #{tpu_custom_call.1} parent=19 // pred_check
          %p176 = pneg %p78
        $region22: #{tpu_custom_call.1} parent=19 // pred_check_branch
          %178 = sbr.rel (%p176) target = $region24
        $region23: #{tpu_custom_call.1} parent=19 // pred_region
          %s179 = sand.u32 %s68, 1
          %s180 = scalar_lea.sflag [#allocation6], %s179
          %s181 = sand.u32 %s68, 1
          %s182 = smul.addr %s181, 4608
          %s183 = scalar_lea.vmem [#allocation5], %s182
          %s184 = smul.u32 2, %s27
          %s186 = ssub.s32 73728, 73728
          %187 = vsyncadd %s180, %s186
          %s188 = smul.addr %s184, 64
          %s189 = scalar_lea.hbm %s1, %s188
          %s190 = sshll.u32 %s183, 4
          %s191 = int_to_ptr.vmem [resolvable:$true] %s190
          %196 = dma.hbm_to_vmem [thread:$0]  %s189, 73728, %s191, %s180, 256, 128, 8
        $region24: #{tpu_custom_call.1} parent=19 // pred_fallthru
          _
      $region20: #{tpu_custom_call.1} parent=5 // pred_fallthru
        _
      %p197 = scmp.le.s32.totalorder 1, %s20
      %p198 = scmp.lt.s32.totalorder %s20, 3
      %p199 = pnand %p197, %p198
      %p200 = pneg %p199
      // Predicated region
      $region25: #{tpu_custom_call.1} parent=5 // pred_check
        _
      $region26: #{tpu_custom_call.1} parent=5 // pred_check_branch
        %202 = sbr.rel (%p199) target = $region28
      $region27: #{tpu_custom_call.1} parent=5 // pred_region
        %s203 = ssub.s32 %s20, 1
        // Predicated region
        $region29: #{tpu_custom_call.1} parent=27 // pred_check
          %p204 = pneg %p58
        $region30: #{tpu_custom_call.1} parent=27 // pred_check_branch
          %206 = sbr.rel (%p204) target = $region32
        $region31: #{tpu_custom_call.1} parent=27 // pred_region
          %207 = dma.done [#allocation3], 29952
        $region32: #{tpu_custom_call.1} parent=27 // pred_fallthru
          _
        %s208 = sand.u32 %s71, 1
        %s209 = scalar_lea.sflag [#allocation6], %s208
        %s210 = sand.u32 %s71, 1
        %s211 = smul.addr %s210, 4608
        %s212 = scalar_lea.vmem [#allocation5], %s211
        // Predicated region
        $region33: #{tpu_custom_call.1} parent=27 // pred_check
          %p213 = pneg %p84
        $region34: #{tpu_custom_call.1} parent=27 // pred_check_branch
          %215 = sbr.rel (%p213) target = $region36
        $region35: #{tpu_custom_call.1} parent=27 // pred_region
          %216 = dma.done %s209, 73728
        $region36: #{tpu_custom_call.1} parent=27 // pred_fallthru
          _
        %p217 = pneg %p58
        %p218 = pneg %p55
        %s219 = sand.u32 %s71, 1
        %s220 = scalar_lea.sflag [#allocation6], %s219
        %s221 = sand.u32 %s71, 1
        %s222 = smul.addr %s221, 4608
        %s223 = scalar_lea.vmem [#allocation5], %s222
        %p224 = pneg %p84
        %p225 = pneg %p81
        %p226 = pneg %p112
        %p227 = pneg %p109
        %s228 = sand.u32 %s99, 1
        %s229 = scalar_lea.sflag [#allocation4], %s228
        %s230 = sand.u32 %s99, 1
        %s231 = smul.addr %s230, 208
        %s232 = scalar_lea.vmem [#allocation7], %s231
        %p233 = pneg %p140
        %p234 = pneg %p137
        %s235 = sand.u32 %s127, 1
        %s236 = scalar_lea.sflag [#allocation9], %s235
        %s237 = sand.u32 %s127, 1
        %s238 = smul.addr %s237, 4
        %s239 = scalar_lea.vmem [#allocation8], %s238
        %s240 = smul.u32 13, %s30
        %s241 = smul.u32 2, %s29
        %s242 = smul.u32 13, %s30
        %s243 = smul.u32 2, %s29
        %s244 = smul.u32 2, %s29
        %v245 = vld [vmem:[#allocation2] sm:$0xff]
        %v246 = vld [vmem:[#allocation2 + $0x8] sm:$0xff]
        %v247 = vld [vmem:[#allocation2 + $0x10] sm:$0xff]
        %v248 = vld [vmem:[#allocation2 + $0x18] sm:$0xff]
        %v249 = vld [vmem:[#allocation2 + $0x20] sm:$0xff]
        %v250 = vld [vmem:[#allocation2 + $0x28] sm:$0xff]
        %v251 = vld [vmem:[#allocation2 + $0x30] sm:$0xff]
        %v252 = vld [vmem:[#allocation2 + $0x38] sm:$0xff]
        %v253 = vld [vmem:[#allocation2 + $0x40] sm:$0xff]
        %v254 = vld [vmem:[#allocation2 + $0x48] sm:$0xff]
        %v255 = vld [vmem:[#allocation2 + $0x50] sm:$0xff]
        %v256 = vld [vmem:[#allocation2 + $0x58] sm:$0xff]
        %v257 = vld [vmem:[#allocation2 + $0x60] sm:$0xff]
        %v258 = vld [vmem:[#allocation2 + $0x68] sm:$0xff]
        %v259 = vld [vmem:[#allocation2 + $0x70] sm:$0xff]
        %v260 = vld [vmem:[#allocation2 + $0x78] sm:$0xff]
        %v261 = vld [vmem:[#allocation2 + $0x80] sm:$0xff]
        %v262 = vld [vmem:[#allocation2 + $0x88] sm:$0xff]
        %v263 = vld [vmem:[#allocation2 + $0x90] sm:$0xff]
        %v264 = vld [vmem:[#allocation2 + $0x98] sm:$0xff]
        %v265 = vld [vmem:[#allocation2 + $0xa0] sm:$0xff]
        %v266 = vld [vmem:[#allocation2 + $0xa8] sm:$0xff]
        %v267 = vld [vmem:[#allocation2 + $0xb0] sm:$0xff]
        %v268 = vld [vmem:[#allocation2 + $0xb8] sm:$0xff]
        %v269 = vld [vmem:[#allocation2 + $0xc0] sm:$0xff]
        %v270 = vld [vmem:[#allocation2 + $0xc8] sm:$0xff]
        %v271 = vld [vmem:[#allocation2 + $0xd0] sm:$0xff]
        %v272 = vld [vmem:[#allocation2 + $0xd8] sm:$0xff]
        %v273 = vld [vmem:[#allocation2 + $0xe0] sm:$0xff]
        %v274 = vld [vmem:[#allocation2 + $0xe8] sm:$0xff]
        %v275 = vld [vmem:[#allocation2 + $0xf0] sm:$0xff]
        %v276 = vld [vmem:[#allocation2 + $0xf8] sm:$0xff]
        %v277 = vld [vmem:[#allocation2 + $0x100] sm:$0xff]
        %v278 = vld [vmem:[#allocation2 + $0x108] sm:$0xff]
        %v279 = vld [vmem:[#allocation2 + $0x110] sm:$0xff]
        %v280 = vld [vmem:[#allocation2 + $0x118] sm:$0xff]
        %v281 = vld [vmem:[#allocation2 + $0x120] sm:$0xff]
        %v282 = vld [vmem:[#allocation2 + $0x128] sm:$0xff]
        %v283 = vld [vmem:[#allocation2 + $0x130] sm:$0xff]
        %v284 = vld [vmem:[#allocation2 + $0x138] sm:$0xff]
        %v285 = vld [vmem:[#allocation2 + $0x140] sm:$0xff]
        %v286 = vld [vmem:[#allocation2 + $0x148] sm:$0xff]
        %v287 = vld [vmem:[#allocation2 + $0x150] sm:$0xff]
        %v288 = vld [vmem:[#allocation2 + $0x158] sm:$0xff]
        %v289 = vld [vmem:[#allocation2 + $0x160] sm:$0xff]
        %v290 = vld [vmem:[#allocation2 + $0x168] sm:$0xff]
        %v291 = vld [vmem:[#allocation2 + $0x170] sm:$0xff]
        %v292 = vld [vmem:[#allocation2 + $0x178] sm:$0xff]
        %v293 = vld [vmem:[#allocation2 + $0x180] sm:$0xff]
        %v294 = vld [vmem:[#allocation2 + $0x188] sm:$0xff]
        %v295 = vld [vmem:[#allocation2 + $0x190] sm:$0xff]
        %v296 = vld [vmem:[#allocation2 + $0x198] sm:$0xff]
        %v297 = vld [vmem:[#allocation2 + $0x1a0] sm:$0xff]
        %v298 = vld [vmem:[#allocation2 + $0x1a8] sm:$0xff]
        %v299 = vld [vmem:[#allocation2 + $0x1b0] sm:$0xff]
        %v300 = vld [vmem:[#allocation2 + $0x1b8] sm:$0xff]
        %v301 = vld [vmem:[#allocation2 + $0x1c0] sm:$0xff]
        %v302 = vld [vmem:[#allocation2 + $0x1c8] sm:$0xff]
        %v303 = vld [vmem:[#allocation2 + $0x1d0] sm:$0xff]
        %v304 = vld [vmem:[#allocation2 + $0x1d8] sm:$0xff]
        %v305 = vld [vmem:[#allocation2 + $0x1e0] sm:$0xff]
        %v306 = vld [vmem:[#allocation2 + $0x1e8] sm:$0xff]
        %v307 = vld [vmem:[#allocation2 + $0x1f0] sm:$0xff]
        %v308 = vld [vmem:[#allocation2 + $0x1f8] sm:$0xff]
        %v309 = vld [vmem:[#allocation2 + $0x200] sm:$0xff]
        %v310 = vld [vmem:[#allocation2 + $0x208] sm:$0xff]
        %v311 = vld [vmem:[#allocation2 + $0x210] sm:$0xff]
        %v312 = vld [vmem:[#allocation2 + $0x218] sm:$0xff]
        %v313 = vld [vmem:[#allocation2 + $0x220] sm:$0xff]
        %v314 = vld [vmem:[#allocation2 + $0x228] sm:$0xff]
        %v315 = vld [vmem:[#allocation2 + $0x230] sm:$0xff]
        %v316 = vld [vmem:[#allocation2 + $0x238] sm:$0xff]
        %v317 = vld [vmem:[#allocation2 + $0x240] sm:$0xff]
        %v318 = vld [vmem:[#allocation2 + $0x248] sm:$0xff]
        %v319 = vld [vmem:[#allocation2 + $0x250] sm:$0xff]
        %v320 = vld [vmem:[#allocation2 + $0x258] sm:$0xff]
        %v321 = vld [vmem:[#allocation2 + $0x260] sm:$0xff]
        %v322 = vld [vmem:[#allocation2 + $0x268] sm:$0xff]
        %v323 = vld [vmem:[#allocation2 + $0x270] sm:$0xff]
        %v324 = vld [vmem:[#allocation2 + $0x278] sm:$0xff]
        %v325 = vld [vmem:[#allocation2 + $0x280] sm:$0xff]
        %v326 = vld [vmem:[#allocation2 + $0x288] sm:$0xff]
        %v327 = vld [vmem:[#allocation2 + $0x290] sm:$0xff]
        %v328 = vld [vmem:[#allocation2 + $0x298] sm:$0xff]
        %v329 = vld [vmem:[#allocation2 + $0x2a0] sm:$0xff]
        %v330 = vld [vmem:[#allocation2 + $0x2a8] sm:$0xff]
        %v331 = vld [vmem:[#allocation2 + $0x2b0] sm:$0xff]
        %v332 = vld [vmem:[#allocation2 + $0x2b8] sm:$0xff]
        %v333 = vld [vmem:[#allocation2 + $0x2c0] sm:$0xff]
        %v334 = vld [vmem:[#allocation2 + $0x2c8] sm:$0xff]
        %v335 = vld [vmem:[#allocation2 + $0x2d0] sm:$0xff]
        %v336 = vld [vmem:[#allocation2 + $0x2d8] sm:$0xff]
        %v337 = vld [vmem:[#allocation2 + $0x2e0] sm:$0xff]
        %v338 = vld [vmem:[#allocation2 + $0x2e8] sm:$0xff]
        %v339 = vld [vmem:[#allocation2 + $0x2f0] sm:$0xff]
        %v340 = vld [vmem:[#allocation2 + $0x2f8] sm:$0xff]
        %v341 = vld [vmem:[#allocation2 + $0x300] sm:$0xff]
        %v342 = vld [vmem:[#allocation2 + $0x308] sm:$0xff]
        %v343 = vld [vmem:[#allocation2 + $0x310] sm:$0xff]
        %v344 = vld [vmem:[#allocation2 + $0x318] sm:$0xff]
        %v345 = vld [vmem:[#allocation2 + $0x320] sm:$0xff]
        %v346 = vld [vmem:[#allocation2 + $0x328] sm:$0xff]
        %v347 = vld [vmem:[#allocation2 + $0x330] sm:$0xff]
        %v348 = vld [vmem:[#allocation2 + $0x338] sm:$0xff]
        %v349 = vld [vmem:[#allocation2 + $0x340] sm:$0xff]
        %v350 = vld [vmem:[#allocation2 + $0x348] sm:$0xff]
        %v351 = vld [vmem:[#allocation2 + $0x350] sm:$0xff]
        %v352 = vld [vmem:[#allocation2 + $0x358] sm:$0xff]
        %v353 = vld [vmem:[#allocation2 + $0x360] sm:$0xff]
        %v354 = vld [vmem:[#allocation2 + $0x368] sm:$0xff]
        %v355 = vld [vmem:[#allocation2 + $0x370] sm:$0xff]
        %v356 = vld [vmem:[#allocation2 + $0x378] sm:$0xff]
        %v357 = vld [vmem:[#allocation2 + $0x380] sm:$0xff]
        %v358 = vld [vmem:[#allocation2 + $0x388] sm:$0xff]
        %v359 = vld [vmem:[#allocation2 + $0x390] sm:$0xff]
        %v360 = vld [vmem:[#allocation2 + $0x398] sm:$0xff]
        %v361 = vld [vmem:[#allocation2 + $0x3a0] sm:$0xff]
        %v362 = vld [vmem:[#allocation2 + $0x3a8] sm:$0xff]
        %v363 = vld [vmem:[#allocation2 + $0x3b0] sm:$0xff]
        %v364 = vld [vmem:[#allocation2 + $0x3b8] sm:$0xff]
        %v365 = vld [vmem:[#allocation2 + $0x3c0] sm:$0xff]
        %v366 = vld [vmem:[#allocation2 + $0x3c8] sm:$0xff]
        %v367 = vld [vmem:[#allocation2 + $0x3d0] sm:$0xff]
        %v368 = vld [vmem:[#allocation2 + $0x3d8] sm:$0xff]
        %v369 = vld [vmem:[#allocation2 + $0x3e0] sm:$0xff]
        %v370 = vld [vmem:[#allocation2 + $0x3e8] sm:$0xff]
        %v371 = vld [vmem:[#allocation2 + $0x3f0] sm:$0xff]
        %v372 = vld [vmem:[#allocation2 + $0x3f8] sm:$0xff]
        %v373 = vld [vmem:[#allocation2 + $0x400] sm:$0xff]
        %v374 = vld [vmem:[#allocation2 + $0x408] sm:$0xff]
        %v375 = vld [vmem:[#allocation2 + $0x410] sm:$0xff]
        %v376 = vld [vmem:[#allocation2 + $0x418] sm:$0xff]
        %v377 = vld [vmem:[#allocation2 + $0x420] sm:$0xff]
        %v378 = vld [vmem:[#allocation2 + $0x428] sm:$0xff]
        %v379 = vld [vmem:[#allocation2 + $0x430] sm:$0xff]
        %v380 = vld [vmem:[#allocation2 + $0x438] sm:$0xff]
        %v381 = vld [vmem:[#allocation2 + $0x440] sm:$0xff]
        %v382 = vld [vmem:[#allocation2 + $0x448] sm:$0xff]
        %v383 = vld [vmem:[#allocation2 + $0x450] sm:$0xff]
        %v384 = vld [vmem:[#allocation2 + $0x458] sm:$0xff]
        %v385 = vld [vmem:[#allocation2 + $0x460] sm:$0xff]
        %v386 = vld [vmem:[#allocation2 + $0x468] sm:$0xff]
        %v387 = vld [vmem:[#allocation2 + $0x470] sm:$0xff]
        %v388 = vld [vmem:[#allocation2 + $0x478] sm:$0xff]
        %v389 = vld [vmem:[#allocation2 + $0x480] sm:$0xff]
        %v390 = vld [vmem:[#allocation2 + $0x488] sm:$0xff]
        %v391 = vld [vmem:[#allocation2 + $0x490] sm:$0xff]
        %v392 = vld [vmem:[#allocation2 + $0x498] sm:$0xff]
        %v393 = vld [vmem:[#allocation2 + $0x4a0] sm:$0xff]
        %v394 = vld [vmem:[#allocation2 + $0x4a8] sm:$0xff]
        %v395 = vld [vmem:[#allocation2 + $0x4b0] sm:$0xff]
        %v396 = vld [vmem:[#allocation2 + $0x4b8] sm:$0xff]
        %v397 = vld [vmem:[#allocation2 + $0x4c0] sm:$0xff]
        %v398 = vld [vmem:[#allocation2 + $0x4c8] sm:$0xff]
        %v399 = vld [vmem:[#allocation2 + $0x4d0] sm:$0xff]
        %v400 = vld [vmem:[#allocation2 + $0x4d8] sm:$0xff]
        %v401 = vld [vmem:[#allocation2 + $0x4e0] sm:$0xff]
        %v402 = vld [vmem:[#allocation2 + $0x4e8] sm:$0xff]
        %v403 = vld [vmem:[#allocation2 + $0x4f0] sm:$0xff]
        %v404 = vld [vmem:[#allocation2 + $0x4f8] sm:$0xff]
        %v405 = vld [vmem:[#allocation2 + $0x500] sm:$0xff]
        %v406 = vld [vmem:[#allocation2 + $0x508] sm:$0xff]
        %v407 = vld [vmem:[#allocation2 + $0x510] sm:$0xff]
        %v408 = vld [vmem:[#allocation2 + $0x518] sm:$0xff]
        %v409 = vld [vmem:[#allocation2 + $0x520] sm:$0xff]
        %v410 = vld [vmem:[#allocation2 + $0x528] sm:$0xff]
        %v411 = vld [vmem:[#allocation2 + $0x530] sm:$0xff]
        %v412 = vld [vmem:[#allocation2 + $0x538] sm:$0xff]
        %v413 = vld [vmem:[#allocation2 + $0x540] sm:$0xff]
        %v414 = vld [vmem:[#allocation2 + $0x548] sm:$0xff]
        %v415 = vld [vmem:[#allocation2 + $0x550] sm:$0xff]
        %v416 = vld [vmem:[#allocation2 + $0x558] sm:$0xff]
        %v417 = vld [vmem:[#allocation2 + $0x560] sm:$0xff]
        %v418 = vld [vmem:[#allocation2 + $0x568] sm:$0xff]
        %v419 = vld [vmem:[#allocation2 + $0x570] sm:$0xff]
        %v420 = vld [vmem:[#allocation2 + $0x578] sm:$0xff]
        %v421 = vld [vmem:[#allocation2 + $0x580] sm:$0xff]
        %v422 = vld [vmem:[#allocation2 + $0x588] sm:$0xff]
        %v423 = vld [vmem:[#allocation2 + $0x590] sm:$0xff]
        %v424 = vld [vmem:[#allocation2 + $0x598] sm:$0xff]
        %v425 = vld [vmem:[#allocation2 + $0x5a0] sm:$0xff]
        %v426 = vld [vmem:[#allocation2 + $0x5a8] sm:$0xff]
        %v427 = vld [vmem:[#allocation2 + $0x5b0] sm:$0xff]
        %v428 = vld [vmem:[#allocation2 + $0x5b8] sm:$0xff]
        %v429 = vld [vmem:[#allocation2 + $0x5c0] sm:$0xff]
        %v430 = vld [vmem:[#allocation2 + $0x5c8] sm:$0xff]
        %v431 = vld [vmem:[#allocation2 + $0x5d0] sm:$0xff]
        %v432 = vld [vmem:[#allocation2 + $0x5d8] sm:$0xff]
        %v433 = vld [vmem:[#allocation2 + $0x5e0] sm:$0xff]
        %v434 = vld [vmem:[#allocation2 + $0x5e8] sm:$0xff]
        %v435 = vld [vmem:[#allocation2 + $0x5f0] sm:$0xff]
        %v436 = vld [vmem:[#allocation2 + $0x5f8] sm:$0xff]
        %v437 = vld [vmem:[#allocation2 + $0x600] sm:$0xff]
        %v438 = vld [vmem:[#allocation2 + $0x608] sm:$0xff]
        %v439 = vld [vmem:[#allocation2 + $0x610] sm:$0xff]
        %v440 = vld [vmem:[#allocation2 + $0x618] sm:$0xff]
        %v441 = vld [vmem:[#allocation2 + $0x620] sm:$0xff]
        %v442 = vld [vmem:[#allocation2 + $0x628] sm:$0xff]
        %v443 = vld [vmem:[#allocation2 + $0x630] sm:$0xff]
        %v444 = vld [vmem:[#allocation2 + $0x638] sm:$0xff]
        %v445 = vld [vmem:[#allocation2 + $0x640] sm:$0xff]
        %v446 = vld [vmem:[#allocation2 + $0x648] sm:$0xff]
        %v447 = vld [vmem:[#allocation2 + $0x650] sm:$0xff]
        %v448 = vld [vmem:[#allocation2 + $0x658] sm:$0xff]
        %v449 = vld [vmem:[#allocation2 + $0x660] sm:$0xff]
        %v450 = vld [vmem:[#allocation2 + $0x668] sm:$0xff]
        %v451 = vld [vmem:[#allocation2 + $0x670] sm:$0xff]
        %v452 = vld [vmem:[#allocation2 + $0x678] sm:$0xff]
        %v453 = vld [vmem:[#allocation2 + $0x680] sm:$0xff]
        %v454 = vld [vmem:[#allocation2 + $0x688] sm:$0xff]
        %v455 = vld [vmem:[#allocation2 + $0x690] sm:$0xff]
        %v456 = vld [vmem:[#allocation2 + $0x698] sm:$0xff]
        %v457 = vld [vmem:[#allocation2 + $0x6a0] sm:$0xff]
        %v458 = vld [vmem:[#allocation2 + $0x6a8] sm:$0xff]
        %v459 = vld [vmem:[#allocation2 + $0x6b0] sm:$0xff]
        %v460 = vld [vmem:[#allocation2 + $0x6b8] sm:$0xff]
        %v461 = vld [vmem:[#allocation2 + $0x6c0] sm:$0xff]
        %v462 = vld [vmem:[#allocation2 + $0x6c8] sm:$0xff]
        %v463 = vld [vmem:[#allocation2 + $0x6d0] sm:$0xff]
        %v464 = vld [vmem:[#allocation2 + $0x6d8] sm:$0xff]
        %v465 = vld [vmem:[#allocation2 + $0x6e0] sm:$0xff]
        %v466 = vld [vmem:[#allocation2 + $0x6e8] sm:$0xff]
        %v467 = vld [vmem:[#allocation2 + $0x6f0] sm:$0xff]
        %v468 = vld [vmem:[#allocation2 + $0x6f8] sm:$0xff]
        %v469 = vld [vmem:[#allocation2 + $0x700] sm:$0xff]
        %v470 = vld [vmem:[#allocation2 + $0x708] sm:$0xff]
        %v471 = vld [vmem:[#allocation2 + $0x710] sm:$0xff]
        %v472 = vld [vmem:[#allocation2 + $0x718] sm:$0xff]
        %v473 = vld [vmem:[#allocation2 + $0x720] sm:$0xff]
        %v474 = vld [vmem:[#allocation2 + $0x728] sm:$0xff]
        %v475 = vld [vmem:[#allocation2 + $0x730] sm:$0xff]
        %v476 = vld [vmem:[#allocation2 + $0x738] sm:$0xff]
        %v477 = vld [vmem:[#allocation2 + $0x740] sm:$0xff]
        %v478 = vld [vmem:[#allocation2 + $0x748] sm:$0xff]
        %v479 = vld [vmem:[%s212] sm:$0xff]
        %v480 = vld [vmem:[%s212 + $0x8] sm:$0xff]
        %v481 = vld [vmem:[%s212 + $0x10] sm:$0xff]
        %v482 = vld [vmem:[%s212 + $0x18] sm:$0xff]
        %v483 = vld [vmem:[%s212 + $0x20] sm:$0xff]
        %v484 = vld [vmem:[%s212 + $0x28] sm:$0xff]
        %v485 = vld [vmem:[%s212 + $0x30] sm:$0xff]
        %v486 = vld [vmem:[%s212 + $0x38] sm:$0xff]
        %v487 = vld [vmem:[%s212 + $0x40] sm:$0xff]
        %v488 = vld [vmem:[%s212 + $0x48] sm:$0xff]
        %v489 = vld [vmem:[%s212 + $0x50] sm:$0xff]
        %v490 = vld [vmem:[%s212 + $0x58] sm:$0xff]
        %v491 = vld [vmem:[%s212 + $0x60] sm:$0xff]
        %v492 = vld [vmem:[%s212 + $0x68] sm:$0xff]
        %v493 = vld [vmem:[%s212 + $0x70] sm:$0xff]
        %v494 = vld [vmem:[%s212 + $0x78] sm:$0xff]
        %v495 = vld [vmem:[%s212 + $0x80] sm:$0xff]
        %v496 = vld [vmem:[%s212 + $0x88] sm:$0xff]
        %v497 = vld [vmem:[%s212 + $0x90] sm:$0xff]
        %v498 = vld [vmem:[%s212 + $0x98] sm:$0xff]
        %v499 = vld [vmem:[%s212 + $0xa0] sm:$0xff]
        %v500 = vld [vmem:[%s212 + $0xa8] sm:$0xff]
        %v501 = vld [vmem:[%s212 + $0xb0] sm:$0xff]
        %v502 = vld [vmem:[%s212 + $0xb8] sm:$0xff]
        %v503 = vld [vmem:[%s212 + $0xc0] sm:$0xff]
        %v504 = vld [vmem:[%s212 + $0xc8] sm:$0xff]
        %v505 = vld [vmem:[%s212 + $0xd0] sm:$0xff]
        %v506 = vld [vmem:[%s212 + $0xd8] sm:$0xff]
        %v507 = vld [vmem:[%s212 + $0xe0] sm:$0xff]
        %v508 = vld [vmem:[%s212 + $0xe8] sm:$0xff]
        %v509 = vld [vmem:[%s212 + $0xf0] sm:$0xff]
        %v510 = vld [vmem:[%s212 + $0xf8] sm:$0xff]
        %v511 = vld [vmem:[%s212 + $0x100] sm:$0xff]
        %v512 = vld [vmem:[%s212 + $0x108] sm:$0xff]
        %v513 = vld [vmem:[%s212 + $0x110] sm:$0xff]
        %v514 = vld [vmem:[%s212 + $0x118] sm:$0xff]
        %v515 = vld [vmem:[%s212 + $0x120] sm:$0xff]
        %v516 = vld [vmem:[%s212 + $0x128] sm:$0xff]
        %v517 = vld [vmem:[%s212 + $0x130] sm:$0xff]
        %v518 = vld [vmem:[%s212 + $0x138] sm:$0xff]
        %v519 = vld [vmem:[%s212 + $0x140] sm:$0xff]
        %v520 = vld [vmem:[%s212 + $0x148] sm:$0xff]
        %v521 = vld [vmem:[%s212 + $0x150] sm:$0xff]
        %v522 = vld [vmem:[%s212 + $0x158] sm:$0xff]
        %v523 = vld [vmem:[%s212 + $0x160] sm:$0xff]
        %v524 = vld [vmem:[%s212 + $0x168] sm:$0xff]
        %v525 = vld [vmem:[%s212 + $0x170] sm:$0xff]
        %v526 = vld [vmem:[%s212 + $0x178] sm:$0xff]
        %v527 = vld [vmem:[%s212 + $0x180] sm:$0xff]
        %v528 = vld [vmem:[%s212 + $0x188] sm:$0xff]
        %v529 = vld [vmem:[%s212 + $0x190] sm:$0xff]
        %v530 = vld [vmem:[%s212 + $0x198] sm:$0xff]
        %v531 = vld [vmem:[%s212 + $0x1a0] sm:$0xff]
        %v532 = vld [vmem:[%s212 + $0x1a8] sm:$0xff]
        %v533 = vld [vmem:[%s212 + $0x1b0] sm:$0xff]
        %v534 = vld [vmem:[%s212 + $0x1b8] sm:$0xff]
        %v535 = vld [vmem:[%s212 + $0x1c0] sm:$0xff]
        %v536 = vld [vmem:[%s212 + $0x1c8] sm:$0xff]
        %v537 = vld [vmem:[%s212 + $0x1d0] sm:$0xff]
        %v538 = vld [vmem:[%s212 + $0x1d8] sm:$0xff]
        %v539 = vld [vmem:[%s212 + $0x1e0] sm:$0xff]
        %v540 = vld [vmem:[%s212 + $0x1e8] sm:$0xff]
        %v541 = vld [vmem:[%s212 + $0x1f0] sm:$0xff]
        %v542 = vld [vmem:[%s212 + $0x1f8] sm:$0xff]
        %v543 = vld [vmem:[%s212 + $0x200] sm:$0xff]
        %v544 = vld [vmem:[%s212 + $0x208] sm:$0xff]
        %v545 = vld [vmem:[%s212 + $0x210] sm:$0xff]
        %v546 = vld [vmem:[%s212 + $0x218] sm:$0xff]
        %v547 = vld [vmem:[%s212 + $0x220] sm:$0xff]
        %v548 = vld [vmem:[%s212 + $0x228] sm:$0xff]
        %v549 = vld [vmem:[%s212 + $0x230] sm:$0xff]
        %v550 = vld [vmem:[%s212 + $0x238] sm:$0xff]
        %v551 = vld [vmem:[%s212 + $0x240] sm:$0xff]
        %v552 = vld [vmem:[%s212 + $0x248] sm:$0xff]
        %v553 = vld [vmem:[%s212 + $0x250] sm:$0xff]
        %v554 = vld [vmem:[%s212 + $0x258] sm:$0xff]
        %v555 = vld [vmem:[%s212 + $0x260] sm:$0xff]
        %v556 = vld [vmem:[%s212 + $0x268] sm:$0xff]
        %v557 = vld [vmem:[%s212 + $0x270] sm:$0xff]
        %v558 = vld [vmem:[%s212 + $0x278] sm:$0xff]
        %v559 = vld [vmem:[%s212 + $0x280] sm:$0xff]
        %v560 = vld [vmem:[%s212 + $0x288] sm:$0xff]
        %v561 = vld [vmem:[%s212 + $0x290] sm:$0xff]
        %v562 = vld [vmem:[%s212 + $0x298] sm:$0xff]
        %v563 = vld [vmem:[%s212 + $0x2a0] sm:$0xff]
        %v564 = vld [vmem:[%s212 + $0x2a8] sm:$0xff]
        %v565 = vld [vmem:[%s212 + $0x2b0] sm:$0xff]
        %v566 = vld [vmem:[%s212 + $0x2b8] sm:$0xff]
        %v567 = vld [vmem:[%s212 + $0x2c0] sm:$0xff]
        %v568 = vld [vmem:[%s212 + $0x2c8] sm:$0xff]
        %v569 = vld [vmem:[%s212 + $0x2d0] sm:$0xff]
        %v570 = vld [vmem:[%s212 + $0x2d8] sm:$0xff]
        %v571 = vld [vmem:[%s212 + $0x2e0] sm:$0xff]
        %v572 = vld [vmem:[%s212 + $0x2e8] sm:$0xff]
        %v573 = vld [vmem:[%s212 + $0x2f0] sm:$0xff]
        %v574 = vld [vmem:[%s212 + $0x2f8] sm:$0xff]
        %v575 = vld [vmem:[%s212 + $0x300] sm:$0xff]
        %v576 = vld [vmem:[%s212 + $0x308] sm:$0xff]
        %v577 = vld [vmem:[%s212 + $0x310] sm:$0xff]
        %v578 = vld [vmem:[%s212 + $0x318] sm:$0xff]
        %v579 = vld [vmem:[%s212 + $0x320] sm:$0xff]
        %v580 = vld [vmem:[%s212 + $0x328] sm:$0xff]
        %v581 = vld [vmem:[%s212 + $0x330] sm:$0xff]
        %v582 = vld [vmem:[%s212 + $0x338] sm:$0xff]
        %v583 = vld [vmem:[%s212 + $0x340] sm:$0xff]
        %v584 = vld [vmem:[%s212 + $0x348] sm:$0xff]
        %v585 = vld [vmem:[%s212 + $0x350] sm:$0xff]
        %v586 = vld [vmem:[%s212 + $0x358] sm:$0xff]
        %v587 = vld [vmem:[%s212 + $0x360] sm:$0xff]
        %v588 = vld [vmem:[%s212 + $0x368] sm:$0xff]
        %v589 = vld [vmem:[%s212 + $0x370] sm:$0xff]
        %v590 = vld [vmem:[%s212 + $0x378] sm:$0xff]
        %v591 = vld [vmem:[%s212 + $0x380] sm:$0xff]
        %v592 = vld [vmem:[%s212 + $0x388] sm:$0xff]
        %v593 = vld [vmem:[%s212 + $0x390] sm:$0xff]
        %v594 = vld [vmem:[%s212 + $0x398] sm:$0xff]
        %v595 = vld [vmem:[%s212 + $0x3a0] sm:$0xff]
        %v596 = vld [vmem:[%s212 + $0x3a8] sm:$0xff]
        %v597 = vld [vmem:[%s212 + $0x3b0] sm:$0xff]
        %v598 = vld [vmem:[%s212 + $0x3b8] sm:$0xff]
        %v599 = vld [vmem:[%s212 + $0x3c0] sm:$0xff]
        %v600 = vld [vmem:[%s212 + $0x3c8] sm:$0xff]
        %v601 = vld [vmem:[%s212 + $0x3d0] sm:$0xff]
        %v602 = vld [vmem:[%s212 + $0x3d8] sm:$0xff]
        %v603 = vld [vmem:[%s212 + $0x3e0] sm:$0xff]
        %v604 = vld [vmem:[%s212 + $0x3e8] sm:$0xff]
        %v605 = vld [vmem:[%s212 + $0x3f0] sm:$0xff]
        %v606 = vld [vmem:[%s212 + $0x3f8] sm:$0xff]
        %v607 = vld [vmem:[%s212 + $0x400] sm:$0xff]
        %v608 = vld [vmem:[%s212 + $0x408] sm:$0xff]
        %v609 = vld [vmem:[%s212 + $0x410] sm:$0xff]
        %v610 = vld [vmem:[%s212 + $0x418] sm:$0xff]
        %v611 = vld [vmem:[%s212 + $0x420] sm:$0xff]
        %v612 = vld [vmem:[%s212 + $0x428] sm:$0xff]
        %v613 = vld [vmem:[%s212 + $0x430] sm:$0xff]
        %v614 = vld [vmem:[%s212 + $0x438] sm:$0xff]
        %v615 = vld [vmem:[%s212 + $0x440] sm:$0xff]
        %v616 = vld [vmem:[%s212 + $0x448] sm:$0xff]
        %v617 = vld [vmem:[%s212 + $0x450] sm:$0xff]
        %v618 = vld [vmem:[%s212 + $0x458] sm:$0xff]
        %v619 = vld [vmem:[%s212 + $0x460] sm:$0xff]
        %v620 = vld [vmem:[%s212 + $0x468] sm:$0xff]
        %v621 = vld [vmem:[%s212 + $0x470] sm:$0xff]
        %v622 = vld [vmem:[%s212 + $0x478] sm:$0xff]
        %v623 = vld [vmem:[%s212 + $0x480] sm:$0xff]
        %v624 = vld [vmem:[%s212 + $0x488] sm:$0xff]
        %v625 = vld [vmem:[%s212 + $0x490] sm:$0xff]
        %v626 = vld [vmem:[%s212 + $0x498] sm:$0xff]
        %v627 = vld [vmem:[%s212 + $0x4a0] sm:$0xff]
        %v628 = vld [vmem:[%s212 + $0x4a8] sm:$0xff]
        %v629 = vld [vmem:[%s212 + $0x4b0] sm:$0xff]
        %v630 = vld [vmem:[%s212 + $0x4b8] sm:$0xff]
        %v631 = vld [vmem:[%s212 + $0x4c0] sm:$0xff]
        %v632 = vld [vmem:[%s212 + $0x4c8] sm:$0xff]
        %v633 = vld [vmem:[%s212 + $0x4d0] sm:$0xff]
        %v634 = vld [vmem:[%s212 + $0x4d8] sm:$0xff]
        %v635 = vld [vmem:[%s212 + $0x4e0] sm:$0xff]
        %v636 = vld [vmem:[%s212 + $0x4e8] sm:$0xff]
        %v637 = vld [vmem:[%s212 + $0x4f0] sm:$0xff]
        %v638 = vld [vmem:[%s212 + $0x4f8] sm:$0xff]
        %v639 = vld [vmem:[%s212 + $0x500] sm:$0xff]
        %v640 = vld [vmem:[%s212 + $0x508] sm:$0xff]
        %v641 = vld [vmem:[%s212 + $0x510] sm:$0xff]
        %v642 = vld [vmem:[%s212 + $0x518] sm:$0xff]
        %v643 = vld [vmem:[%s212 + $0x520] sm:$0xff]
        %v644 = vld [vmem:[%s212 + $0x528] sm:$0xff]
        %v645 = vld [vmem:[%s212 + $0x530] sm:$0xff]
        %v646 = vld [vmem:[%s212 + $0x538] sm:$0xff]
        %v647 = vld [vmem:[%s212 + $0x540] sm:$0xff]
        %v648 = vld [vmem:[%s212 + $0x548] sm:$0xff]
        %v649 = vld [vmem:[%s212 + $0x550] sm:$0xff]
        %v650 = vld [vmem:[%s212 + $0x558] sm:$0xff]
        %v651 = vld [vmem:[%s212 + $0x560] sm:$0xff]
        %v652 = vld [vmem:[%s212 + $0x568] sm:$0xff]
        %v653 = vld [vmem:[%s212 + $0x570] sm:$0xff]
        %v654 = vld [vmem:[%s212 + $0x578] sm:$0xff]
        %v655 = vld [vmem:[%s212 + $0x580] sm:$0xff]
        %v656 = vld [vmem:[%s212 + $0x588] sm:$0xff]
        %v657 = vld [vmem:[%s212 + $0x590] sm:$0xff]
        %v658 = vld [vmem:[%s212 + $0x598] sm:$0xff]
        %v659 = vld [vmem:[%s212 + $0x5a0] sm:$0xff]
        %v660 = vld [vmem:[%s212 + $0x5a8] sm:$0xff]
        %v661 = vld [vmem:[%s212 + $0x5b0] sm:$0xff]
        %v662 = vld [vmem:[%s212 + $0x5b8] sm:$0xff]
        %v663 = vld [vmem:[%s212 + $0x5c0] sm:$0xff]
        %v664 = vld [vmem:[%s212 + $0x5c8] sm:$0xff]
        %v665 = vld [vmem:[%s212 + $0x5d0] sm:$0xff]
        %v666 = vld [vmem:[%s212 + $0x5d8] sm:$0xff]
        %v667 = vld [vmem:[%s212 + $0x5e0] sm:$0xff]
        %v668 = vld [vmem:[%s212 + $0x5e8] sm:$0xff]
        %v669 = vld [vmem:[%s212 + $0x5f0] sm:$0xff]
        %v670 = vld [vmem:[%s212 + $0x5f8] sm:$0xff]
        %v671 = vld [vmem:[%s212 + $0x600] sm:$0xff]
        %v672 = vld [vmem:[%s212 + $0x608] sm:$0xff]
        %v673 = vld [vmem:[%s212 + $0x610] sm:$0xff]
        %v674 = vld [vmem:[%s212 + $0x618] sm:$0xff]
        %v675 = vld [vmem:[%s212 + $0x620] sm:$0xff]
        %v676 = vld [vmem:[%s212 + $0x628] sm:$0xff]
        %v677 = vld [vmem:[%s212 + $0x630] sm:$0xff]
        %v678 = vld [vmem:[%s212 + $0x638] sm:$0xff]
        %v679 = vld [vmem:[%s212 + $0x640] sm:$0xff]
        %v680 = vld [vmem:[%s212 + $0x648] sm:$0xff]
        %v681 = vld [vmem:[%s212 + $0x650] sm:$0xff]
        %v682 = vld [vmem:[%s212 + $0x658] sm:$0xff]
        %v683 = vld [vmem:[%s212 + $0x660] sm:$0xff]
        %v684 = vld [vmem:[%s212 + $0x668] sm:$0xff]
        %v685 = vld [vmem:[%s212 + $0x670] sm:$0xff]
        %v686 = vld [vmem:[%s212 + $0x678] sm:$0xff]
        %v687 = vld [vmem:[%s212 + $0x680] sm:$0xff]
        %v688 = vld [vmem:[%s212 + $0x688] sm:$0xff]
        %v689 = vld [vmem:[%s212 + $0x690] sm:$0xff]
        %v690 = vld [vmem:[%s212 + $0x698] sm:$0xff]
        %v691 = vld [vmem:[%s212 + $0x6a0] sm:$0xff]
        %v692 = vld [vmem:[%s212 + $0x6a8] sm:$0xff]
        %v693 = vld [vmem:[%s212 + $0x6b0] sm:$0xff]
        %v694 = vld [vmem:[%s212 + $0x6b8] sm:$0xff]
        %v695 = vld [vmem:[%s212 + $0x6c0] sm:$0xff]
        %v696 = vld [vmem:[%s212 + $0x6c8] sm:$0xff]
        %v697 = vld [vmem:[%s212 + $0x6d0] sm:$0xff]
        %v698 = vld [vmem:[%s212 + $0x6d8] sm:$0xff]
        %v699 = vld [vmem:[%s212 + $0x6e0] sm:$0xff]
        %v700 = vld [vmem:[%s212 + $0x6e8] sm:$0xff]
        %v701 = vld [vmem:[%s212 + $0x6f0] sm:$0xff]
        %v702 = vld [vmem:[%s212 + $0x6f8] sm:$0xff]
        %v703 = vld [vmem:[%s212 + $0x700] sm:$0xff]
        %v704 = vld [vmem:[%s212 + $0x708] sm:$0xff]
        %v705 = vld [vmem:[%s212 + $0x710] sm:$0xff]
        %v706 = vld [vmem:[%s212 + $0x718] sm:$0xff]
        %v707 = vld [vmem:[%s212 + $0x720] sm:$0xff]
        %v708 = vld [vmem:[%s212 + $0x728] sm:$0xff]
        %v709 = vld [vmem:[%s212 + $0x730] sm:$0xff]
        %v710 = vld [vmem:[%s212 + $0x738] sm:$0xff]
        %v711 = vld [vmem:[%s212 + $0x740] sm:$0xff]
        %v712 = vld [vmem:[%s212 + $0x748] sm:$0xff]
        %v713 = vld [vmem:[%s212 + $0x750] sm:$0xff]
        %v714 = vld [vmem:[%s212 + $0x758] sm:$0xff]
        %v715 = vld [vmem:[%s212 + $0x760] sm:$0xff]
        %v716 = vld [vmem:[%s212 + $0x768] sm:$0xff]
        %v717 = vld [vmem:[%s212 + $0x770] sm:$0xff]
        %v718 = vld [vmem:[%s212 + $0x778] sm:$0xff]
        %v719 = vld [vmem:[%s212 + $0x780] sm:$0xff]
        %v720 = vld [vmem:[%s212 + $0x788] sm:$0xff]
        %v721 = vld [vmem:[%s212 + $0x790] sm:$0xff]
        %v722 = vld [vmem:[%s212 + $0x798] sm:$0xff]
        %v723 = vld [vmem:[%s212 + $0x7a0] sm:$0xff]
        %v724 = vld [vmem:[%s212 + $0x7a8] sm:$0xff]
        %v725 = vld [vmem:[%s212 + $0x7b0] sm:$0xff]
        %v726 = vld [vmem:[%s212 + $0x7b8] sm:$0xff]
        %v727 = vld [vmem:[%s212 + $0x7c0] sm:$0xff]
        %v728 = vld [vmem:[%s212 + $0x7c8] sm:$0xff]
        %v729 = vld [vmem:[%s212 + $0x7d0] sm:$0xff]
        %v730 = vld [vmem:[%s212 + $0x7d8] sm:$0xff]
        %v731 = vld [vmem:[%s212 + $0x7e0] sm:$0xff]
        %v732 = vld [vmem:[%s212 + $0x7e8] sm:$0xff]
        %v733 = vld [vmem:[%s212 + $0x7f0] sm:$0xff]
        %v734 = vld [vmem:[%s212 + $0x7f8] sm:$0xff]
        %v735 = vld [vmem:[%s212 + $0x800] sm:$0xff]
        %v736 = vld [vmem:[%s212 + $0x808] sm:$0xff]
        %v737 = vld [vmem:[%s212 + $0x810] sm:$0xff]
        %v738 = vld [vmem:[%s212 + $0x818] sm:$0xff]
        %v739 = vld [vmem:[%s212 + $0x820] sm:$0xff]
        %v740 = vld [vmem:[%s212 + $0x828] sm:$0xff]
        %v741 = vld [vmem:[%s212 + $0x830] sm:$0xff]
        %v742 = vld [vmem:[%s212 + $0x838] sm:$0xff]
        %v743 = vld [vmem:[%s212 + $0x840] sm:$0xff]
        %v744 = vld [vmem:[%s212 + $0x848] sm:$0xff]
        %v745 = vld [vmem:[%s212 + $0x850] sm:$0xff]
        %v746 = vld [vmem:[%s212 + $0x858] sm:$0xff]
        %v747 = vld [vmem:[%s212 + $0x860] sm:$0xff]
        %v748 = vld [vmem:[%s212 + $0x868] sm:$0xff]
        %v749 = vld [vmem:[%s212 + $0x870] sm:$0xff]
        %v750 = vld [vmem:[%s212 + $0x878] sm:$0xff]
        %v751 = vld [vmem:[%s212 + $0x880] sm:$0xff]
        %v752 = vld [vmem:[%s212 + $0x888] sm:$0xff]
        %v753 = vld [vmem:[%s212 + $0x890] sm:$0xff]
        %v754 = vld [vmem:[%s212 + $0x898] sm:$0xff]
        %v755 = vld [vmem:[%s212 + $0x8a0] sm:$0xff]
        %v756 = vld [vmem:[%s212 + $0x8a8] sm:$0xff]
        %v757 = vld [vmem:[%s212 + $0x8b0] sm:$0xff]
        %v758 = vld [vmem:[%s212 + $0x8b8] sm:$0xff]
        %v759 = vld [vmem:[%s212 + $0x8c0] sm:$0xff]
        %v760 = vld [vmem:[%s212 + $0x8c8] sm:$0xff]
        %v761 = vld [vmem:[%s212 + $0x8d0] sm:$0xff]
        %v762 = vld [vmem:[%s212 + $0x8d8] sm:$0xff]
        %v763 = vld [vmem:[%s212 + $0x8e0] sm:$0xff]
        %v764 = vld [vmem:[%s212 + $0x8e8] sm:$0xff]
        %v765 = vld [vmem:[%s212 + $0x8f0] sm:$0xff]
        %v766 = vld [vmem:[%s212 + $0x8f8] sm:$0xff]
        %v767 = vld [vmem:[%s212 + $0x900] sm:$0xff]
        %v768 = vld [vmem:[%s212 + $0x908] sm:$0xff]
        %v769 = vld [vmem:[%s212 + $0x910] sm:$0xff]
        %v770 = vld [vmem:[%s212 + $0x918] sm:$0xff]
        %v771 = vld [vmem:[%s212 + $0x920] sm:$0xff]
        %v772 = vld [vmem:[%s212 + $0x928] sm:$0xff]
        %v773 = vld [vmem:[%s212 + $0x930] sm:$0xff]
        %v774 = vld [vmem:[%s212 + $0x938] sm:$0xff]
        %v775 = vld [vmem:[%s212 + $0x940] sm:$0xff]
        %v776 = vld [vmem:[%s212 + $0x948] sm:$0xff]
        %v777 = vld [vmem:[%s212 + $0x950] sm:$0xff]
        %v778 = vld [vmem:[%s212 + $0x958] sm:$0xff]
        %v779 = vld [vmem:[%s212 + $0x960] sm:$0xff]
        %v780 = vld [vmem:[%s212 + $0x968] sm:$0xff]
        %v781 = vld [vmem:[%s212 + $0x970] sm:$0xff]
        %v782 = vld [vmem:[%s212 + $0x978] sm:$0xff]
        %v783 = vld [vmem:[%s212 + $0x980] sm:$0xff]
        %v784 = vld [vmem:[%s212 + $0x988] sm:$0xff]
        %v785 = vld [vmem:[%s212 + $0x990] sm:$0xff]
        %v786 = vld [vmem:[%s212 + $0x998] sm:$0xff]
        %v787 = vld [vmem:[%s212 + $0x9a0] sm:$0xff]
        %v788 = vld [vmem:[%s212 + $0x9a8] sm:$0xff]
        %v789 = vld [vmem:[%s212 + $0x9b0] sm:$0xff]
        %v790 = vld [vmem:[%s212 + $0x9b8] sm:$0xff]
        %v791 = vld [vmem:[%s212 + $0x9c0] sm:$0xff]
        %v792 = vld [vmem:[%s212 + $0x9c8] sm:$0xff]
        %v793 = vld [vmem:[%s212 + $0x9d0] sm:$0xff]
        %v794 = vld [vmem:[%s212 + $0x9d8] sm:$0xff]
        %v795 = vld [vmem:[%s212 + $0x9e0] sm:$0xff]
        %v796 = vld [vmem:[%s212 + $0x9e8] sm:$0xff]
        %v797 = vld [vmem:[%s212 + $0x9f0] sm:$0xff]
        %v798 = vld [vmem:[%s212 + $0x9f8] sm:$0xff]
        %v799 = vld [vmem:[%s212 + $0xa00] sm:$0xff]
        %v800 = vld [vmem:[%s212 + $0xa08] sm:$0xff]
        %v801 = vld [vmem:[%s212 + $0xa10] sm:$0xff]
        %v802 = vld [vmem:[%s212 + $0xa18] sm:$0xff]
        %v803 = vld [vmem:[%s212 + $0xa20] sm:$0xff]
        %v804 = vld [vmem:[%s212 + $0xa28] sm:$0xff]
        %v805 = vld [vmem:[%s212 + $0xa30] sm:$0xff]
        %v806 = vld [vmem:[%s212 + $0xa38] sm:$0xff]
        %v807 = vld [vmem:[%s212 + $0xa40] sm:$0xff]
        %v808 = vld [vmem:[%s212 + $0xa48] sm:$0xff]
        %v809 = vld [vmem:[%s212 + $0xa50] sm:$0xff]
        %v810 = vld [vmem:[%s212 + $0xa58] sm:$0xff]
        %v811 = vld [vmem:[%s212 + $0xa60] sm:$0xff]
        %v812 = vld [vmem:[%s212 + $0xa68] sm:$0xff]
        %v813 = vld [vmem:[%s212 + $0xa70] sm:$0xff]
        %v814 = vld [vmem:[%s212 + $0xa78] sm:$0xff]
        %v815 = vld [vmem:[%s212 + $0xa80] sm:$0xff]
        %v816 = vld [vmem:[%s212 + $0xa88] sm:$0xff]
        %v817 = vld [vmem:[%s212 + $0xa90] sm:$0xff]
        %v818 = vld [vmem:[%s212 + $0xa98] sm:$0xff]
        %v819 = vld [vmem:[%s212 + $0xaa0] sm:$0xff]
        %v820 = vld [vmem:[%s212 + $0xaa8] sm:$0xff]
        %v821 = vld [vmem:[%s212 + $0xab0] sm:$0xff]
        %v822 = vld [vmem:[%s212 + $0xab8] sm:$0xff]
        %v823 = vld [vmem:[%s212 + $0xac0] sm:$0xff]
        %v824 = vld [vmem:[%s212 + $0xac8] sm:$0xff]
        %v825 = vld [vmem:[%s212 + $0xad0] sm:$0xff]
        %v826 = vld [vmem:[%s212 + $0xad8] sm:$0xff]
        %v827 = vld [vmem:[%s212 + $0xae0] sm:$0xff]
        %v828 = vld [vmem:[%s212 + $0xae8] sm:$0xff]
        %v829 = vld [vmem:[%s212 + $0xaf0] sm:$0xff]
        %v830 = vld [vmem:[%s212 + $0xaf8] sm:$0xff]
        %v831 = vld [vmem:[%s212 + $0xb00] sm:$0xff]
        %v832 = vld [vmem:[%s212 + $0xb08] sm:$0xff]
        %v833 = vld [vmem:[%s212 + $0xb10] sm:$0xff]
        %v834 = vld [vmem:[%s212 + $0xb18] sm:$0xff]
        %v835 = vld [vmem:[%s212 + $0xb20] sm:$0xff]
        %v836 = vld [vmem:[%s212 + $0xb28] sm:$0xff]
        %v837 = vld [vmem:[%s212 + $0xb30] sm:$0xff]
        %v838 = vld [vmem:[%s212 + $0xb38] sm:$0xff]
        %v839 = vld [vmem:[%s212 + $0xb40] sm:$0xff]
        %v840 = vld [vmem:[%s212 + $0xb48] sm:$0xff]
        %v841 = vld [vmem:[%s212 + $0xb50] sm:$0xff]
        %v842 = vld [vmem:[%s212 + $0xb58] sm:$0xff]
        %v843 = vld [vmem:[%s212 + $0xb60] sm:$0xff]
        %v844 = vld [vmem:[%s212 + $0xb68] sm:$0xff]
        %v845 = vld [vmem:[%s212 + $0xb70] sm:$0xff]
        %v846 = vld [vmem:[%s212 + $0xb78] sm:$0xff]
        %v847 = vld [vmem:[%s212 + $0xb80] sm:$0xff]
        %v848 = vld [vmem:[%s212 + $0xb88] sm:$0xff]
        %v849 = vld [vmem:[%s212 + $0xb90] sm:$0xff]
        %v850 = vld [vmem:[%s212 + $0xb98] sm:$0xff]
        %v851 = vld [vmem:[%s212 + $0xba0] sm:$0xff]
        %v852 = vld [vmem:[%s212 + $0xba8] sm:$0xff]
        %v853 = vld [vmem:[%s212 + $0xbb0] sm:$0xff]
        %v854 = vld [vmem:[%s212 + $0xbb8] sm:$0xff]
        %v855 = vld [vmem:[%s212 + $0xbc0] sm:$0xff]
        %v856 = vld [vmem:[%s212 + $0xbc8] sm:$0xff]
        %v857 = vld [vmem:[%s212 + $0xbd0] sm:$0xff]
        %v858 = vld [vmem:[%s212 + $0xbd8] sm:$0xff]
        %v859 = vld [vmem:[%s212 + $0xbe0] sm:$0xff]
        %v860 = vld [vmem:[%s212 + $0xbe8] sm:$0xff]
        %v861 = vld [vmem:[%s212 + $0xbf0] sm:$0xff]
        %v862 = vld [vmem:[%s212 + $0xbf8] sm:$0xff]
        %v863 = vld [vmem:[%s212 + $0xc00] sm:$0xff]
        %v864 = vld [vmem:[%s212 + $0xc08] sm:$0xff]
        %v865 = vld [vmem:[%s212 + $0xc10] sm:$0xff]
        %v866 = vld [vmem:[%s212 + $0xc18] sm:$0xff]
        %v867 = vld [vmem:[%s212 + $0xc20] sm:$0xff]
        %v868 = vld [vmem:[%s212 + $0xc28] sm:$0xff]
        %v869 = vld [vmem:[%s212 + $0xc30] sm:$0xff]
        %v870 = vld [vmem:[%s212 + $0xc38] sm:$0xff]
        %v871 = vld [vmem:[%s212 + $0xc40] sm:$0xff]
        %v872 = vld [vmem:[%s212 + $0xc48] sm:$0xff]
        %v873 = vld [vmem:[%s212 + $0xc50] sm:$0xff]
        %v874 = vld [vmem:[%s212 + $0xc58] sm:$0xff]
        %v875 = vld [vmem:[%s212 + $0xc60] sm:$0xff]
        %v876 = vld [vmem:[%s212 + $0xc68] sm:$0xff]
        %v877 = vld [vmem:[%s212 + $0xc70] sm:$0xff]
        %v878 = vld [vmem:[%s212 + $0xc78] sm:$0xff]
        %v879 = vld [vmem:[%s212 + $0xc80] sm:$0xff]
        %v880 = vld [vmem:[%s212 + $0xc88] sm:$0xff]
        %v881 = vld [vmem:[%s212 + $0xc90] sm:$0xff]
        %v882 = vld [vmem:[%s212 + $0xc98] sm:$0xff]
        %v883 = vld [vmem:[%s212 + $0xca0] sm:$0xff]
        %v884 = vld [vmem:[%s212 + $0xca8] sm:$0xff]
        %v885 = vld [vmem:[%s212 + $0xcb0] sm:$0xff]
        %v886 = vld [vmem:[%s212 + $0xcb8] sm:$0xff]
        %v887 = vld [vmem:[%s212 + $0xcc0] sm:$0xff]
        %v888 = vld [vmem:[%s212 + $0xcc8] sm:$0xff]
        %v889 = vld [vmem:[%s212 + $0xcd0] sm:$0xff]
        %v890 = vld [vmem:[%s212 + $0xcd8] sm:$0xff]
        %v891 = vld [vmem:[%s212 + $0xce0] sm:$0xff]
        %v892 = vld [vmem:[%s212 + $0xce8] sm:$0xff]
        %v893 = vld [vmem:[%s212 + $0xcf0] sm:$0xff]
        %v894 = vld [vmem:[%s212 + $0xcf8] sm:$0xff]
        %v895 = vld [vmem:[%s212 + $0xd00] sm:$0xff]
        %v896 = vld [vmem:[%s212 + $0xd08] sm:$0xff]
        %v897 = vld [vmem:[%s212 + $0xd10] sm:$0xff]
        %v898 = vld [vmem:[%s212 + $0xd18] sm:$0xff]
        %v899 = vld [vmem:[%s212 + $0xd20] sm:$0xff]
        %v900 = vld [vmem:[%s212 + $0xd28] sm:$0xff]
        %v901 = vld [vmem:[%s212 + $0xd30] sm:$0xff]
        %v902 = vld [vmem:[%s212 + $0xd38] sm:$0xff]
        %v903 = vld [vmem:[%s212 + $0xd40] sm:$0xff]
        %v904 = vld [vmem:[%s212 + $0xd48] sm:$0xff]
        %v905 = vld [vmem:[%s212 + $0xd50] sm:$0xff]
        %v906 = vld [vmem:[%s212 + $0xd58] sm:$0xff]
        %v907 = vld [vmem:[%s212 + $0xd60] sm:$0xff]
        %v908 = vld [vmem:[%s212 + $0xd68] sm:$0xff]
        %v909 = vld [vmem:[%s212 + $0xd70] sm:$0xff]
        %v910 = vld [vmem:[%s212 + $0xd78] sm:$0xff]
        %v911 = vld [vmem:[%s212 + $0xd80] sm:$0xff]
        %v912 = vld [vmem:[%s212 + $0xd88] sm:$0xff]
        %v913 = vld [vmem:[%s212 + $0xd90] sm:$0xff]
        %v914 = vld [vmem:[%s212 + $0xd98] sm:$0xff]
        %v915 = vld [vmem:[%s212 + $0xda0] sm:$0xff]
        %v916 = vld [vmem:[%s212 + $0xda8] sm:$0xff]
        %v917 = vld [vmem:[%s212 + $0xdb0] sm:$0xff]
        %v918 = vld [vmem:[%s212 + $0xdb8] sm:$0xff]
        %v919 = vld [vmem:[%s212 + $0xdc0] sm:$0xff]
        %v920 = vld [vmem:[%s212 + $0xdc8] sm:$0xff]
        %v921 = vld [vmem:[%s212 + $0xdd0] sm:$0xff]
        %v922 = vld [vmem:[%s212 + $0xdd8] sm:$0xff]
        %v923 = vld [vmem:[%s212 + $0xde0] sm:$0xff]
        %v924 = vld [vmem:[%s212 + $0xde8] sm:$0xff]
        %v925 = vld [vmem:[%s212 + $0xdf0] sm:$0xff]
        %v926 = vld [vmem:[%s212 + $0xdf8] sm:$0xff]
        %v927 = vld [vmem:[%s212 + $0xe00] sm:$0xff]
        %v928 = vld [vmem:[%s212 + $0xe08] sm:$0xff]
        %v929 = vld [vmem:[%s212 + $0xe10] sm:$0xff]
        %v930 = vld [vmem:[%s212 + $0xe18] sm:$0xff]
        %v931 = vld [vmem:[%s212 + $0xe20] sm:$0xff]
        %v932 = vld [vmem:[%s212 + $0xe28] sm:$0xff]
        %v933 = vld [vmem:[%s212 + $0xe30] sm:$0xff]
        %v934 = vld [vmem:[%s212 + $0xe38] sm:$0xff]
        %v935 = vld [vmem:[%s212 + $0xe40] sm:$0xff]
        %v936 = vld [vmem:[%s212 + $0xe48] sm:$0xff]
        %v937 = vld [vmem:[%s212 + $0xe50] sm:$0xff]
        %v938 = vld [vmem:[%s212 + $0xe58] sm:$0xff]
        %v939 = vld [vmem:[%s212 + $0xe60] sm:$0xff]
        %v940 = vld [vmem:[%s212 + $0xe68] sm:$0xff]
        %v941 = vld [vmem:[%s212 + $0xe70] sm:$0xff]
        %v942 = vld [vmem:[%s212 + $0xe78] sm:$0xff]
        %v943 = vld [vmem:[%s212 + $0xe80] sm:$0xff]
        %v944 = vld [vmem:[%s212 + $0xe88] sm:$0xff]
        %v945 = vld [vmem:[%s212 + $0xe90] sm:$0xff]
        %v946 = vld [vmem:[%s212 + $0xe98] sm:$0xff]
        %v947 = vld [vmem:[%s212 + $0xea0] sm:$0xff]
        %v948 = vld [vmem:[%s212 + $0xea8] sm:$0xff]
        %v949 = vld [vmem:[%s212 + $0xeb0] sm:$0xff]
        %v950 = vld [vmem:[%s212 + $0xeb8] sm:$0xff]
        %v951 = vld [vmem:[%s212 + $0xec0] sm:$0xff]
        %v952 = vld [vmem:[%s212 + $0xec8] sm:$0xff]
        %v953 = vld [vmem:[%s212 + $0xed0] sm:$0xff]
        %v954 = vld [vmem:[%s212 + $0xed8] sm:$0xff]
        %v955 = vld [vmem:[%s212 + $0xee0] sm:$0xff]
        %v956 = vld [vmem:[%s212 + $0xee8] sm:$0xff]
        %v957 = vld [vmem:[%s212 + $0xef0] sm:$0xff]
        %v958 = vld [vmem:[%s212 + $0xef8] sm:$0xff]
        %v959 = vld [vmem:[%s212 + $0xf00] sm:$0xff]
        %v960 = vld [vmem:[%s212 + $0xf08] sm:$0xff]
        %v961 = vld [vmem:[%s212 + $0xf10] sm:$0xff]
        %v962 = vld [vmem:[%s212 + $0xf18] sm:$0xff]
        %v963 = vld [vmem:[%s212 + $0xf20] sm:$0xff]
        %v964 = vld [vmem:[%s212 + $0xf28] sm:$0xff]
        %v965 = vld [vmem:[%s212 + $0xf30] sm:$0xff]
        %v966 = vld [vmem:[%s212 + $0xf38] sm:$0xff]
        %v967 = vld [vmem:[%s212 + $0xf40] sm:$0xff]
        %v968 = vld [vmem:[%s212 + $0xf48] sm:$0xff]
        %v969 = vld [vmem:[%s212 + $0xf50] sm:$0xff]
        %v970 = vld [vmem:[%s212 + $0xf58] sm:$0xff]
        %v971 = vld [vmem:[%s212 + $0xf60] sm:$0xff]
        %v972 = vld [vmem:[%s212 + $0xf68] sm:$0xff]
        %v973 = vld [vmem:[%s212 + $0xf70] sm:$0xff]
        %v974 = vld [vmem:[%s212 + $0xf78] sm:$0xff]
        %v975 = vld [vmem:[%s212 + $0xf80] sm:$0xff]
        %v976 = vld [vmem:[%s212 + $0xf88] sm:$0xff]
        %v977 = vld [vmem:[%s212 + $0xf90] sm:$0xff]
        %v978 = vld [vmem:[%s212 + $0xf98] sm:$0xff]
        %v979 = vld [vmem:[%s212 + $0xfa0] sm:$0xff]
        %v980 = vld [vmem:[%s212 + $0xfa8] sm:$0xff]
        %v981 = vld [vmem:[%s212 + $0xfb0] sm:$0xff]
        %v982 = vld [vmem:[%s212 + $0xfb8] sm:$0xff]
        %v983 = vld [vmem:[%s212 + $0xfc0] sm:$0xff]
        %v984 = vld [vmem:[%s212 + $0xfc8] sm:$0xff]
        %v985 = vld [vmem:[%s212 + $0xfd0] sm:$0xff]
        %v986 = vld [vmem:[%s212 + $0xfd8] sm:$0xff]
        %v987 = vld [vmem:[%s212 + $0xfe0] sm:$0xff]
        %v988 = vld [vmem:[%s212 + $0xfe8] sm:$0xff]
        %v989 = vld [vmem:[%s212 + $0xff0] sm:$0xff]
        %v990 = vld [vmem:[%s212 + $0xff8] sm:$0xff]
        %v991 = vld [vmem:[%s212 + $0x1000] sm:$0xff]
        %v992 = vld [vmem:[%s212 + $0x1008] sm:$0xff]
        %v993 = vld [vmem:[%s212 + $0x1010] sm:$0xff]
        %v994 = vld [vmem:[%s212 + $0x1018] sm:$0xff]
        %v995 = vld [vmem:[%s212 + $0x1020] sm:$0xff]
        %v996 = vld [vmem:[%s212 + $0x1028] sm:$0xff]
        %v997 = vld [vmem:[%s212 + $0x1030] sm:$0xff]
        %v998 = vld [vmem:[%s212 + $0x1038] sm:$0xff]
        %v999 = vld [vmem:[%s212 + $0x1040] sm:$0xff]
        %v1000 = vld [vmem:[%s212 + $0x1048] sm:$0xff]
        %v1001 = vld [vmem:[%s212 + $0x1050] sm:$0xff]
        %v1002 = vld [vmem:[%s212 + $0x1058] sm:$0xff]
        %v1003 = vld [vmem:[%s212 + $0x1060] sm:$0xff]
        %v1004 = vld [vmem:[%s212 + $0x1068] sm:$0xff]
        %v1005 = vld [vmem:[%s212 + $0x1070] sm:$0xff]
        %v1006 = vld [vmem:[%s212 + $0x1078] sm:$0xff]
        %v1007 = vld [vmem:[%s212 + $0x1080] sm:$0xff]
        %v1008 = vld [vmem:[%s212 + $0x1088] sm:$0xff]
        %v1009 = vld [vmem:[%s212 + $0x1090] sm:$0xff]
        %v1010 = vld [vmem:[%s212 + $0x1098] sm:$0xff]
        %v1011 = vld [vmem:[%s212 + $0x10a0] sm:$0xff]
        %v1012 = vld [vmem:[%s212 + $0x10a8] sm:$0xff]
        %v1013 = vld [vmem:[%s212 + $0x10b0] sm:$0xff]
        %v1014 = vld [vmem:[%s212 + $0x10b8] sm:$0xff]
        %v1015 = vld [vmem:[%s212 + $0x10c0] sm:$0xff]
        %v1016 = vld [vmem:[%s212 + $0x10c8] sm:$0xff]
        %v1017 = vld [vmem:[%s212 + $0x10d0] sm:$0xff]
        %v1018 = vld [vmem:[%s212 + $0x10d8] sm:$0xff]
        %v1019 = vld [vmem:[%s212 + $0x10e0] sm:$0xff]
        %v1020 = vld [vmem:[%s212 + $0x10e8] sm:$0xff]
        %v1021 = vld [vmem:[%s212 + $0x10f0] sm:$0xff]
        %v1022 = vld [vmem:[%s212 + $0x10f8] sm:$0xff]
        %v1023 = vld [vmem:[%s212 + $0x1100] sm:$0xff]
        %v1024 = vld [vmem:[%s212 + $0x1108] sm:$0xff]
        %v1025 = vld [vmem:[%s212 + $0x1110] sm:$0xff]
        %v1026 = vld [vmem:[%s212 + $0x1118] sm:$0xff]
        %v1027 = vld [vmem:[%s212 + $0x1120] sm:$0xff]
        %v1028 = vld [vmem:[%s212 + $0x1128] sm:$0xff]
        %v1029 = vld [vmem:[%s212 + $0x1130] sm:$0xff]
        %v1030 = vld [vmem:[%s212 + $0x1138] sm:$0xff]
        %v1031 = vld [vmem:[%s212 + $0x1140] sm:$0xff]
        %v1032 = vld [vmem:[%s212 + $0x1148] sm:$0xff]
        %v1033 = vld [vmem:[%s212 + $0x1150] sm:$0xff]
        %v1034 = vld [vmem:[%s212 + $0x1158] sm:$0xff]
        %v1035 = vld [vmem:[%s212 + $0x1160] sm:$0xff]
        %v1036 = vld [vmem:[%s212 + $0x1168] sm:$0xff]
        %v1037 = vld [vmem:[%s212 + $0x1170] sm:$0xff]
        %v1038 = vld [vmem:[%s212 + $0x1178] sm:$0xff]
        %v1039 = vld [vmem:[%s212 + $0x1180] sm:$0xff]
        %v1040 = vld [vmem:[%s212 + $0x1188] sm:$0xff]
        %v1041 = vld [vmem:[%s212 + $0x1190] sm:$0xff]
        %v1042 = vld [vmem:[%s212 + $0x1198] sm:$0xff]
        %v1043 = vld [vmem:[%s212 + $0x11a0] sm:$0xff]
        %v1044 = vld [vmem:[%s212 + $0x11a8] sm:$0xff]
        %v1045 = vld [vmem:[%s212 + $0x11b0] sm:$0xff]
        %v1046 = vld [vmem:[%s212 + $0x11b8] sm:$0xff]
        %v1047 = vld [vmem:[%s212 + $0x11c0] sm:$0xff]
        %v1048 = vld [vmem:[%s212 + $0x11c8] sm:$0xff]
        %v1049 = vld [vmem:[%s212 + $0x11d0] sm:$0xff]
        %v1050 = vld [vmem:[%s212 + $0x11d8] sm:$0xff]
        %v1051 = vld [vmem:[%s212 + $0x11e0] sm:$0xff]
        %v1052 = vld [vmem:[%s212 + $0x11e8] sm:$0xff]
        %v1053 = vld [vmem:[%s212 + $0x11f0] sm:$0xff]
        %v1054 = vld [vmem:[%s212 + $0x11f8] sm:$0xff]
        %v1289 = vunpack.c.l.b16 %v245
        %v1290 = vunpack.c.h.b16 %v245
        %v1291 = vunpack.c.l.b16 %v246
        %v1292 = vunpack.c.h.b16 %v246
        %v1293 = vunpack.c.l.b16 %v247
        %v1294 = vunpack.c.h.b16 %v247
        %v1295 = vunpack.c.l.b16 %v248
        %v1296 = vunpack.c.h.b16 %v248
        %v1297 = vunpack.c.l.b16 %v249
        %v1298 = vunpack.c.h.b16 %v249
        %v1299 = vunpack.c.l.b16 %v250
        %v1300 = vunpack.c.h.b16 %v250
        %v1301 = vunpack.c.l.b16 %v251
        %v1302 = vunpack.c.h.b16 %v251
        %v1303 = vunpack.c.l.b16 %v252
        %v1304 = vunpack.c.h.b16 %v252
        %v1305 = vunpack.c.l.b16 %v253
        %v1306 = vunpack.c.h.b16 %v253
        %v1307 = vunpack.c.l.b16 %v254
        %v1308 = vunpack.c.h.b16 %v254
        %v1309 = vunpack.c.l.b16 %v255
        %v1310 = vunpack.c.h.b16 %v255
        %v1311 = vunpack.c.l.b16 %v256
        %v1312 = vunpack.c.h.b16 %v256
        %v1313 = vunpack.c.l.b16 %v257
        %v1314 = vunpack.c.h.b16 %v257
        %v1315 = vunpack.c.l.b16 %v258
        %v1316 = vunpack.c.h.b16 %v258
        %v1317 = vunpack.c.l.b16 %v259
        %v1318 = vunpack.c.h.b16 %v259
        %v1319 = vunpack.c.l.b16 %v260
        %v1320 = vunpack.c.h.b16 %v260
        %v1321 = vunpack.c.l.b16 %v261
        %v1322 = vunpack.c.h.b16 %v261
        %v1323 = vunpack.c.l.b16 %v262
        %v1324 = vunpack.c.h.b16 %v262
        %v1325 = vunpack.c.l.b16 %v263
        %v1326 = vunpack.c.h.b16 %v263
        %v1327 = vunpack.c.l.b16 %v264
        %v1328 = vunpack.c.h.b16 %v264
        %v1329 = vunpack.c.l.b16 %v265
        %v1330 = vunpack.c.h.b16 %v265
        %v1331 = vunpack.c.l.b16 %v266
        %v1332 = vunpack.c.h.b16 %v266
        %v1333 = vunpack.c.l.b16 %v267
        %v1334 = vunpack.c.h.b16 %v267
        %v1335 = vunpack.c.l.b16 %v268
        %v1336 = vunpack.c.h.b16 %v268
        %v1337 = vunpack.c.l.b16 %v269
        %v1338 = vunpack.c.h.b16 %v269
        %v1339 = vunpack.c.l.b16 %v270
        %v1340 = vunpack.c.h.b16 %v270
        %v1341 = vunpack.c.l.b16 %v271
        %v1342 = vunpack.c.h.b16 %v271
        %v1343 = vunpack.c.l.b16 %v272
        %v1344 = vunpack.c.h.b16 %v272
        %v1345 = vunpack.c.l.b16 %v273
        %v1346 = vunpack.c.h.b16 %v273
        %v1347 = vunpack.c.l.b16 %v274
        %v1348 = vunpack.c.h.b16 %v274
        %v1349 = vunpack.c.l.b16 %v275
        %v1350 = vunpack.c.h.b16 %v275
        %v1351 = vunpack.c.l.b16 %v276
        %v1352 = vunpack.c.h.b16 %v276
        %v1353 = vunpack.c.l.b16 %v277
        %v1354 = vunpack.c.h.b16 %v277
        %v1355 = vunpack.c.l.b16 %v278
        %v1356 = vunpack.c.h.b16 %v278
        %v1357 = vunpack.c.l.b16 %v279
        %v1358 = vunpack.c.h.b16 %v279
        %v1359 = vunpack.c.l.b16 %v280
        %v1360 = vunpack.c.h.b16 %v280
        %v1361 = vunpack.c.l.b16 %v281
        %v1362 = vunpack.c.h.b16 %v281
        %v1363 = vunpack.c.l.b16 %v282
        %v1364 = vunpack.c.h.b16 %v282
        %v1365 = vunpack.c.l.b16 %v283
        %v1366 = vunpack.c.h.b16 %v283
        %v1367 = vunpack.c.l.b16 %v284
        %v1368 = vunpack.c.h.b16 %v284
        %v1369 = vunpack.c.l.b16 %v285
        %v1370 = vunpack.c.h.b16 %v285
        %v1371 = vunpack.c.l.b16 %v286
        %v1372 = vunpack.c.h.b16 %v286
        %v1373 = vunpack.c.l.b16 %v287
        %v1374 = vunpack.c.h.b16 %v287
        %v1375 = vunpack.c.l.b16 %v288
        %v1376 = vunpack.c.h.b16 %v288
        %v1377 = vunpack.c.l.b16 %v289
        %v1378 = vunpack.c.h.b16 %v289
        %v1379 = vunpack.c.l.b16 %v290
        %v1380 = vunpack.c.h.b16 %v290
        %v1381 = vunpack.c.l.b16 %v291
        %v1382 = vunpack.c.h.b16 %v291
        %v1383 = vunpack.c.l.b16 %v292
        %v1384 = vunpack.c.h.b16 %v292
        %v1385 = vunpack.c.l.b16 %v293
        %v1386 = vunpack.c.h.b16 %v293
        %v1387 = vunpack.c.l.b16 %v294
        %v1388 = vunpack.c.h.b16 %v294
        %v1389 = vunpack.c.l.b16 %v295
        %v1390 = vunpack.c.h.b16 %v295
        %v1391 = vunpack.c.l.b16 %v296
        %v1392 = vunpack.c.h.b16 %v296
        %v1393 = vunpack.c.l.b16 %v297
        %v1394 = vunpack.c.h.b16 %v297
        %v1395 = vunpack.c.l.b16 %v298
        %v1396 = vunpack.c.h.b16 %v298
        %v1397 = vunpack.c.l.b16 %v299
        %v1398 = vunpack.c.h.b16 %v299
        %v1399 = vunpack.c.l.b16 %v300
        %v1400 = vunpack.c.h.b16 %v300
        %v1401 = vunpack.c.l.b16 %v301
        %v1402 = vunpack.c.h.b16 %v301
        %v1403 = vunpack.c.l.b16 %v302
        %v1404 = vunpack.c.h.b16 %v302
        %v1405 = vunpack.c.l.b16 %v303
        %v1406 = vunpack.c.h.b16 %v303
        %v1407 = vunpack.c.l.b16 %v304
        %v1408 = vunpack.c.h.b16 %v304
        %v1409 = vunpack.c.l.b16 %v305
        %v1410 = vunpack.c.h.b16 %v305
        %v1411 = vunpack.c.l.b16 %v306
        %v1412 = vunpack.c.h.b16 %v306
        %v1413 = vunpack.c.l.b16 %v307
        %v1414 = vunpack.c.h.b16 %v307
        %v1415 = vunpack.c.l.b16 %v308
        %v1416 = vunpack.c.h.b16 %v308
        %v1417 = vunpack.c.l.b16 %v309
        %v1418 = vunpack.c.h.b16 %v309
        %v1419 = vunpack.c.l.b16 %v310
        %v1420 = vunpack.c.h.b16 %v310
        %v1421 = vunpack.c.l.b16 %v311
        %v1422 = vunpack.c.h.b16 %v311
        %v1423 = vunpack.c.l.b16 %v312
        %v1424 = vunpack.c.h.b16 %v312
        %v1425 = vunpack.c.l.b16 %v313
        %v1426 = vunpack.c.h.b16 %v313
        %v1427 = vunpack.c.l.b16 %v314
        %v1428 = vunpack.c.h.b16 %v314
        %v1429 = vunpack.c.l.b16 %v315
        %v1430 = vunpack.c.h.b16 %v315
        %v1431 = vunpack.c.l.b16 %v316
        %v1432 = vunpack.c.h.b16 %v316
        %v1433 = vunpack.c.l.b16 %v317
        %v1434 = vunpack.c.h.b16 %v317
        %v1435 = vunpack.c.l.b16 %v318
        %v1436 = vunpack.c.h.b16 %v318
        %v1437 = vunpack.c.l.b16 %v319
        %v1438 = vunpack.c.h.b16 %v319
        %v1439 = vunpack.c.l.b16 %v320
        %v1440 = vunpack.c.h.b16 %v320
        %v1441 = vunpack.c.l.b16 %v321
        %v1442 = vunpack.c.h.b16 %v321
        %v1443 = vunpack.c.l.b16 %v322
        %v1444 = vunpack.c.h.b16 %v322
        %v1445 = vunpack.c.l.b16 %v323
        %v1446 = vunpack.c.h.b16 %v323
        %v1447 = vunpack.c.l.b16 %v324
        %v1448 = vunpack.c.h.b16 %v324
        %v1449 = vunpack.c.l.b16 %v325
        %v1450 = vunpack.c.h.b16 %v325
        %v1451 = vunpack.c.l.b16 %v326
        %v1452 = vunpack.c.h.b16 %v326
        %v1453 = vunpack.c.l.b16 %v327
        %v1454 = vunpack.c.h.b16 %v327
        %v1455 = vunpack.c.l.b16 %v328
        %v1456 = vunpack.c.h.b16 %v328
        %v1457 = vunpack.c.l.b16 %v329
        %v1458 = vunpack.c.h.b16 %v329
        %v1459 = vunpack.c.l.b16 %v330
        %v1460 = vunpack.c.h.b16 %v330
        %v1461 = vunpack.c.l.b16 %v331
        %v1462 = vunpack.c.h.b16 %v331
        %v1463 = vunpack.c.l.b16 %v332
        %v1464 = vunpack.c.h.b16 %v332
        %v1465 = vunpack.c.l.b16 %v333
        %v1466 = vunpack.c.h.b16 %v333
        %v1467 = vunpack.c.l.b16 %v334
        %v1468 = vunpack.c.h.b16 %v334
        %v1469 = vunpack.c.l.b16 %v335
        %v1470 = vunpack.c.h.b16 %v335
        %v1471 = vunpack.c.l.b16 %v336
        %v1472 = vunpack.c.h.b16 %v336
        %v1473 = vunpack.c.l.b16 %v337
        %v1474 = vunpack.c.h.b16 %v337
        %v1475 = vunpack.c.l.b16 %v338
        %v1476 = vunpack.c.h.b16 %v338
        %v1477 = vunpack.c.l.b16 %v339
        %v1478 = vunpack.c.h.b16 %v339
        %v1479 = vunpack.c.l.b16 %v340
        %v1480 = vunpack.c.h.b16 %v340
        %v1481 = vunpack.c.l.b16 %v341
        %v1482 = vunpack.c.h.b16 %v341
        %v1483 = vunpack.c.l.b16 %v342
        %v1484 = vunpack.c.h.b16 %v342
        %v1485 = vunpack.c.l.b16 %v343
        %v1486 = vunpack.c.h.b16 %v343
        %v1487 = vunpack.c.l.b16 %v344
        %v1488 = vunpack.c.h.b16 %v344
        %v1489 = vunpack.c.l.b16 %v345
        %v1490 = vunpack.c.h.b16 %v345
        %v1491 = vunpack.c.l.b16 %v346
        %v1492 = vunpack.c.h.b16 %v346
        %v1493 = vunpack.c.l.b16 %v347
        %v1494 = vunpack.c.h.b16 %v347
        %v1495 = vunpack.c.l.b16 %v348
        %v1496 = vunpack.c.h.b16 %v348
        %v1497 = vunpack.c.l.b16 %v349
        %v1498 = vunpack.c.h.b16 %v349
        %v1499 = vunpack.c.l.b16 %v350
        %v1500 = vunpack.c.h.b16 %v350
        %v1501 = vunpack.c.l.b16 %v351
        %v1502 = vunpack.c.h.b16 %v351
        %v1503 = vunpack.c.l.b16 %v352
        %v1504 = vunpack.c.h.b16 %v352
        %v1505 = vunpack.c.l.b16 %v353
        %v1506 = vunpack.c.h.b16 %v353
        %v1507 = vunpack.c.l.b16 %v354
        %v1508 = vunpack.c.h.b16 %v354
        %v1509 = vunpack.c.l.b16 %v355
        %v1510 = vunpack.c.h.b16 %v355
        %v1511 = vunpack.c.l.b16 %v356
        %v1512 = vunpack.c.h.b16 %v356
        %v1513 = vunpack.c.l.b16 %v357
        %v1514 = vunpack.c.h.b16 %v357
        %v1515 = vunpack.c.l.b16 %v358
        %v1516 = vunpack.c.h.b16 %v358
        %v1517 = vunpack.c.l.b16 %v359
        %v1518 = vunpack.c.h.b16 %v359
        %v1519 = vunpack.c.l.b16 %v360
        %v1520 = vunpack.c.h.b16 %v360
        %v1521 = vunpack.c.l.b16 %v361
        %v1522 = vunpack.c.h.b16 %v361
        %v1523 = vunpack.c.l.b16 %v362
        %v1524 = vunpack.c.h.b16 %v362
        %v1525 = vunpack.c.l.b16 %v363
        %v1526 = vunpack.c.h.b16 %v363
        %v1527 = vunpack.c.l.b16 %v364
        %v1528 = vunpack.c.h.b16 %v364
        %v1529 = vunpack.c.l.b16 %v365
        %v1530 = vunpack.c.h.b16 %v365
        %v1531 = vunpack.c.l.b16 %v366
        %v1532 = vunpack.c.h.b16 %v366
        %v1533 = vunpack.c.l.b16 %v367
        %v1534 = vunpack.c.h.b16 %v367
        %v1535 = vunpack.c.l.b16 %v368
        %v1536 = vunpack.c.h.b16 %v368
        %v1537 = vunpack.c.l.b16 %v369
        %v1538 = vunpack.c.h.b16 %v369
        %v1539 = vunpack.c.l.b16 %v370
        %v1540 = vunpack.c.h.b16 %v370
        %v1541 = vunpack.c.l.b16 %v371
        %v1542 = vunpack.c.h.b16 %v371
        %v1543 = vunpack.c.l.b16 %v372
        %v1544 = vunpack.c.h.b16 %v372
        %v1545 = vunpack.c.l.b16 %v373
        %v1546 = vunpack.c.h.b16 %v373
        %v1547 = vunpack.c.l.b16 %v374
        %v1548 = vunpack.c.h.b16 %v374
        %v1549 = vunpack.c.l.b16 %v375
        %v1550 = vunpack.c.h.b16 %v375
        %v1551 = vunpack.c.l.b16 %v376
        %v1552 = vunpack.c.h.b16 %v376
        %v1553 = vunpack.c.l.b16 %v377
        %v1554 = vunpack.c.h.b16 %v377
        %v1555 = vunpack.c.l.b16 %v378
        %v1556 = vunpack.c.h.b16 %v378
        %v1557 = vunpack.c.l.b16 %v379
        %v1558 = vunpack.c.h.b16 %v379
        %v1559 = vunpack.c.l.b16 %v380
        %v1560 = vunpack.c.h.b16 %v380
        %v1561 = vunpack.c.l.b16 %v381
        %v1562 = vunpack.c.h.b16 %v381
        %v1563 = vunpack.c.l.b16 %v382
        %v1564 = vunpack.c.h.b16 %v382
        %v1565 = vunpack.c.l.b16 %v383
        %v1566 = vunpack.c.h.b16 %v383
        %v1567 = vunpack.c.l.b16 %v384
        %v1568 = vunpack.c.h.b16 %v384
        %v1569 = vunpack.c.l.b16 %v385
        %v1570 = vunpack.c.h.b16 %v385
        %v1571 = vunpack.c.l.b16 %v386
        %v1572 = vunpack.c.h.b16 %v386
        %v1573 = vunpack.c.l.b16 %v387
        %v1574 = vunpack.c.h.b16 %v387
        %v1575 = vunpack.c.l.b16 %v388
        %v1576 = vunpack.c.h.b16 %v388
        %v1577 = vunpack.c.l.b16 %v389
        %v1578 = vunpack.c.h.b16 %v389
        %v1579 = vunpack.c.l.b16 %v390
        %v1580 = vunpack.c.h.b16 %v390
        %v1581 = vunpack.c.l.b16 %v391
        %v1582 = vunpack.c.h.b16 %v391
        %v1583 = vunpack.c.l.b16 %v392
        %v1584 = vunpack.c.h.b16 %v392
        %v1585 = vunpack.c.l.b16 %v393
        %v1586 = vunpack.c.h.b16 %v393
        %v1587 = vunpack.c.l.b16 %v394
        %v1588 = vunpack.c.h.b16 %v394
        %v1589 = vunpack.c.l.b16 %v395
        %v1590 = vunpack.c.h.b16 %v395
        %v1591 = vunpack.c.l.b16 %v396
        %v1592 = vunpack.c.h.b16 %v396
        %v1593 = vunpack.c.l.b16 %v397
        %v1594 = vunpack.c.h.b16 %v397
        %v1595 = vunpack.c.l.b16 %v398
        %v1596 = vunpack.c.h.b16 %v398
        %v1597 = vunpack.c.l.b16 %v399
        %v1598 = vunpack.c.h.b16 %v399
        %v1599 = vunpack.c.l.b16 %v400
        %v1600 = vunpack.c.h.b16 %v400
        %v1601 = vunpack.c.l.b16 %v401
        %v1602 = vunpack.c.h.b16 %v401
        %v1603 = vunpack.c.l.b16 %v402
        %v1604 = vunpack.c.h.b16 %v402
        %v1605 = vunpack.c.l.b16 %v403
        %v1606 = vunpack.c.h.b16 %v403
        %v1607 = vunpack.c.l.b16 %v404
        %v1608 = vunpack.c.h.b16 %v404
        %v1609 = vunpack.c.l.b16 %v405
        %v1610 = vunpack.c.h.b16 %v405
        %v1611 = vunpack.c.l.b16 %v406
        %v1612 = vunpack.c.h.b16 %v406
        %v1613 = vunpack.c.l.b16 %v407
        %v1614 = vunpack.c.h.b16 %v407
        %v1615 = vunpack.c.l.b16 %v408
        %v1616 = vunpack.c.h.b16 %v408
        %v1617 = vunpack.c.l.b16 %v409
        %v1618 = vunpack.c.h.b16 %v409
        %v1619 = vunpack.c.l.b16 %v410
        %v1620 = vunpack.c.h.b16 %v410
        %v1621 = vunpack.c.l.b16 %v411
        %v1622 = vunpack.c.h.b16 %v411
        %v1623 = vunpack.c.l.b16 %v412
        %v1624 = vunpack.c.h.b16 %v412
        %v1625 = vunpack.c.l.b16 %v413
        %v1626 = vunpack.c.h.b16 %v413
        %v1627 = vunpack.c.l.b16 %v414
        %v1628 = vunpack.c.h.b16 %v414
        %v1629 = vunpack.c.l.b16 %v415
        %v1630 = vunpack.c.h.b16 %v415
        %v1631 = vunpack.c.l.b16 %v416
        %v1632 = vunpack.c.h.b16 %v416
        %v1633 = vunpack.c.l.b16 %v417
        %v1634 = vunpack.c.h.b16 %v417
        %v1635 = vunpack.c.l.b16 %v418
        %v1636 = vunpack.c.h.b16 %v418
        %v1637 = vunpack.c.l.b16 %v419
        %v1638 = vunpack.c.h.b16 %v419
        %v1639 = vunpack.c.l.b16 %v420
        %v1640 = vunpack.c.h.b16 %v420
        %v1641 = vunpack.c.l.b16 %v421
        %v1642 = vunpack.c.h.b16 %v421
        %v1643 = vunpack.c.l.b16 %v422
        %v1644 = vunpack.c.h.b16 %v422
        %v1645 = vunpack.c.l.b16 %v423
        %v1646 = vunpack.c.h.b16 %v423
        %v1647 = vunpack.c.l.b16 %v424
        %v1648 = vunpack.c.h.b16 %v424
        %v1649 = vunpack.c.l.b16 %v425
        %v1650 = vunpack.c.h.b16 %v425
        %v1651 = vunpack.c.l.b16 %v426
        %v1652 = vunpack.c.h.b16 %v426
        %v1653 = vunpack.c.l.b16 %v427
        %v1654 = vunpack.c.h.b16 %v427
        %v1655 = vunpack.c.l.b16 %v428
        %v1656 = vunpack.c.h.b16 %v428
        %v1657 = vunpack.c.l.b16 %v429
        %v1658 = vunpack.c.h.b16 %v429
        %v1659 = vunpack.c.l.b16 %v430
        %v1660 = vunpack.c.h.b16 %v430
        %v1661 = vunpack.c.l.b16 %v431
        %v1662 = vunpack.c.h.b16 %v431
        %v1663 = vunpack.c.l.b16 %v432
        %v1664 = vunpack.c.h.b16 %v432
        %v1665 = vunpack.c.l.b16 %v433
        %v1666 = vunpack.c.h.b16 %v433
        %v1667 = vunpack.c.l.b16 %v434
        %v1668 = vunpack.c.h.b16 %v434
        %v1669 = vunpack.c.l.b16 %v435
        %v1670 = vunpack.c.h.b16 %v435
        %v1671 = vunpack.c.l.b16 %v436
        %v1672 = vunpack.c.h.b16 %v436
        %v1673 = vunpack.c.l.b16 %v437
        %v1674 = vunpack.c.h.b16 %v437
        %v1675 = vunpack.c.l.b16 %v438
        %v1676 = vunpack.c.h.b16 %v438
        %v1677 = vunpack.c.l.b16 %v439
        %v1678 = vunpack.c.h.b16 %v439
        %v1679 = vunpack.c.l.b16 %v440
        %v1680 = vunpack.c.h.b16 %v440
        %v1681 = vunpack.c.l.b16 %v441
        %v1682 = vunpack.c.h.b16 %v441
        %v1683 = vunpack.c.l.b16 %v442
        %v1684 = vunpack.c.h.b16 %v442
        %v1685 = vunpack.c.l.b16 %v443
        %v1686 = vunpack.c.h.b16 %v443
        %v1687 = vunpack.c.l.b16 %v444
        %v1688 = vunpack.c.h.b16 %v444
        %v1689 = vunpack.c.l.b16 %v445
        %v1690 = vunpack.c.h.b16 %v445
        %v1691 = vunpack.c.l.b16 %v446
        %v1692 = vunpack.c.h.b16 %v446
        %v1693 = vunpack.c.l.b16 %v447
        %v1694 = vunpack.c.h.b16 %v447
        %v1695 = vunpack.c.l.b16 %v448
        %v1696 = vunpack.c.h.b16 %v448
        %v1697 = vunpack.c.l.b16 %v449
        %v1698 = vunpack.c.h.b16 %v449
        %v1699 = vunpack.c.l.b16 %v450
        %v1700 = vunpack.c.h.b16 %v450
        %v1701 = vunpack.c.l.b16 %v451
        %v1702 = vunpack.c.h.b16 %v451
        %v1703 = vunpack.c.l.b16 %v452
        %v1704 = vunpack.c.h.b16 %v452
        %v1705 = vunpack.c.l.b16 %v453
        %v1706 = vunpack.c.h.b16 %v453
        %v1707 = vunpack.c.l.b16 %v454
        %v1708 = vunpack.c.h.b16 %v454
        %v1709 = vunpack.c.l.b16 %v455
        %v1710 = vunpack.c.h.b16 %v455
        %v1711 = vunpack.c.l.b16 %v456
        %v1712 = vunpack.c.h.b16 %v456
        %v1713 = vunpack.c.l.b16 %v457
        %v1714 = vunpack.c.h.b16 %v457
        %v1715 = vunpack.c.l.b16 %v458
        %v1716 = vunpack.c.h.b16 %v458
        %v1717 = vunpack.c.l.b16 %v459
        %v1718 = vunpack.c.h.b16 %v459
        %v1719 = vunpack.c.l.b16 %v460
        %v1720 = vunpack.c.h.b16 %v460
        %v1721 = vunpack.c.l.b16 %v461
        %v1722 = vunpack.c.h.b16 %v461
        %v1723 = vunpack.c.l.b16 %v462
        %v1724 = vunpack.c.h.b16 %v462
        %v1725 = vunpack.c.l.b16 %v463
        %v1726 = vunpack.c.h.b16 %v463
        %v1727 = vunpack.c.l.b16 %v464
        %v1728 = vunpack.c.h.b16 %v464
        %v1729 = vunpack.c.l.b16 %v465
        %v1730 = vunpack.c.h.b16 %v465
        %v1731 = vunpack.c.l.b16 %v466
        %v1732 = vunpack.c.h.b16 %v466
        %v1733 = vunpack.c.l.b16 %v467
        %v1734 = vunpack.c.h.b16 %v467
        %v1735 = vunpack.c.l.b16 %v468
        %v1736 = vunpack.c.h.b16 %v468
        %v1737 = vunpack.c.l.b16 %v469
        %v1738 = vunpack.c.h.b16 %v469
        %v1739 = vunpack.c.l.b16 %v470
        %v1740 = vunpack.c.h.b16 %v470
        %v1741 = vunpack.c.l.b16 %v471
        %v1742 = vunpack.c.h.b16 %v471
        %v1743 = vunpack.c.l.b16 %v472
        %v1744 = vunpack.c.h.b16 %v472
        %v1745 = vunpack.c.l.b16 %v473
        %v1746 = vunpack.c.h.b16 %v473
        %v1747 = vunpack.c.l.b16 %v474
        %v1748 = vunpack.c.h.b16 %v474
        %v1749 = vunpack.c.l.b16 %v475
        %v1750 = vunpack.c.h.b16 %v475
        %v1751 = vunpack.c.l.b16 %v476
        %v1752 = vunpack.c.h.b16 %v476
        %v1753 = vunpack.c.l.b16 %v477
        %v1754 = vunpack.c.h.b16 %v477
        %v1755 = vunpack.c.l.b16 %v478
        %v1756 = vunpack.c.h.b16 %v478
        %v1757 = vpack.c.b16 %v1325, %v1289
        %v1758 = vpack.c.b16 %v1326, %v1290
        %v1759 = vpack.c.b16 %v1327, %v1291
        %v1760 = vpack.c.b16 %v1328, %v1292
        %v1761 = vpack.c.b16 %v1329, %v1293
        %v1762 = vpack.c.b16 %v1330, %v1294
        %v1763 = vpack.c.b16 %v1331, %v1295
        %v1764 = vpack.c.b16 %v1332, %v1296
        %v1765 = vpack.c.b16 %v1333, %v1297
        %v1766 = vpack.c.b16 %v1334, %v1298
        %v1767 = vpack.c.b16 %v1335, %v1299
        %v1768 = vpack.c.b16 %v1336, %v1300
        %v1769 = vpack.c.b16 %v1337, %v1301
        %v1770 = vpack.c.b16 %v1338, %v1302
        %v1771 = vpack.c.b16 %v1339, %v1303
        %v1772 = vpack.c.b16 %v1340, %v1304
        %v1773 = vpack.c.b16 %v1341, %v1305
        %v1774 = vpack.c.b16 %v1342, %v1306
        %v1775 = vpack.c.b16 %v1343, %v1307
        %v1776 = vpack.c.b16 %v1344, %v1308
        %v1777 = vpack.c.b16 %v1345, %v1309
        %v1778 = vpack.c.b16 %v1346, %v1310
        %v1779 = vpack.c.b16 %v1347, %v1311
        %v1780 = vpack.c.b16 %v1348, %v1312
        %v1781 = vpack.c.b16 %v1349, %v1313
        %v1782 = vpack.c.b16 %v1350, %v1314
        %v1783 = vpack.c.b16 %v1351, %v1315
        %v1784 = vpack.c.b16 %v1352, %v1316
        %v1785 = vpack.c.b16 %v1353, %v1317
        %v1786 = vpack.c.b16 %v1354, %v1318
        %v1787 = vpack.c.b16 %v1355, %v1319
        %v1788 = vpack.c.b16 %v1356, %v1320
        %v1789 = vpack.c.b16 %v1357, %v1321
        %v1790 = vpack.c.b16 %v1358, %v1322
        %v1791 = vpack.c.b16 %v1359, %v1323
        %v1792 = vpack.c.b16 %v1360, %v1324
        %v1793 = vpack.c.b16 %v1397, %v1361
        %v1794 = vpack.c.b16 %v1398, %v1362
        %v1795 = vpack.c.b16 %v1399, %v1363
        %v1796 = vpack.c.b16 %v1400, %v1364
        %v1797 = vpack.c.b16 %v1401, %v1365
        %v1798 = vpack.c.b16 %v1402, %v1366
        %v1799 = vpack.c.b16 %v1403, %v1367
        %v1800 = vpack.c.b16 %v1404, %v1368
        %v1801 = vpack.c.b16 %v1405, %v1369
        %v1802 = vpack.c.b16 %v1406, %v1370
        %v1803 = vpack.c.b16 %v1407, %v1371
        %v1804 = vpack.c.b16 %v1408, %v1372
        %v1805 = vpack.c.b16 %v1409, %v1373
        %v1806 = vpack.c.b16 %v1410, %v1374
        %v1807 = vpack.c.b16 %v1411, %v1375
        %v1808 = vpack.c.b16 %v1412, %v1376
        %v1809 = vpack.c.b16 %v1413, %v1377
        %v1810 = vpack.c.b16 %v1414, %v1378
        %v1811 = vpack.c.b16 %v1415, %v1379
        %v1812 = vpack.c.b16 %v1416, %v1380
        %v1813 = vpack.c.b16 %v1417, %v1381
        %v1814 = vpack.c.b16 %v1418, %v1382
        %v1815 = vpack.c.b16 %v1419, %v1383
        %v1816 = vpack.c.b16 %v1420, %v1384
        %v1817 = vpack.c.b16 %v1421, %v1385
        %v1818 = vpack.c.b16 %v1422, %v1386
        %v1819 = vpack.c.b16 %v1423, %v1387
        %v1820 = vpack.c.b16 %v1424, %v1388
        %v1821 = vpack.c.b16 %v1425, %v1389
        %v1822 = vpack.c.b16 %v1426, %v1390
        %v1823 = vpack.c.b16 %v1427, %v1391
        %v1824 = vpack.c.b16 %v1428, %v1392
        %v1825 = vpack.c.b16 %v1429, %v1393
        %v1826 = vpack.c.b16 %v1430, %v1394
        %v1827 = vpack.c.b16 %v1431, %v1395
        %v1828 = vpack.c.b16 %v1432, %v1396
        %v1829 = vpack.c.b16 %v1469, %v1433
        %v1830 = vpack.c.b16 %v1470, %v1434
        %v1831 = vpack.c.b16 %v1471, %v1435
        %v1832 = vpack.c.b16 %v1472, %v1436
        %v1833 = vpack.c.b16 %v1473, %v1437
        %v1834 = vpack.c.b16 %v1474, %v1438
        %v1835 = vpack.c.b16 %v1475, %v1439
        %v1836 = vpack.c.b16 %v1476, %v1440
        %v1837 = vpack.c.b16 %v1477, %v1441
        %v1838 = vpack.c.b16 %v1478, %v1442
        %v1839 = vpack.c.b16 %v1479, %v1443
        %v1840 = vpack.c.b16 %v1480, %v1444
        %v1841 = vpack.c.b16 %v1481, %v1445
        %v1842 = vpack.c.b16 %v1482, %v1446
        %v1843 = vpack.c.b16 %v1483, %v1447
        %v1844 = vpack.c.b16 %v1484, %v1448
        %v1845 = vpack.c.b16 %v1485, %v1449
        %v1846 = vpack.c.b16 %v1486, %v1450
        %v1847 = vpack.c.b16 %v1487, %v1451
        %v1848 = vpack.c.b16 %v1488, %v1452
        %v1849 = vpack.c.b16 %v1489, %v1453
        %v1850 = vpack.c.b16 %v1490, %v1454
        %v1851 = vpack.c.b16 %v1491, %v1455
        %v1852 = vpack.c.b16 %v1492, %v1456
        %v1853 = vpack.c.b16 %v1493, %v1457
        %v1854 = vpack.c.b16 %v1494, %v1458
        %v1855 = vpack.c.b16 %v1495, %v1459
        %v1856 = vpack.c.b16 %v1496, %v1460
        %v1857 = vpack.c.b16 %v1497, %v1461
        %v1858 = vpack.c.b16 %v1498, %v1462
        %v1859 = vpack.c.b16 %v1499, %v1463
        %v1860 = vpack.c.b16 %v1500, %v1464
        %v1861 = vpack.c.b16 %v1501, %v1465
        %v1862 = vpack.c.b16 %v1502, %v1466
        %v1863 = vpack.c.b16 %v1503, %v1467
        %v1864 = vpack.c.b16 %v1504, %v1468
        %v1865 = vpack.c.b16 %v1541, %v1505
        %v1866 = vpack.c.b16 %v1542, %v1506
        %v1867 = vpack.c.b16 %v1543, %v1507
        %v1868 = vpack.c.b16 %v1544, %v1508
        %v1869 = vpack.c.b16 %v1545, %v1509
        %v1870 = vpack.c.b16 %v1546, %v1510
        %v1871 = vpack.c.b16 %v1547, %v1511
        %v1872 = vpack.c.b16 %v1548, %v1512
        %v1873 = vpack.c.b16 %v1549, %v1513
        %v1874 = vpack.c.b16 %v1550, %v1514
        %v1875 = vpack.c.b16 %v1551, %v1515
        %v1876 = vpack.c.b16 %v1552, %v1516
        %v1877 = vpack.c.b16 %v1553, %v1517
        %v1878 = vpack.c.b16 %v1554, %v1518
        %v1879 = vpack.c.b16 %v1555, %v1519
        %v1880 = vpack.c.b16 %v1556, %v1520
        %v1881 = vpack.c.b16 %v1557, %v1521
        %v1882 = vpack.c.b16 %v1558, %v1522
        %v1883 = vpack.c.b16 %v1559, %v1523
        %v1884 = vpack.c.b16 %v1560, %v1524
        %v1885 = vpack.c.b16 %v1561, %v1525
        %v1886 = vpack.c.b16 %v1562, %v1526
        %v1887 = vpack.c.b16 %v1563, %v1527
        %v1888 = vpack.c.b16 %v1564, %v1528
        %v1889 = vpack.c.b16 %v1565, %v1529
        %v1890 = vpack.c.b16 %v1566, %v1530
        %v1891 = vpack.c.b16 %v1567, %v1531
        %v1892 = vpack.c.b16 %v1568, %v1532
        %v1893 = vpack.c.b16 %v1569, %v1533
        %v1894 = vpack.c.b16 %v1570, %v1534
        %v1895 = vpack.c.b16 %v1571, %v1535
        %v1896 = vpack.c.b16 %v1572, %v1536
        %v1897 = vpack.c.b16 %v1573, %v1537
        %v1898 = vpack.c.b16 %v1574, %v1538
        %v1899 = vpack.c.b16 %v1575, %v1539
        %v1900 = vpack.c.b16 %v1576, %v1540
        %v1901 = vpack.c.b16 %v1613, %v1577
        %v1902 = vpack.c.b16 %v1614, %v1578
        %v1903 = vpack.c.b16 %v1615, %v1579
        %v1904 = vpack.c.b16 %v1616, %v1580
        %v1905 = vpack.c.b16 %v1617, %v1581
        %v1906 = vpack.c.b16 %v1618, %v1582
        %v1907 = vpack.c.b16 %v1619, %v1583
        %v1908 = vpack.c.b16 %v1620, %v1584
        %v1909 = vpack.c.b16 %v1621, %v1585
        %v1910 = vpack.c.b16 %v1622, %v1586
        %v1911 = vpack.c.b16 %v1623, %v1587
        %v1912 = vpack.c.b16 %v1624, %v1588
        %v1913 = vpack.c.b16 %v1625, %v1589
        %v1914 = vpack.c.b16 %v1626, %v1590
        %v1915 = vpack.c.b16 %v1627, %v1591
        %v1916 = vpack.c.b16 %v1628, %v1592
        %v1917 = vpack.c.b16 %v1629, %v1593
        %v1918 = vpack.c.b16 %v1630, %v1594
        %v1919 = vpack.c.b16 %v1631, %v1595
        %v1920 = vpack.c.b16 %v1632, %v1596
        %v1921 = vpack.c.b16 %v1633, %v1597
        %v1922 = vpack.c.b16 %v1634, %v1598
        %v1923 = vpack.c.b16 %v1635, %v1599
        %v1924 = vpack.c.b16 %v1636, %v1600
        %v1925 = vpack.c.b16 %v1637, %v1601
        %v1926 = vpack.c.b16 %v1638, %v1602
        %v1927 = vpack.c.b16 %v1639, %v1603
        %v1928 = vpack.c.b16 %v1640, %v1604
        %v1929 = vpack.c.b16 %v1641, %v1605
        %v1930 = vpack.c.b16 %v1642, %v1606
        %v1931 = vpack.c.b16 %v1643, %v1607
        %v1932 = vpack.c.b16 %v1644, %v1608
        %v1933 = vpack.c.b16 %v1645, %v1609
        %v1934 = vpack.c.b16 %v1646, %v1610
        %v1935 = vpack.c.b16 %v1647, %v1611
        %v1936 = vpack.c.b16 %v1648, %v1612
        %v1937 = vpack.c.b16 %v1685, %v1649
        %v1938 = vpack.c.b16 %v1686, %v1650
        %v1939 = vpack.c.b16 %v1687, %v1651
        %v1940 = vpack.c.b16 %v1688, %v1652
        %v1941 = vpack.c.b16 %v1689, %v1653
        %v1942 = vpack.c.b16 %v1690, %v1654
        %v1943 = vpack.c.b16 %v1691, %v1655
        %v1944 = vpack.c.b16 %v1692, %v1656
        %v1945 = vpack.c.b16 %v1693, %v1657
        %v1946 = vpack.c.b16 %v1694, %v1658
        %v1947 = vpack.c.b16 %v1695, %v1659
        %v1948 = vpack.c.b16 %v1696, %v1660
        %v1949 = vpack.c.b16 %v1697, %v1661
        %v1950 = vpack.c.b16 %v1698, %v1662
        %v1951 = vpack.c.b16 %v1699, %v1663
        %v1952 = vpack.c.b16 %v1700, %v1664
        %v1953 = vpack.c.b16 %v1701, %v1665
        %v1954 = vpack.c.b16 %v1702, %v1666
        %v1955 = vpack.c.b16 %v1703, %v1667
        %v1956 = vpack.c.b16 %v1704, %v1668
        %v1957 = vpack.c.b16 %v1705, %v1669
        %v1958 = vpack.c.b16 %v1706, %v1670
        %v1959 = vpack.c.b16 %v1707, %v1671
        %v1960 = vpack.c.b16 %v1708, %v1672
        %v1961 = vpack.c.b16 %v1709, %v1673
        %v1962 = vpack.c.b16 %v1710, %v1674
        %v1963 = vpack.c.b16 %v1711, %v1675
        %v1964 = vpack.c.b16 %v1712, %v1676
        %v1965 = vpack.c.b16 %v1713, %v1677
        %v1966 = vpack.c.b16 %v1714, %v1678
        %v1967 = vpack.c.b16 %v1715, %v1679
        %v1968 = vpack.c.b16 %v1716, %v1680
        %v1969 = vpack.c.b16 %v1717, %v1681
        %v1970 = vpack.c.b16 %v1718, %v1682
        %v1971 = vpack.c.b16 %v1719, %v1683
        %v1972 = vpack.c.b16 %v1720, %v1684
        %v1973 = vpack.c.b16 %v1721, %v1721
        %v1974 = vpack.c.b16 %v1722, %v1722
        %v1975 = vpack.c.b16 %v1723, %v1723
        %v1976 = vpack.c.b16 %v1724, %v1724
        %v1977 = vpack.c.b16 %v1725, %v1725
        %v1978 = vpack.c.b16 %v1726, %v1726
        %v1979 = vpack.c.b16 %v1727, %v1727
        %v1980 = vpack.c.b16 %v1728, %v1728
        %v1981 = vpack.c.b16 %v1729, %v1729
        %v1982 = vpack.c.b16 %v1730, %v1730
        %v1983 = vpack.c.b16 %v1731, %v1731
        %v1984 = vpack.c.b16 %v1732, %v1732
        %v1985 = vpack.c.b16 %v1733, %v1733
        %v1986 = vpack.c.b16 %v1734, %v1734
        %v1987 = vpack.c.b16 %v1735, %v1735
        %v1988 = vpack.c.b16 %v1736, %v1736
        %v1989 = vpack.c.b16 %v1737, %v1737
        %v1990 = vpack.c.b16 %v1738, %v1738
        %v1991 = vpack.c.b16 %v1739, %v1739
        %v1992 = vpack.c.b16 %v1740, %v1740
        %v1993 = vpack.c.b16 %v1741, %v1741
        %v1994 = vpack.c.b16 %v1742, %v1742
        %v1995 = vpack.c.b16 %v1743, %v1743
        %v1996 = vpack.c.b16 %v1744, %v1744
        %v1997 = vpack.c.b16 %v1745, %v1745
        %v1998 = vpack.c.b16 %v1746, %v1746
        %v1999 = vpack.c.b16 %v1747, %v1747
        %v2000 = vpack.c.b16 %v1748, %v1748
        %v2001 = vpack.c.b16 %v1749, %v1749
        %v2002 = vpack.c.b16 %v1750, %v1750
        %v2003 = vpack.c.b16 %v1751, %v1751
        %v2004 = vpack.c.b16 %v1752, %v1752
        %v2005 = vpack.c.b16 %v1753, %v1753
        %v2006 = vpack.c.b16 %v1754, %v1754
        %v2007 = vpack.c.b16 %v1755, %v1755
        %v2008 = vpack.c.b16 %v1756, %v1756
        %v2837 = vunpack.c.l.b16 %v479
        %v2838 = vunpack.c.h.b16 %v479
        %v2839 = vunpack.c.l.b16 %v480
        %v2840 = vunpack.c.h.b16 %v480
        %v2841 = vunpack.c.l.b16 %v481
        %v2842 = vunpack.c.h.b16 %v481
        %v2843 = vunpack.c.l.b16 %v482
        %v2844 = vunpack.c.h.b16 %v482
        %v2845 = vunpack.c.l.b16 %v483
        %v2846 = vunpack.c.h.b16 %v483
        %v2847 = vunpack.c.l.b16 %v484
        %v2848 = vunpack.c.h.b16 %v484
        %v2849 = vunpack.c.l.b16 %v485
        %v2850 = vunpack.c.h.b16 %v485
        %v2851 = vunpack.c.l.b16 %v486
        %v2852 = vunpack.c.h.b16 %v486
        %v2853 = vunpack.c.l.b16 %v487
        %v2854 = vunpack.c.h.b16 %v487
        %v2855 = vunpack.c.l.b16 %v488
        %v2856 = vunpack.c.h.b16 %v488
        %v2857 = vunpack.c.l.b16 %v489
        %v2858 = vunpack.c.h.b16 %v489
        %v2859 = vunpack.c.l.b16 %v490
        %v2860 = vunpack.c.h.b16 %v490
        %v2861 = vunpack.c.l.b16 %v491
        %v2862 = vunpack.c.h.b16 %v491
        %v2863 = vunpack.c.l.b16 %v492
        %v2864 = vunpack.c.h.b16 %v492
        %v2865 = vunpack.c.l.b16 %v493
        %v2866 = vunpack.c.h.b16 %v493
        %v2867 = vunpack.c.l.b16 %v494
        %v2868 = vunpack.c.h.b16 %v494
        %v2869 = vunpack.c.l.b16 %v495
        %v2870 = vunpack.c.h.b16 %v495
        %v2871 = vunpack.c.l.b16 %v496
        %v2872 = vunpack.c.h.b16 %v496
        %v2873 = vunpack.c.l.b16 %v497
        %v2874 = vunpack.c.h.b16 %v497
        %v2875 = vunpack.c.l.b16 %v498
        %v2876 = vunpack.c.h.b16 %v498
        %v2877 = vunpack.c.l.b16 %v499
        %v2878 = vunpack.c.h.b16 %v499
        %v2879 = vunpack.c.l.b16 %v500
        %v2880 = vunpack.c.h.b16 %v500
        %v2881 = vunpack.c.l.b16 %v501
        %v2882 = vunpack.c.h.b16 %v501
        %v2883 = vunpack.c.l.b16 %v502
        %v2884 = vunpack.c.h.b16 %v502
        %v2885 = vunpack.c.l.b16 %v503
        %v2886 = vunpack.c.h.b16 %v503
        %v2887 = vunpack.c.l.b16 %v504
        %v2888 = vunpack.c.h.b16 %v504
        %v2889 = vunpack.c.l.b16 %v505
        %v2890 = vunpack.c.h.b16 %v505
        %v2891 = vunpack.c.l.b16 %v506
        %v2892 = vunpack.c.h.b16 %v506
        %v2893 = vunpack.c.l.b16 %v507
        %v2894 = vunpack.c.h.b16 %v507
        %v2895 = vunpack.c.l.b16 %v508
        %v2896 = vunpack.c.h.b16 %v508
        %v2897 = vunpack.c.l.b16 %v509
        %v2898 = vunpack.c.h.b16 %v509
        %v2899 = vunpack.c.l.b16 %v510
        %v2900 = vunpack.c.h.b16 %v510
        %v2901 = vunpack.c.l.b16 %v511
        %v2902 = vunpack.c.h.b16 %v511
        %v2903 = vunpack.c.l.b16 %v512
        %v2904 = vunpack.c.h.b16 %v512
        %v2905 = vunpack.c.l.b16 %v513
        %v2906 = vunpack.c.h.b16 %v513
        %v2907 = vunpack.c.l.b16 %v514
        %v2908 = vunpack.c.h.b16 %v514
        %v2909 = vunpack.c.l.b16 %v515
        %v2910 = vunpack.c.h.b16 %v515
        %v2911 = vunpack.c.l.b16 %v516
        %v2912 = vunpack.c.h.b16 %v516
        %v2913 = vunpack.c.l.b16 %v517
        %v2914 = vunpack.c.h.b16 %v517
        %v2915 = vunpack.c.l.b16 %v518
        %v2916 = vunpack.c.h.b16 %v518
        %v2917 = vunpack.c.l.b16 %v519
        %v2918 = vunpack.c.h.b16 %v519
        %v2919 = vunpack.c.l.b16 %v520
        %v2920 = vunpack.c.h.b16 %v520
        %v2921 = vunpack.c.l.b16 %v521
        %v2922 = vunpack.c.h.b16 %v521
        %v2923 = vunpack.c.l.b16 %v522
        %v2924 = vunpack.c.h.b16 %v522
        %v2925 = vunpack.c.l.b16 %v523
        %v2926 = vunpack.c.h.b16 %v523
        %v2927 = vunpack.c.l.b16 %v524
        %v2928 = vunpack.c.h.b16 %v524
        %v2929 = vunpack.c.l.b16 %v525
        %v2930 = vunpack.c.h.b16 %v525
        %v2931 = vunpack.c.l.b16 %v526
        %v2932 = vunpack.c.h.b16 %v526
        %v2933 = vunpack.c.l.b16 %v527
        %v2934 = vunpack.c.h.b16 %v527
        %v2935 = vunpack.c.l.b16 %v528
        %v2936 = vunpack.c.h.b16 %v528
        %v2937 = vunpack.c.l.b16 %v529
        %v2938 = vunpack.c.h.b16 %v529
        %v2939 = vunpack.c.l.b16 %v530
        %v2940 = vunpack.c.h.b16 %v530
        %v2941 = vunpack.c.l.b16 %v531
        %v2942 = vunpack.c.h.b16 %v531
        %v2943 = vunpack.c.l.b16 %v532
        %v2944 = vunpack.c.h.b16 %v532
        %v2945 = vunpack.c.l.b16 %v533
        %v2946 = vunpack.c.h.b16 %v533
        %v2947 = vunpack.c.l.b16 %v534
        %v2948 = vunpack.c.h.b16 %v534
        %v2949 = vunpack.c.l.b16 %v535
        %v2950 = vunpack.c.h.b16 %v535
        %v2951 = vunpack.c.l.b16 %v536
        %v2952 = vunpack.c.h.b16 %v536
        %v2953 = vunpack.c.l.b16 %v537
        %v2954 = vunpack.c.h.b16 %v537
        %v2955 = vunpack.c.l.b16 %v538
        %v2956 = vunpack.c.h.b16 %v538
        %v2957 = vunpack.c.l.b16 %v539
        %v2958 = vunpack.c.h.b16 %v539
        %v2959 = vunpack.c.l.b16 %v540
        %v2960 = vunpack.c.h.b16 %v540
        %v2961 = vunpack.c.l.b16 %v541
        %v2962 = vunpack.c.h.b16 %v541
        %v2963 = vunpack.c.l.b16 %v542
        %v2964 = vunpack.c.h.b16 %v542
        %v2965 = vunpack.c.l.b16 %v543
        %v2966 = vunpack.c.h.b16 %v543
        %v2967 = vunpack.c.l.b16 %v544
        %v2968 = vunpack.c.h.b16 %v544
        %v2969 = vunpack.c.l.b16 %v545
        %v2970 = vunpack.c.h.b16 %v545
        %v2971 = vunpack.c.l.b16 %v546
        %v2972 = vunpack.c.h.b16 %v546
        %v2973 = vunpack.c.l.b16 %v547
        %v2974 = vunpack.c.h.b16 %v547
        %v2975 = vunpack.c.l.b16 %v548
        %v2976 = vunpack.c.h.b16 %v548
        %v2977 = vunpack.c.l.b16 %v549
        %v2978 = vunpack.c.h.b16 %v549
        %v2979 = vunpack.c.l.b16 %v550
        %v2980 = vunpack.c.h.b16 %v550
        %v2981 = vunpack.c.l.b16 %v551
        %v2982 = vunpack.c.h.b16 %v551
        %v2983 = vunpack.c.l.b16 %v552
        %v2984 = vunpack.c.h.b16 %v552
        %v2985 = vunpack.c.l.b16 %v553
        %v2986 = vunpack.c.h.b16 %v553
        %v2987 = vunpack.c.l.b16 %v554
        %v2988 = vunpack.c.h.b16 %v554
        %v2989 = vunpack.c.l.b16 %v555
        %v2990 = vunpack.c.h.b16 %v555
        %v2991 = vunpack.c.l.b16 %v556
        %v2992 = vunpack.c.h.b16 %v556
        %v2993 = vunpack.c.l.b16 %v557
        %v2994 = vunpack.c.h.b16 %v557
        %v2995 = vunpack.c.l.b16 %v558
        %v2996 = vunpack.c.h.b16 %v558
        %v2997 = vunpack.c.l.b16 %v559
        %v2998 = vunpack.c.h.b16 %v559
        %v2999 = vunpack.c.l.b16 %v560
        %v3000 = vunpack.c.h.b16 %v560
        %v3001 = vunpack.c.l.b16 %v561
        %v3002 = vunpack.c.h.b16 %v561
        %v3003 = vunpack.c.l.b16 %v562
        %v3004 = vunpack.c.h.b16 %v562
        %v3005 = vunpack.c.l.b16 %v563
        %v3006 = vunpack.c.h.b16 %v563
        %v3007 = vunpack.c.l.b16 %v564
        %v3008 = vunpack.c.h.b16 %v564
        %v3009 = vunpack.c.l.b16 %v565
        %v3010 = vunpack.c.h.b16 %v565
        %v3011 = vunpack.c.l.b16 %v566
        %v3012 = vunpack.c.h.b16 %v566
        %v3013 = vunpack.c.l.b16 %v567
        %v3014 = vunpack.c.h.b16 %v567
        %v3015 = vunpack.c.l.b16 %v568
        %v3016 = vunpack.c.h.b16 %v568
        %v3017 = vunpack.c.l.b16 %v569
        %v3018 = vunpack.c.h.b16 %v569
        %v3019 = vunpack.c.l.b16 %v570
        %v3020 = vunpack.c.h.b16 %v570
        %v3021 = vunpack.c.l.b16 %v571
        %v3022 = vunpack.c.h.b16 %v571
        %v3023 = vunpack.c.l.b16 %v572
        %v3024 = vunpack.c.h.b16 %v572
        %v3025 = vunpack.c.l.b16 %v573
        %v3026 = vunpack.c.h.b16 %v573
        %v3027 = vunpack.c.l.b16 %v574
        %v3028 = vunpack.c.h.b16 %v574
        %v3029 = vunpack.c.l.b16 %v575
        %v3030 = vunpack.c.h.b16 %v575
        %v3031 = vunpack.c.l.b16 %v576
        %v3032 = vunpack.c.h.b16 %v576
        %v3033 = vunpack.c.l.b16 %v577
        %v3034 = vunpack.c.h.b16 %v577
        %v3035 = vunpack.c.l.b16 %v578
        %v3036 = vunpack.c.h.b16 %v578
        %v3037 = vunpack.c.l.b16 %v579
        %v3038 = vunpack.c.h.b16 %v579
        %v3039 = vunpack.c.l.b16 %v580
        %v3040 = vunpack.c.h.b16 %v580
        %v3041 = vunpack.c.l.b16 %v581
        %v3042 = vunpack.c.h.b16 %v581
        %v3043 = vunpack.c.l.b16 %v582
        %v3044 = vunpack.c.h.b16 %v582
        %v3045 = vunpack.c.l.b16 %v583
        %v3046 = vunpack.c.h.b16 %v583
        %v3047 = vunpack.c.l.b16 %v584
        %v3048 = vunpack.c.h.b16 %v584
        %v3049 = vunpack.c.l.b16 %v585
        %v3050 = vunpack.c.h.b16 %v585
        %v3051 = vunpack.c.l.b16 %v586
        %v3052 = vunpack.c.h.b16 %v586
        %v3053 = vunpack.c.l.b16 %v587
        %v3054 = vunpack.c.h.b16 %v587
        %v3055 = vunpack.c.l.b16 %v588
        %v3056 = vunpack.c.h.b16 %v588
        %v3057 = vunpack.c.l.b16 %v589
        %v3058 = vunpack.c.h.b16 %v589
        %v3059 = vunpack.c.l.b16 %v590
        %v3060 = vunpack.c.h.b16 %v590
        %v3061 = vunpack.c.l.b16 %v591
        %v3062 = vunpack.c.h.b16 %v591
        %v3063 = vunpack.c.l.b16 %v592
        %v3064 = vunpack.c.h.b16 %v592
        %v3065 = vunpack.c.l.b16 %v593
        %v3066 = vunpack.c.h.b16 %v593
        %v3067 = vunpack.c.l.b16 %v594
        %v3068 = vunpack.c.h.b16 %v594
        %v3069 = vunpack.c.l.b16 %v595
        %v3070 = vunpack.c.h.b16 %v595
        %v3071 = vunpack.c.l.b16 %v596
        %v3072 = vunpack.c.h.b16 %v596
        %v3073 = vunpack.c.l.b16 %v597
        %v3074 = vunpack.c.h.b16 %v597
        %v3075 = vunpack.c.l.b16 %v598
        %v3076 = vunpack.c.h.b16 %v598
        %v3077 = vunpack.c.l.b16 %v599
        %v3078 = vunpack.c.h.b16 %v599
        %v3079 = vunpack.c.l.b16 %v600
        %v3080 = vunpack.c.h.b16 %v600
        %v3081 = vunpack.c.l.b16 %v601
        %v3082 = vunpack.c.h.b16 %v601
        %v3083 = vunpack.c.l.b16 %v602
        %v3084 = vunpack.c.h.b16 %v602
        %v3085 = vunpack.c.l.b16 %v603
        %v3086 = vunpack.c.h.b16 %v603
        %v3087 = vunpack.c.l.b16 %v604
        %v3088 = vunpack.c.h.b16 %v604
        %v3089 = vunpack.c.l.b16 %v605
        %v3090 = vunpack.c.h.b16 %v605
        %v3091 = vunpack.c.l.b16 %v606
        %v3092 = vunpack.c.h.b16 %v606
        %v3093 = vunpack.c.l.b16 %v607
        %v3094 = vunpack.c.h.b16 %v607
        %v3095 = vunpack.c.l.b16 %v608
        %v3096 = vunpack.c.h.b16 %v608
        %v3097 = vunpack.c.l.b16 %v609
        %v3098 = vunpack.c.h.b16 %v609
        %v3099 = vunpack.c.l.b16 %v610
        %v3100 = vunpack.c.h.b16 %v610
        %v3101 = vunpack.c.l.b16 %v611
        %v3102 = vunpack.c.h.b16 %v611
        %v3103 = vunpack.c.l.b16 %v612
        %v3104 = vunpack.c.h.b16 %v612
        %v3105 = vunpack.c.l.b16 %v613
        %v3106 = vunpack.c.h.b16 %v613
        %v3107 = vunpack.c.l.b16 %v614
        %v3108 = vunpack.c.h.b16 %v614
        %v3109 = vunpack.c.l.b16 %v615
        %v3110 = vunpack.c.h.b16 %v615
        %v3111 = vunpack.c.l.b16 %v616
        %v3112 = vunpack.c.h.b16 %v616
        %v3113 = vunpack.c.l.b16 %v617
        %v3114 = vunpack.c.h.b16 %v617
        %v3115 = vunpack.c.l.b16 %v618
        %v3116 = vunpack.c.h.b16 %v618
        %v3117 = vunpack.c.l.b16 %v619
        %v3118 = vunpack.c.h.b16 %v619
        %v3119 = vunpack.c.l.b16 %v620
        %v3120 = vunpack.c.h.b16 %v620
        %v3121 = vunpack.c.l.b16 %v621
        %v3122 = vunpack.c.h.b16 %v621
        %v3123 = vunpack.c.l.b16 %v622
        %v3124 = vunpack.c.h.b16 %v622
        %v3125 = vunpack.c.l.b16 %v623
        %v3126 = vunpack.c.h.b16 %v623
        %v3127 = vunpack.c.l.b16 %v624
        %v3128 = vunpack.c.h.b16 %v624
        %v3129 = vunpack.c.l.b16 %v625
        %v3130 = vunpack.c.h.b16 %v625
        %v3131 = vunpack.c.l.b16 %v626
        %v3132 = vunpack.c.h.b16 %v626
        %v3133 = vunpack.c.l.b16 %v627
        %v3134 = vunpack.c.h.b16 %v627
        %v3135 = vunpack.c.l.b16 %v628
        %v3136 = vunpack.c.h.b16 %v628
        %v3137 = vunpack.c.l.b16 %v629
        %v3138 = vunpack.c.h.b16 %v629
        %v3139 = vunpack.c.l.b16 %v630
        %v3140 = vunpack.c.h.b16 %v630
        %v3141 = vunpack.c.l.b16 %v631
        %v3142 = vunpack.c.h.b16 %v631
        %v3143 = vunpack.c.l.b16 %v632
        %v3144 = vunpack.c.h.b16 %v632
        %v3145 = vunpack.c.l.b16 %v633
        %v3146 = vunpack.c.h.b16 %v633
        %v3147 = vunpack.c.l.b16 %v634
        %v3148 = vunpack.c.h.b16 %v634
        %v3149 = vunpack.c.l.b16 %v635
        %v3150 = vunpack.c.h.b16 %v635
        %v3151 = vunpack.c.l.b16 %v636
        %v3152 = vunpack.c.h.b16 %v636
        %v3153 = vunpack.c.l.b16 %v637
        %v3154 = vunpack.c.h.b16 %v637
        %v3155 = vunpack.c.l.b16 %v638
        %v3156 = vunpack.c.h.b16 %v638
        %v3157 = vunpack.c.l.b16 %v639
        %v3158 = vunpack.c.h.b16 %v639
        %v3159 = vunpack.c.l.b16 %v640
        %v3160 = vunpack.c.h.b16 %v640
        %v3161 = vunpack.c.l.b16 %v641
        %v3162 = vunpack.c.h.b16 %v641
        %v3163 = vunpack.c.l.b16 %v642
        %v3164 = vunpack.c.h.b16 %v642
        %v3165 = vunpack.c.l.b16 %v643
        %v3166 = vunpack.c.h.b16 %v643
        %v3167 = vunpack.c.l.b16 %v644
        %v3168 = vunpack.c.h.b16 %v644
        %v3169 = vunpack.c.l.b16 %v645
        %v3170 = vunpack.c.h.b16 %v645
        %v3171 = vunpack.c.l.b16 %v646
        %v3172 = vunpack.c.h.b16 %v646
        %v3173 = vunpack.c.l.b16 %v647
        %v3174 = vunpack.c.h.b16 %v647
        %v3175 = vunpack.c.l.b16 %v648
        %v3176 = vunpack.c.h.b16 %v648
        %v3177 = vunpack.c.l.b16 %v649
        %v3178 = vunpack.c.h.b16 %v649
        %v3179 = vunpack.c.l.b16 %v650
        %v3180 = vunpack.c.h.b16 %v650
        %v3181 = vunpack.c.l.b16 %v651
        %v3182 = vunpack.c.h.b16 %v651
        %v3183 = vunpack.c.l.b16 %v652
        %v3184 = vunpack.c.h.b16 %v652
        %v3185 = vunpack.c.l.b16 %v653
        %v3186 = vunpack.c.h.b16 %v653
        %v3187 = vunpack.c.l.b16 %v654
        %v3188 = vunpack.c.h.b16 %v654
        %v3189 = vunpack.c.l.b16 %v655
        %v3190 = vunpack.c.h.b16 %v655
        %v3191 = vunpack.c.l.b16 %v656
        %v3192 = vunpack.c.h.b16 %v656
        %v3193 = vunpack.c.l.b16 %v657
        %v3194 = vunpack.c.h.b16 %v657
        %v3195 = vunpack.c.l.b16 %v658
        %v3196 = vunpack.c.h.b16 %v658
        %v3197 = vunpack.c.l.b16 %v659
        %v3198 = vunpack.c.h.b16 %v659
        %v3199 = vunpack.c.l.b16 %v660
        %v3200 = vunpack.c.h.b16 %v660
        %v3201 = vunpack.c.l.b16 %v661
        %v3202 = vunpack.c.h.b16 %v661
        %v3203 = vunpack.c.l.b16 %v662
        %v3204 = vunpack.c.h.b16 %v662
        %v3205 = vunpack.c.l.b16 %v663
        %v3206 = vunpack.c.h.b16 %v663
        %v3207 = vunpack.c.l.b16 %v664
        %v3208 = vunpack.c.h.b16 %v664
        %v3209 = vunpack.c.l.b16 %v665
        %v3210 = vunpack.c.h.b16 %v665
        %v3211 = vunpack.c.l.b16 %v666
        %v3212 = vunpack.c.h.b16 %v666
        %v3213 = vunpack.c.l.b16 %v667
        %v3214 = vunpack.c.h.b16 %v667
        %v3215 = vunpack.c.l.b16 %v668
        %v3216 = vunpack.c.h.b16 %v668
        %v3217 = vunpack.c.l.b16 %v669
        %v3218 = vunpack.c.h.b16 %v669
        %v3219 = vunpack.c.l.b16 %v670
        %v3220 = vunpack.c.h.b16 %v670
        %v3221 = vunpack.c.l.b16 %v671
        %v3222 = vunpack.c.h.b16 %v671
        %v3223 = vunpack.c.l.b16 %v672
        %v3224 = vunpack.c.h.b16 %v672
        %v3225 = vunpack.c.l.b16 %v673
        %v3226 = vunpack.c.h.b16 %v673
        %v3227 = vunpack.c.l.b16 %v674
        %v3228 = vunpack.c.h.b16 %v674
        %v3229 = vunpack.c.l.b16 %v675
        %v3230 = vunpack.c.h.b16 %v675
        %v3231 = vunpack.c.l.b16 %v676
        %v3232 = vunpack.c.h.b16 %v676
        %v3233 = vunpack.c.l.b16 %v677
        %v3234 = vunpack.c.h.b16 %v677
        %v3235 = vunpack.c.l.b16 %v678
        %v3236 = vunpack.c.h.b16 %v678
        %v3237 = vunpack.c.l.b16 %v679
        %v3238 = vunpack.c.h.b16 %v679
        %v3239 = vunpack.c.l.b16 %v680
        %v3240 = vunpack.c.h.b16 %v680
        %v3241 = vunpack.c.l.b16 %v681
        %v3242 = vunpack.c.h.b16 %v681
        %v3243 = vunpack.c.l.b16 %v682
        %v3244 = vunpack.c.h.b16 %v682
        %v3245 = vunpack.c.l.b16 %v683
        %v3246 = vunpack.c.h.b16 %v683
        %v3247 = vunpack.c.l.b16 %v684
        %v3248 = vunpack.c.h.b16 %v684
        %v3249 = vunpack.c.l.b16 %v685
        %v3250 = vunpack.c.h.b16 %v685
        %v3251 = vunpack.c.l.b16 %v686
        %v3252 = vunpack.c.h.b16 %v686
        %v3253 = vunpack.c.l.b16 %v687
        %v3254 = vunpack.c.h.b16 %v687
        %v3255 = vunpack.c.l.b16 %v688
        %v3256 = vunpack.c.h.b16 %v688
        %v3257 = vunpack.c.l.b16 %v689
        %v3258 = vunpack.c.h.b16 %v689
        %v3259 = vunpack.c.l.b16 %v690
        %v3260 = vunpack.c.h.b16 %v690
        %v3261 = vunpack.c.l.b16 %v691
        %v3262 = vunpack.c.h.b16 %v691
        %v3263 = vunpack.c.l.b16 %v692
        %v3264 = vunpack.c.h.b16 %v692
        %v3265 = vunpack.c.l.b16 %v693
        %v3266 = vunpack.c.h.b16 %v693
        %v3267 = vunpack.c.l.b16 %v694
        %v3268 = vunpack.c.h.b16 %v694
        %v3269 = vunpack.c.l.b16 %v695
        %v3270 = vunpack.c.h.b16 %v695
        %v3271 = vunpack.c.l.b16 %v696
        %v3272 = vunpack.c.h.b16 %v696
        %v3273 = vunpack.c.l.b16 %v697
        %v3274 = vunpack.c.h.b16 %v697
        %v3275 = vunpack.c.l.b16 %v698
        %v3276 = vunpack.c.h.b16 %v698
        %v3277 = vunpack.c.l.b16 %v699
        %v3278 = vunpack.c.h.b16 %v699
        %v3279 = vunpack.c.l.b16 %v700
        %v3280 = vunpack.c.h.b16 %v700
        %v3281 = vunpack.c.l.b16 %v701
        %v3282 = vunpack.c.h.b16 %v701
        %v3283 = vunpack.c.l.b16 %v702
        %v3284 = vunpack.c.h.b16 %v702
        %v3285 = vunpack.c.l.b16 %v703
        %v3286 = vunpack.c.h.b16 %v703
        %v3287 = vunpack.c.l.b16 %v704
        %v3288 = vunpack.c.h.b16 %v704
        %v3289 = vunpack.c.l.b16 %v705
        %v3290 = vunpack.c.h.b16 %v705
        %v3291 = vunpack.c.l.b16 %v706
        %v3292 = vunpack.c.h.b16 %v706
        %v3293 = vunpack.c.l.b16 %v707
        %v3294 = vunpack.c.h.b16 %v707
        %v3295 = vunpack.c.l.b16 %v708
        %v3296 = vunpack.c.h.b16 %v708
        %v3297 = vunpack.c.l.b16 %v709
        %v3298 = vunpack.c.h.b16 %v709
        %v3299 = vunpack.c.l.b16 %v710
        %v3300 = vunpack.c.h.b16 %v710
        %v3301 = vunpack.c.l.b16 %v711
        %v3302 = vunpack.c.h.b16 %v711
        %v3303 = vunpack.c.l.b16 %v712
        %v3304 = vunpack.c.h.b16 %v712
        %v3305 = vunpack.c.l.b16 %v713
        %v3306 = vunpack.c.h.b16 %v713
        %v3307 = vunpack.c.l.b16 %v714
        %v3308 = vunpack.c.h.b16 %v714
        %v3309 = vunpack.c.l.b16 %v715
        %v3310 = vunpack.c.h.b16 %v715
        %v3311 = vunpack.c.l.b16 %v716
        %v3312 = vunpack.c.h.b16 %v716
        %v3313 = vunpack.c.l.b16 %v717
        %v3314 = vunpack.c.h.b16 %v717
        %v3315 = vunpack.c.l.b16 %v718
        %v3316 = vunpack.c.h.b16 %v718
        %v3317 = vunpack.c.l.b16 %v719
        %v3318 = vunpack.c.h.b16 %v719
        %v3319 = vunpack.c.l.b16 %v720
        %v3320 = vunpack.c.h.b16 %v720
        %v3321 = vunpack.c.l.b16 %v721
        %v3322 = vunpack.c.h.b16 %v721
        %v3323 = vunpack.c.l.b16 %v722
        %v3324 = vunpack.c.h.b16 %v722
        %v3325 = vunpack.c.l.b16 %v723
        %v3326 = vunpack.c.h.b16 %v723
        %v3327 = vunpack.c.l.b16 %v724
        %v3328 = vunpack.c.h.b16 %v724
        %v3329 = vunpack.c.l.b16 %v725
        %v3330 = vunpack.c.h.b16 %v725
        %v3331 = vunpack.c.l.b16 %v726
        %v3332 = vunpack.c.h.b16 %v726
        %v3333 = vunpack.c.l.b16 %v727
        %v3334 = vunpack.c.h.b16 %v727
        %v3335 = vunpack.c.l.b16 %v728
        %v3336 = vunpack.c.h.b16 %v728
        %v3337 = vunpack.c.l.b16 %v729
        %v3338 = vunpack.c.h.b16 %v729
        %v3339 = vunpack.c.l.b16 %v730
        %v3340 = vunpack.c.h.b16 %v730
        %v3341 = vunpack.c.l.b16 %v731
        %v3342 = vunpack.c.h.b16 %v731
        %v3343 = vunpack.c.l.b16 %v732
        %v3344 = vunpack.c.h.b16 %v732
        %v3345 = vunpack.c.l.b16 %v733
        %v3346 = vunpack.c.h.b16 %v733
        %v3347 = vunpack.c.l.b16 %v734
        %v3348 = vunpack.c.h.b16 %v734
        %v3349 = vunpack.c.l.b16 %v735
        %v3350 = vunpack.c.h.b16 %v735
        %v3351 = vunpack.c.l.b16 %v736
        %v3352 = vunpack.c.h.b16 %v736
        %v3353 = vunpack.c.l.b16 %v737
        %v3354 = vunpack.c.h.b16 %v737
        %v3355 = vunpack.c.l.b16 %v738
        %v3356 = vunpack.c.h.b16 %v738
        %v3357 = vunpack.c.l.b16 %v739
        %v3358 = vunpack.c.h.b16 %v739
        %v3359 = vunpack.c.l.b16 %v740
        %v3360 = vunpack.c.h.b16 %v740
        %v3361 = vunpack.c.l.b16 %v741
        %v3362 = vunpack.c.h.b16 %v741
        %v3363 = vunpack.c.l.b16 %v742
        %v3364 = vunpack.c.h.b16 %v742
        %v3365 = vunpack.c.l.b16 %v743
        %v3366 = vunpack.c.h.b16 %v743
        %v3367 = vunpack.c.l.b16 %v744
        %v3368 = vunpack.c.h.b16 %v744
        %v3369 = vunpack.c.l.b16 %v745
        %v3370 = vunpack.c.h.b16 %v745
        %v3371 = vunpack.c.l.b16 %v746
        %v3372 = vunpack.c.h.b16 %v746
        %v3373 = vunpack.c.l.b16 %v747
        %v3374 = vunpack.c.h.b16 %v747
        %v3375 = vunpack.c.l.b16 %v748
        %v3376 = vunpack.c.h.b16 %v748
        %v3377 = vunpack.c.l.b16 %v749
        %v3378 = vunpack.c.h.b16 %v749
        %v3379 = vunpack.c.l.b16 %v750
        %v3380 = vunpack.c.h.b16 %v750
        %v3381 = vunpack.c.l.b16 %v751
        %v3382 = vunpack.c.h.b16 %v751
        %v3383 = vunpack.c.l.b16 %v752
        %v3384 = vunpack.c.h.b16 %v752
        %v3385 = vunpack.c.l.b16 %v753
        %v3386 = vunpack.c.h.b16 %v753
        %v3387 = vunpack.c.l.b16 %v754
        %v3388 = vunpack.c.h.b16 %v754
        %v3389 = vunpack.c.l.b16 %v755
        %v3390 = vunpack.c.h.b16 %v755
        %v3391 = vunpack.c.l.b16 %v756
        %v3392 = vunpack.c.h.b16 %v756
        %v3393 = vunpack.c.l.b16 %v757
        %v3394 = vunpack.c.h.b16 %v757
        %v3395 = vunpack.c.l.b16 %v758
        %v3396 = vunpack.c.h.b16 %v758
        %v3397 = vunpack.c.l.b16 %v759
        %v3398 = vunpack.c.h.b16 %v759
        %v3399 = vunpack.c.l.b16 %v760
        %v3400 = vunpack.c.h.b16 %v760
        %v3401 = vunpack.c.l.b16 %v761
        %v3402 = vunpack.c.h.b16 %v761
        %v3403 = vunpack.c.l.b16 %v762
        %v3404 = vunpack.c.h.b16 %v762
        %v3405 = vunpack.c.l.b16 %v763
        %v3406 = vunpack.c.h.b16 %v763
        %v3407 = vunpack.c.l.b16 %v764
        %v3408 = vunpack.c.h.b16 %v764
        %v3409 = vunpack.c.l.b16 %v765
        %v3410 = vunpack.c.h.b16 %v765
        %v3411 = vunpack.c.l.b16 %v766
        %v3412 = vunpack.c.h.b16 %v766
        %v3413 = vunpack.c.l.b16 %v767
        %v3414 = vunpack.c.h.b16 %v767
        %v3415 = vunpack.c.l.b16 %v768
        %v3416 = vunpack.c.h.b16 %v768
        %v3417 = vunpack.c.l.b16 %v769
        %v3418 = vunpack.c.h.b16 %v769
        %v3419 = vunpack.c.l.b16 %v770
        %v3420 = vunpack.c.h.b16 %v770
        %v3421 = vunpack.c.l.b16 %v771
        %v3422 = vunpack.c.h.b16 %v771
        %v3423 = vunpack.c.l.b16 %v772
        %v3424 = vunpack.c.h.b16 %v772
        %v3425 = vunpack.c.l.b16 %v773
        %v3426 = vunpack.c.h.b16 %v773
        %v3427 = vunpack.c.l.b16 %v774
        %v3428 = vunpack.c.h.b16 %v774
        %v3429 = vunpack.c.l.b16 %v775
        %v3430 = vunpack.c.h.b16 %v775
        %v3431 = vunpack.c.l.b16 %v776
        %v3432 = vunpack.c.h.b16 %v776
        %v3433 = vunpack.c.l.b16 %v777
        %v3434 = vunpack.c.h.b16 %v777
        %v3435 = vunpack.c.l.b16 %v778
        %v3436 = vunpack.c.h.b16 %v778
        %v3437 = vunpack.c.l.b16 %v779
        %v3438 = vunpack.c.h.b16 %v779
        %v3439 = vunpack.c.l.b16 %v780
        %v3440 = vunpack.c.h.b16 %v780
        %v3441 = vunpack.c.l.b16 %v781
        %v3442 = vunpack.c.h.b16 %v781
        %v3443 = vunpack.c.l.b16 %v782
        %v3444 = vunpack.c.h.b16 %v782
        %v3445 = vunpack.c.l.b16 %v783
        %v3446 = vunpack.c.h.b16 %v783
        %v3447 = vunpack.c.l.b16 %v784
        %v3448 = vunpack.c.h.b16 %v784
        %v3449 = vunpack.c.l.b16 %v785
        %v3450 = vunpack.c.h.b16 %v785
        %v3451 = vunpack.c.l.b16 %v786
        %v3452 = vunpack.c.h.b16 %v786
        %v3453 = vunpack.c.l.b16 %v787
        %v3454 = vunpack.c.h.b16 %v787
        %v3455 = vunpack.c.l.b16 %v788
        %v3456 = vunpack.c.h.b16 %v788
        %v3457 = vunpack.c.l.b16 %v789
        %v3458 = vunpack.c.h.b16 %v789
        %v3459 = vunpack.c.l.b16 %v790
        %v3460 = vunpack.c.h.b16 %v790
        %v3461 = vunpack.c.l.b16 %v791
        %v3462 = vunpack.c.h.b16 %v791
        %v3463 = vunpack.c.l.b16 %v792
        %v3464 = vunpack.c.h.b16 %v792
        %v3465 = vunpack.c.l.b16 %v793
        %v3466 = vunpack.c.h.b16 %v793
        %v3467 = vunpack.c.l.b16 %v794
        %v3468 = vunpack.c.h.b16 %v794
        %v3469 = vunpack.c.l.b16 %v795
        %v3470 = vunpack.c.h.b16 %v795
        %v3471 = vunpack.c.l.b16 %v796
        %v3472 = vunpack.c.h.b16 %v796
        %v3473 = vunpack.c.l.b16 %v797
        %v3474 = vunpack.c.h.b16 %v797
        %v3475 = vunpack.c.l.b16 %v798
        %v3476 = vunpack.c.h.b16 %v798
        %v3477 = vunpack.c.l.b16 %v799
        %v3478 = vunpack.c.h.b16 %v799
        %v3479 = vunpack.c.l.b16 %v800
        %v3480 = vunpack.c.h.b16 %v800
        %v3481 = vunpack.c.l.b16 %v801
        %v3482 = vunpack.c.h.b16 %v801
        %v3483 = vunpack.c.l.b16 %v802
        %v3484 = vunpack.c.h.b16 %v802
        %v3485 = vunpack.c.l.b16 %v803
        %v3486 = vunpack.c.h.b16 %v803
        %v3487 = vunpack.c.l.b16 %v804
        %v3488 = vunpack.c.h.b16 %v804
        %v3489 = vunpack.c.l.b16 %v805
        %v3490 = vunpack.c.h.b16 %v805
        %v3491 = vunpack.c.l.b16 %v806
        %v3492 = vunpack.c.h.b16 %v806
        %v3493 = vunpack.c.l.b16 %v807
        %v3494 = vunpack.c.h.b16 %v807
        %v3495 = vunpack.c.l.b16 %v808
        %v3496 = vunpack.c.h.b16 %v808
        %v3497 = vunpack.c.l.b16 %v809
        %v3498 = vunpack.c.h.b16 %v809
        %v3499 = vunpack.c.l.b16 %v810
        %v3500 = vunpack.c.h.b16 %v810
        %v3501 = vunpack.c.l.b16 %v811
        %v3502 = vunpack.c.h.b16 %v811
        %v3503 = vunpack.c.l.b16 %v812
        %v3504 = vunpack.c.h.b16 %v812
        %v3505 = vunpack.c.l.b16 %v813
        %v3506 = vunpack.c.h.b16 %v813
        %v3507 = vunpack.c.l.b16 %v814
        %v3508 = vunpack.c.h.b16 %v814
        %v3509 = vunpack.c.l.b16 %v815
        %v3510 = vunpack.c.h.b16 %v815
        %v3511 = vunpack.c.l.b16 %v816
        %v3512 = vunpack.c.h.b16 %v816
        %v3513 = vunpack.c.l.b16 %v817
        %v3514 = vunpack.c.h.b16 %v817
        %v3515 = vunpack.c.l.b16 %v818
        %v3516 = vunpack.c.h.b16 %v818
        %v3517 = vunpack.c.l.b16 %v819
        %v3518 = vunpack.c.h.b16 %v819
        %v3519 = vunpack.c.l.b16 %v820
        %v3520 = vunpack.c.h.b16 %v820
        %v3521 = vunpack.c.l.b16 %v821
        %v3522 = vunpack.c.h.b16 %v821
        %v3523 = vunpack.c.l.b16 %v822
        %v3524 = vunpack.c.h.b16 %v822
        %v3525 = vunpack.c.l.b16 %v823
        %v3526 = vunpack.c.h.b16 %v823
        %v3527 = vunpack.c.l.b16 %v824
        %v3528 = vunpack.c.h.b16 %v824
        %v3529 = vunpack.c.l.b16 %v825
        %v3530 = vunpack.c.h.b16 %v825
        %v3531 = vunpack.c.l.b16 %v826
        %v3532 = vunpack.c.h.b16 %v826
        %v3533 = vunpack.c.l.b16 %v827
        %v3534 = vunpack.c.h.b16 %v827
        %v3535 = vunpack.c.l.b16 %v828
        %v3536 = vunpack.c.h.b16 %v828
        %v3537 = vunpack.c.l.b16 %v829
        %v3538 = vunpack.c.h.b16 %v829
        %v3539 = vunpack.c.l.b16 %v830
        %v3540 = vunpack.c.h.b16 %v830
        %v3541 = vunpack.c.l.b16 %v831
        %v3542 = vunpack.c.h.b16 %v831
        %v3543 = vunpack.c.l.b16 %v832
        %v3544 = vunpack.c.h.b16 %v832
        %v3545 = vunpack.c.l.b16 %v833
        %v3546 = vunpack.c.h.b16 %v833
        %v3547 = vunpack.c.l.b16 %v834
        %v3548 = vunpack.c.h.b16 %v834
        %v3549 = vunpack.c.l.b16 %v835
        %v3550 = vunpack.c.h.b16 %v835
        %v3551 = vunpack.c.l.b16 %v836
        %v3552 = vunpack.c.h.b16 %v836
        %v3553 = vunpack.c.l.b16 %v837
        %v3554 = vunpack.c.h.b16 %v837
        %v3555 = vunpack.c.l.b16 %v838
        %v3556 = vunpack.c.h.b16 %v838
        %v3557 = vunpack.c.l.b16 %v839
        %v3558 = vunpack.c.h.b16 %v839
        %v3559 = vunpack.c.l.b16 %v840
        %v3560 = vunpack.c.h.b16 %v840
        %v3561 = vunpack.c.l.b16 %v841
        %v3562 = vunpack.c.h.b16 %v841
        %v3563 = vunpack.c.l.b16 %v842
        %v3564 = vunpack.c.h.b16 %v842
        %v3565 = vunpack.c.l.b16 %v843
        %v3566 = vunpack.c.h.b16 %v843
        %v3567 = vunpack.c.l.b16 %v844
        %v3568 = vunpack.c.h.b16 %v844
        %v3569 = vunpack.c.l.b16 %v845
        %v3570 = vunpack.c.h.b16 %v845
        %v3571 = vunpack.c.l.b16 %v846
        %v3572 = vunpack.c.h.b16 %v846
        %v3573 = vunpack.c.l.b16 %v847
        %v3574 = vunpack.c.h.b16 %v847
        %v3575 = vunpack.c.l.b16 %v848
        %v3576 = vunpack.c.h.b16 %v848
        %v3577 = vunpack.c.l.b16 %v849
        %v3578 = vunpack.c.h.b16 %v849
        %v3579 = vunpack.c.l.b16 %v850
        %v3580 = vunpack.c.h.b16 %v850
        %v3581 = vunpack.c.l.b16 %v851
        %v3582 = vunpack.c.h.b16 %v851
        %v3583 = vunpack.c.l.b16 %v852
        %v3584 = vunpack.c.h.b16 %v852
        %v3585 = vunpack.c.l.b16 %v853
        %v3586 = vunpack.c.h.b16 %v853
        %v3587 = vunpack.c.l.b16 %v854
        %v3588 = vunpack.c.h.b16 %v854
        %v3589 = vunpack.c.l.b16 %v855
        %v3590 = vunpack.c.h.b16 %v855
        %v3591 = vunpack.c.l.b16 %v856
        %v3592 = vunpack.c.h.b16 %v856
        %v3593 = vunpack.c.l.b16 %v857
        %v3594 = vunpack.c.h.b16 %v857
        %v3595 = vunpack.c.l.b16 %v858
        %v3596 = vunpack.c.h.b16 %v858
        %v3597 = vunpack.c.l.b16 %v859
        %v3598 = vunpack.c.h.b16 %v859
        %v3599 = vunpack.c.l.b16 %v860
        %v3600 = vunpack.c.h.b16 %v860
        %v3601 = vunpack.c.l.b16 %v861
        %v3602 = vunpack.c.h.b16 %v861
        %v3603 = vunpack.c.l.b16 %v862
        %v3604 = vunpack.c.h.b16 %v862
        %v3605 = vunpack.c.l.b16 %v863
        %v3606 = vunpack.c.h.b16 %v863
        %v3607 = vunpack.c.l.b16 %v864
        %v3608 = vunpack.c.h.b16 %v864
        %v3609 = vunpack.c.l.b16 %v865
        %v3610 = vunpack.c.h.b16 %v865
        %v3611 = vunpack.c.l.b16 %v866
        %v3612 = vunpack.c.h.b16 %v866
        %v3613 = vunpack.c.l.b16 %v867
        %v3614 = vunpack.c.h.b16 %v867
        %v3615 = vunpack.c.l.b16 %v868
        %v3616 = vunpack.c.h.b16 %v868
        %v3617 = vunpack.c.l.b16 %v869
        %v3618 = vunpack.c.h.b16 %v869
        %v3619 = vunpack.c.l.b16 %v870
        %v3620 = vunpack.c.h.b16 %v870
        %v3621 = vunpack.c.l.b16 %v871
        %v3622 = vunpack.c.h.b16 %v871
        %v3623 = vunpack.c.l.b16 %v872
        %v3624 = vunpack.c.h.b16 %v872
        %v3625 = vunpack.c.l.b16 %v873
        %v3626 = vunpack.c.h.b16 %v873
        %v3627 = vunpack.c.l.b16 %v874
        %v3628 = vunpack.c.h.b16 %v874
        %v3629 = vunpack.c.l.b16 %v875
        %v3630 = vunpack.c.h.b16 %v875
        %v3631 = vunpack.c.l.b16 %v876
        %v3632 = vunpack.c.h.b16 %v876
        %v3633 = vunpack.c.l.b16 %v877
        %v3634 = vunpack.c.h.b16 %v877
        %v3635 = vunpack.c.l.b16 %v878
        %v3636 = vunpack.c.h.b16 %v878
        %v3637 = vunpack.c.l.b16 %v879
        %v3638 = vunpack.c.h.b16 %v879
        %v3639 = vunpack.c.l.b16 %v880
        %v3640 = vunpack.c.h.b16 %v880
        %v3641 = vunpack.c.l.b16 %v881
        %v3642 = vunpack.c.h.b16 %v881
        %v3643 = vunpack.c.l.b16 %v882
        %v3644 = vunpack.c.h.b16 %v882
        %v3645 = vunpack.c.l.b16 %v883
        %v3646 = vunpack.c.h.b16 %v883
        %v3647 = vunpack.c.l.b16 %v884
        %v3648 = vunpack.c.h.b16 %v884
        %v3649 = vunpack.c.l.b16 %v885
        %v3650 = vunpack.c.h.b16 %v885
        %v3651 = vunpack.c.l.b16 %v886
        %v3652 = vunpack.c.h.b16 %v886
        %v3653 = vunpack.c.l.b16 %v887
        %v3654 = vunpack.c.h.b16 %v887
        %v3655 = vunpack.c.l.b16 %v888
        %v3656 = vunpack.c.h.b16 %v888
        %v3657 = vunpack.c.l.b16 %v889
        %v3658 = vunpack.c.h.b16 %v889
        %v3659 = vunpack.c.l.b16 %v890
        %v3660 = vunpack.c.h.b16 %v890
        %v3661 = vunpack.c.l.b16 %v891
        %v3662 = vunpack.c.h.b16 %v891
        %v3663 = vunpack.c.l.b16 %v892
        %v3664 = vunpack.c.h.b16 %v892
        %v3665 = vunpack.c.l.b16 %v893
        %v3666 = vunpack.c.h.b16 %v893
        %v3667 = vunpack.c.l.b16 %v894
        %v3668 = vunpack.c.h.b16 %v894
        %v3669 = vunpack.c.l.b16 %v895
        %v3670 = vunpack.c.h.b16 %v895
        %v3671 = vunpack.c.l.b16 %v896
        %v3672 = vunpack.c.h.b16 %v896
        %v3673 = vunpack.c.l.b16 %v897
        %v3674 = vunpack.c.h.b16 %v897
        %v3675 = vunpack.c.l.b16 %v898
        %v3676 = vunpack.c.h.b16 %v898
        %v3677 = vunpack.c.l.b16 %v899
        %v3678 = vunpack.c.h.b16 %v899
        %v3679 = vunpack.c.l.b16 %v900
        %v3680 = vunpack.c.h.b16 %v900
        %v3681 = vunpack.c.l.b16 %v901
        %v3682 = vunpack.c.h.b16 %v901
        %v3683 = vunpack.c.l.b16 %v902
        %v3684 = vunpack.c.h.b16 %v902
        %v3685 = vunpack.c.l.b16 %v903
        %v3686 = vunpack.c.h.b16 %v903
        %v3687 = vunpack.c.l.b16 %v904
        %v3688 = vunpack.c.h.b16 %v904
        %v3689 = vunpack.c.l.b16 %v905
        %v3690 = vunpack.c.h.b16 %v905
        %v3691 = vunpack.c.l.b16 %v906
        %v3692 = vunpack.c.h.b16 %v906
        %v3693 = vunpack.c.l.b16 %v907
        %v3694 = vunpack.c.h.b16 %v907
        %v3695 = vunpack.c.l.b16 %v908
        %v3696 = vunpack.c.h.b16 %v908
        %v3697 = vunpack.c.l.b16 %v909
        %v3698 = vunpack.c.h.b16 %v909
        %v3699 = vunpack.c.l.b16 %v910
        %v3700 = vunpack.c.h.b16 %v910
        %v3701 = vunpack.c.l.b16 %v911
        %v3702 = vunpack.c.h.b16 %v911
        %v3703 = vunpack.c.l.b16 %v912
        %v3704 = vunpack.c.h.b16 %v912
        %v3705 = vunpack.c.l.b16 %v913
        %v3706 = vunpack.c.h.b16 %v913
        %v3707 = vunpack.c.l.b16 %v914
        %v3708 = vunpack.c.h.b16 %v914
        %v3709 = vunpack.c.l.b16 %v915
        %v3710 = vunpack.c.h.b16 %v915
        %v3711 = vunpack.c.l.b16 %v916
        %v3712 = vunpack.c.h.b16 %v916
        %v3713 = vunpack.c.l.b16 %v917
        %v3714 = vunpack.c.h.b16 %v917
        %v3715 = vunpack.c.l.b16 %v918
        %v3716 = vunpack.c.h.b16 %v918
        %v3717 = vunpack.c.l.b16 %v919
        %v3718 = vunpack.c.h.b16 %v919
        %v3719 = vunpack.c.l.b16 %v920
        %v3720 = vunpack.c.h.b16 %v920
        %v3721 = vunpack.c.l.b16 %v921
        %v3722 = vunpack.c.h.b16 %v921
        %v3723 = vunpack.c.l.b16 %v922
        %v3724 = vunpack.c.h.b16 %v922
        %v3725 = vunpack.c.l.b16 %v923
        %v3726 = vunpack.c.h.b16 %v923
        %v3727 = vunpack.c.l.b16 %v924
        %v3728 = vunpack.c.h.b16 %v924
        %v3729 = vunpack.c.l.b16 %v925
        %v3730 = vunpack.c.h.b16 %v925
        %v3731 = vunpack.c.l.b16 %v926
        %v3732 = vunpack.c.h.b16 %v926
        %v3733 = vunpack.c.l.b16 %v927
        %v3734 = vunpack.c.h.b16 %v927
        %v3735 = vunpack.c.l.b16 %v928
        %v3736 = vunpack.c.h.b16 %v928
        %v3737 = vunpack.c.l.b16 %v929
        %v3738 = vunpack.c.h.b16 %v929
        %v3739 = vunpack.c.l.b16 %v930
        %v3740 = vunpack.c.h.b16 %v930
        %v3741 = vunpack.c.l.b16 %v931
        %v3742 = vunpack.c.h.b16 %v931
        %v3743 = vunpack.c.l.b16 %v932
        %v3744 = vunpack.c.h.b16 %v932
        %v3745 = vunpack.c.l.b16 %v933
        %v3746 = vunpack.c.h.b16 %v933
        %v3747 = vunpack.c.l.b16 %v934
        %v3748 = vunpack.c.h.b16 %v934
        %v3749 = vunpack.c.l.b16 %v935
        %v3750 = vunpack.c.h.b16 %v935
        %v3751 = vunpack.c.l.b16 %v936
        %v3752 = vunpack.c.h.b16 %v936
        %v3753 = vunpack.c.l.b16 %v937
        %v3754 = vunpack.c.h.b16 %v937
        %v3755 = vunpack.c.l.b16 %v938
        %v3756 = vunpack.c.h.b16 %v938
        %v3757 = vunpack.c.l.b16 %v939
        %v3758 = vunpack.c.h.b16 %v939
        %v3759 = vunpack.c.l.b16 %v940
        %v3760 = vunpack.c.h.b16 %v940
        %v3761 = vunpack.c.l.b16 %v941
        %v3762 = vunpack.c.h.b16 %v941
        %v3763 = vunpack.c.l.b16 %v942
        %v3764 = vunpack.c.h.b16 %v942
        %v3765 = vunpack.c.l.b16 %v943
        %v3766 = vunpack.c.h.b16 %v943
        %v3767 = vunpack.c.l.b16 %v944
        %v3768 = vunpack.c.h.b16 %v944
        %v3769 = vunpack.c.l.b16 %v945
        %v3770 = vunpack.c.h.b16 %v945
        %v3771 = vunpack.c.l.b16 %v946
        %v3772 = vunpack.c.h.b16 %v946
        %v3773 = vunpack.c.l.b16 %v947
        %v3774 = vunpack.c.h.b16 %v947
        %v3775 = vunpack.c.l.b16 %v948
        %v3776 = vunpack.c.h.b16 %v948
        %v3777 = vunpack.c.l.b16 %v949
        %v3778 = vunpack.c.h.b16 %v949
        %v3779 = vunpack.c.l.b16 %v950
        %v3780 = vunpack.c.h.b16 %v950
        %v3781 = vunpack.c.l.b16 %v951
        %v3782 = vunpack.c.h.b16 %v951
        %v3783 = vunpack.c.l.b16 %v952
        %v3784 = vunpack.c.h.b16 %v952
        %v3785 = vunpack.c.l.b16 %v953
        %v3786 = vunpack.c.h.b16 %v953
        %v3787 = vunpack.c.l.b16 %v954
        %v3788 = vunpack.c.h.b16 %v954
        %v3789 = vunpack.c.l.b16 %v955
        %v3790 = vunpack.c.h.b16 %v955
        %v3791 = vunpack.c.l.b16 %v956
        %v3792 = vunpack.c.h.b16 %v956
        %v3793 = vunpack.c.l.b16 %v957
        %v3794 = vunpack.c.h.b16 %v957
        %v3795 = vunpack.c.l.b16 %v958
        %v3796 = vunpack.c.h.b16 %v958
        %v3797 = vunpack.c.l.b16 %v959
        %v3798 = vunpack.c.h.b16 %v959
        %v3799 = vunpack.c.l.b16 %v960
        %v3800 = vunpack.c.h.b16 %v960
        %v3801 = vunpack.c.l.b16 %v961
        %v3802 = vunpack.c.h.b16 %v961
        %v3803 = vunpack.c.l.b16 %v962
        %v3804 = vunpack.c.h.b16 %v962
        %v3805 = vunpack.c.l.b16 %v963
        %v3806 = vunpack.c.h.b16 %v963
        %v3807 = vunpack.c.l.b16 %v964
        %v3808 = vunpack.c.h.b16 %v964
        %v3809 = vunpack.c.l.b16 %v965
        %v3810 = vunpack.c.h.b16 %v965
        %v3811 = vunpack.c.l.b16 %v966
        %v3812 = vunpack.c.h.b16 %v966
        %v3813 = vunpack.c.l.b16 %v967
        %v3814 = vunpack.c.h.b16 %v967
        %v3815 = vunpack.c.l.b16 %v968
        %v3816 = vunpack.c.h.b16 %v968
        %v3817 = vunpack.c.l.b16 %v969
        %v3818 = vunpack.c.h.b16 %v969
        %v3819 = vunpack.c.l.b16 %v970
        %v3820 = vunpack.c.h.b16 %v970
        %v3821 = vunpack.c.l.b16 %v971
        %v3822 = vunpack.c.h.b16 %v971
        %v3823 = vunpack.c.l.b16 %v972
        %v3824 = vunpack.c.h.b16 %v972
        %v3825 = vunpack.c.l.b16 %v973
        %v3826 = vunpack.c.h.b16 %v973
        %v3827 = vunpack.c.l.b16 %v974
        %v3828 = vunpack.c.h.b16 %v974
        %v3829 = vunpack.c.l.b16 %v975
        %v3830 = vunpack.c.h.b16 %v975
        %v3831 = vunpack.c.l.b16 %v976
        %v3832 = vunpack.c.h.b16 %v976
        %v3833 = vunpack.c.l.b16 %v977
        %v3834 = vunpack.c.h.b16 %v977
        %v3835 = vunpack.c.l.b16 %v978
        %v3836 = vunpack.c.h.b16 %v978
        %v3837 = vunpack.c.l.b16 %v979
        %v3838 = vunpack.c.h.b16 %v979
        %v3839 = vunpack.c.l.b16 %v980
        %v3840 = vunpack.c.h.b16 %v980
        %v3841 = vunpack.c.l.b16 %v981
        %v3842 = vunpack.c.h.b16 %v981
        %v3843 = vunpack.c.l.b16 %v982
        %v3844 = vunpack.c.h.b16 %v982
        %v3845 = vunpack.c.l.b16 %v983
        %v3846 = vunpack.c.h.b16 %v983
        %v3847 = vunpack.c.l.b16 %v984
        %v3848 = vunpack.c.h.b16 %v984
        %v3849 = vunpack.c.l.b16 %v985
        %v3850 = vunpack.c.h.b16 %v985
        %v3851 = vunpack.c.l.b16 %v986
        %v3852 = vunpack.c.h.b16 %v986
        %v3853 = vunpack.c.l.b16 %v987
        %v3854 = vunpack.c.h.b16 %v987
        %v3855 = vunpack.c.l.b16 %v988
        %v3856 = vunpack.c.h.b16 %v988
        %v3857 = vunpack.c.l.b16 %v989
        %v3858 = vunpack.c.h.b16 %v989
        %v3859 = vunpack.c.l.b16 %v990
        %v3860 = vunpack.c.h.b16 %v990
        %v3861 = vunpack.c.l.b16 %v991
        %v3862 = vunpack.c.h.b16 %v991
        %v3863 = vunpack.c.l.b16 %v992
        %v3864 = vunpack.c.h.b16 %v992
        %v3865 = vunpack.c.l.b16 %v993
        %v3866 = vunpack.c.h.b16 %v993
        %v3867 = vunpack.c.l.b16 %v994
        %v3868 = vunpack.c.h.b16 %v994
        %v3869 = vunpack.c.l.b16 %v995
        %v3870 = vunpack.c.h.b16 %v995
        %v3871 = vunpack.c.l.b16 %v996
        %v3872 = vunpack.c.h.b16 %v996
        %v3873 = vunpack.c.l.b16 %v997
        %v3874 = vunpack.c.h.b16 %v997
        %v3875 = vunpack.c.l.b16 %v998
        %v3876 = vunpack.c.h.b16 %v998
        %v3877 = vunpack.c.l.b16 %v999
        %v3878 = vunpack.c.h.b16 %v999
        %v3879 = vunpack.c.l.b16 %v1000
        %v3880 = vunpack.c.h.b16 %v1000
        %v3881 = vunpack.c.l.b16 %v1001
        %v3882 = vunpack.c.h.b16 %v1001
        %v3883 = vunpack.c.l.b16 %v1002
        %v3884 = vunpack.c.h.b16 %v1002
        %v3885 = vunpack.c.l.b16 %v1003
        %v3886 = vunpack.c.h.b16 %v1003
        %v3887 = vunpack.c.l.b16 %v1004
        %v3888 = vunpack.c.h.b16 %v1004
        %v3889 = vunpack.c.l.b16 %v1005
        %v3890 = vunpack.c.h.b16 %v1005
        %v3891 = vunpack.c.l.b16 %v1006
        %v3892 = vunpack.c.h.b16 %v1006
        %v3893 = vunpack.c.l.b16 %v1007
        %v3894 = vunpack.c.h.b16 %v1007
        %v3895 = vunpack.c.l.b16 %v1008
        %v3896 = vunpack.c.h.b16 %v1008
        %v3897 = vunpack.c.l.b16 %v1009
        %v3898 = vunpack.c.h.b16 %v1009
        %v3899 = vunpack.c.l.b16 %v1010
        %v3900 = vunpack.c.h.b16 %v1010
        %v3901 = vunpack.c.l.b16 %v1011
        %v3902 = vunpack.c.h.b16 %v1011
        %v3903 = vunpack.c.l.b16 %v1012
        %v3904 = vunpack.c.h.b16 %v1012
        %v3905 = vunpack.c.l.b16 %v1013
        %v3906 = vunpack.c.h.b16 %v1013
        %v3907 = vunpack.c.l.b16 %v1014
        %v3908 = vunpack.c.h.b16 %v1014
        %v3909 = vunpack.c.l.b16 %v1015
        %v3910 = vunpack.c.h.b16 %v1015
        %v3911 = vunpack.c.l.b16 %v1016
        %v3912 = vunpack.c.h.b16 %v1016
        %v3913 = vunpack.c.l.b16 %v1017
        %v3914 = vunpack.c.h.b16 %v1017
        %v3915 = vunpack.c.l.b16 %v1018
        %v3916 = vunpack.c.h.b16 %v1018
        %v3917 = vunpack.c.l.b16 %v1019
        %v3918 = vunpack.c.h.b16 %v1019
        %v3919 = vunpack.c.l.b16 %v1020
        %v3920 = vunpack.c.h.b16 %v1020
        %v3921 = vunpack.c.l.b16 %v1021
        %v3922 = vunpack.c.h.b16 %v1021
        %v3923 = vunpack.c.l.b16 %v1022
        %v3924 = vunpack.c.h.b16 %v1022
        %v3925 = vunpack.c.l.b16 %v1023
        %v3926 = vunpack.c.h.b16 %v1023
        %v3927 = vunpack.c.l.b16 %v1024
        %v3928 = vunpack.c.h.b16 %v1024
        %v3929 = vunpack.c.l.b16 %v1025
        %v3930 = vunpack.c.h.b16 %v1025
        %v3931 = vunpack.c.l.b16 %v1026
        %v3932 = vunpack.c.h.b16 %v1026
        %v3933 = vunpack.c.l.b16 %v1027
        %v3934 = vunpack.c.h.b16 %v1027
        %v3935 = vunpack.c.l.b16 %v1028
        %v3936 = vunpack.c.h.b16 %v1028
        %v3937 = vunpack.c.l.b16 %v1029
        %v3938 = vunpack.c.h.b16 %v1029
        %v3939 = vunpack.c.l.b16 %v1030
        %v3940 = vunpack.c.h.b16 %v1030
        %v3941 = vunpack.c.l.b16 %v1031
        %v3942 = vunpack.c.h.b16 %v1031
        %v3943 = vunpack.c.l.b16 %v1032
        %v3944 = vunpack.c.h.b16 %v1032
        %v3945 = vunpack.c.l.b16 %v1033
        %v3946 = vunpack.c.h.b16 %v1033
        %v3947 = vunpack.c.l.b16 %v1034
        %v3948 = vunpack.c.h.b16 %v1034
        %v3949 = vunpack.c.l.b16 %v1035
        %v3950 = vunpack.c.h.b16 %v1035
        %v3951 = vunpack.c.l.b16 %v1036
        %v3952 = vunpack.c.h.b16 %v1036
        %v3953 = vunpack.c.l.b16 %v1037
        %v3954 = vunpack.c.h.b16 %v1037
        %v3955 = vunpack.c.l.b16 %v1038
        %v3956 = vunpack.c.h.b16 %v1038
        %v3957 = vunpack.c.l.b16 %v1039
        %v3958 = vunpack.c.h.b16 %v1039
        %v3959 = vunpack.c.l.b16 %v1040
        %v3960 = vunpack.c.h.b16 %v1040
        %v3961 = vunpack.c.l.b16 %v1041
        %v3962 = vunpack.c.h.b16 %v1041
        %v3963 = vunpack.c.l.b16 %v1042
        %v3964 = vunpack.c.h.b16 %v1042
        %v3965 = vunpack.c.l.b16 %v1043
        %v3966 = vunpack.c.h.b16 %v1043
        %v3967 = vunpack.c.l.b16 %v1044
        %v3968 = vunpack.c.h.b16 %v1044
        %v3969 = vunpack.c.l.b16 %v1045
        %v3970 = vunpack.c.h.b16 %v1045
        %v3971 = vunpack.c.l.b16 %v1046
        %v3972 = vunpack.c.h.b16 %v1046
        %v3973 = vunpack.c.l.b16 %v1047
        %v3974 = vunpack.c.h.b16 %v1047
        %v3975 = vunpack.c.l.b16 %v1048
        %v3976 = vunpack.c.h.b16 %v1048
        %v3977 = vunpack.c.l.b16 %v1049
        %v3978 = vunpack.c.h.b16 %v1049
        %v3979 = vunpack.c.l.b16 %v1050
        %v3980 = vunpack.c.h.b16 %v1050
        %v3981 = vunpack.c.l.b16 %v1051
        %v3982 = vunpack.c.h.b16 %v1051
        %v3983 = vunpack.c.l.b16 %v1052
        %v3984 = vunpack.c.h.b16 %v1052
        %v3985 = vunpack.c.l.b16 %v1053
        %v3986 = vunpack.c.h.b16 %v1053
        %v3987 = vunpack.c.l.b16 %v1054
        %v3988 = vunpack.c.h.b16 %v1054
        %v3989 = vpack.c.b16 %v2839, %v2837
        %v3990 = vpack.c.b16 %v2840, %v2838
        %v3991 = vpack.c.b16 %v2843, %v2841
        %v3992 = vpack.c.b16 %v2844, %v2842
        %v3993 = vpack.c.b16 %v2847, %v2845
        %v3994 = vpack.c.b16 %v2848, %v2846
        %v3995 = vpack.c.b16 %v2851, %v2849
        %v3996 = vpack.c.b16 %v2852, %v2850
        %v3997 = vpack.c.b16 %v2855, %v2853
        %v3998 = vpack.c.b16 %v2856, %v2854
        %v3999 = vpack.c.b16 %v2859, %v2857
        %v4000 = vpack.c.b16 %v2860, %v2858
        %v4001 = vpack.c.b16 %v2863, %v2861
        %v4002 = vpack.c.b16 %v2864, %v2862
        %v4003 = vpack.c.b16 %v2867, %v2865
        %v4004 = vpack.c.b16 %v2868, %v2866
        %v4005 = vpack.c.b16 %v2871, %v2869
        %v4006 = vpack.c.b16 %v2872, %v2870
        %v4007 = vpack.c.b16 %v2875, %v2873
        %v4008 = vpack.c.b16 %v2876, %v2874
        %v4009 = vpack.c.b16 %v2879, %v2877
        %v4010 = vpack.c.b16 %v2880, %v2878
        %v4011 = vpack.c.b16 %v2883, %v2881
        %v4012 = vpack.c.b16 %v2884, %v2882
        %v4013 = vpack.c.b16 %v2887, %v2885
        %v4014 = vpack.c.b16 %v2888, %v2886
        %v4015 = vpack.c.b16 %v2891, %v2889
        %v4016 = vpack.c.b16 %v2892, %v2890
        %v4017 = vpack.c.b16 %v2895, %v2893
        %v4018 = vpack.c.b16 %v2896, %v2894
        %v4019 = vpack.c.b16 %v2899, %v2897
        %v4020 = vpack.c.b16 %v2900, %v2898
        %v4021 = vpack.c.b16 %v2903, %v2901
        %v4022 = vpack.c.b16 %v2904, %v2902
        %v4023 = vpack.c.b16 %v2907, %v2905
        %v4024 = vpack.c.b16 %v2908, %v2906
        %v4025 = vpack.c.b16 %v2911, %v2909
        %v4026 = vpack.c.b16 %v2912, %v2910
        %v4027 = vpack.c.b16 %v2915, %v2913
        %v4028 = vpack.c.b16 %v2916, %v2914
        %v4029 = vpack.c.b16 %v2919, %v2917
        %v4030 = vpack.c.b16 %v2920, %v2918
        %v4031 = vpack.c.b16 %v2923, %v2921
        %v4032 = vpack.c.b16 %v2924, %v2922
        %v4033 = vpack.c.b16 %v2927, %v2925
        %v4034 = vpack.c.b16 %v2928, %v2926
        %v4035 = vpack.c.b16 %v2931, %v2929
        %v4036 = vpack.c.b16 %v2932, %v2930
        %v4037 = vpack.c.b16 %v2935, %v2933
        %v4038 = vpack.c.b16 %v2936, %v2934
        %v4039 = vpack.c.b16 %v2939, %v2937
        %v4040 = vpack.c.b16 %v2940, %v2938
        %v4041 = vpack.c.b16 %v2943, %v2941
        %v4042 = vpack.c.b16 %v2944, %v2942
        %v4043 = vpack.c.b16 %v2947, %v2945
        %v4044 = vpack.c.b16 %v2948, %v2946
        %v4045 = vpack.c.b16 %v2951, %v2949
        %v4046 = vpack.c.b16 %v2952, %v2950
        %v4047 = vpack.c.b16 %v2955, %v2953
        %v4048 = vpack.c.b16 %v2956, %v2954
        %v4049 = vpack.c.b16 %v2959, %v2957
        %v4050 = vpack.c.b16 %v2960, %v2958
        %v4051 = vpack.c.b16 %v2963, %v2961
        %v4052 = vpack.c.b16 %v2964, %v2962
        %v4053 = vpack.c.b16 %v2967, %v2965
        %v4054 = vpack.c.b16 %v2968, %v2966
        %v4055 = vpack.c.b16 %v2971, %v2969
        %v4056 = vpack.c.b16 %v2972, %v2970
        %v4057 = vpack.c.b16 %v2975, %v2973
        %v4058 = vpack.c.b16 %v2976, %v2974
        %v4059 = vpack.c.b16 %v2979, %v2977
        %v4060 = vpack.c.b16 %v2980, %v2978
        %v4061 = vpack.c.b16 %v2983, %v2981
        %v4062 = vpack.c.b16 %v2984, %v2982
        %v4063 = vpack.c.b16 %v2987, %v2985
        %v4064 = vpack.c.b16 %v2988, %v2986
        %v4065 = vpack.c.b16 %v2991, %v2989
        %v4066 = vpack.c.b16 %v2992, %v2990
        %v4067 = vpack.c.b16 %v2995, %v2993
        %v4068 = vpack.c.b16 %v2996, %v2994
        %v4069 = vpack.c.b16 %v2999, %v2997
        %v4070 = vpack.c.b16 %v3000, %v2998
        %v4071 = vpack.c.b16 %v3003, %v3001
        %v4072 = vpack.c.b16 %v3004, %v3002
        %v4073 = vpack.c.b16 %v3007, %v3005
        %v4074 = vpack.c.b16 %v3008, %v3006
        %v4075 = vpack.c.b16 %v3011, %v3009
        %v4076 = vpack.c.b16 %v3012, %v3010
        %v4077 = vpack.c.b16 %v3015, %v3013
        %v4078 = vpack.c.b16 %v3016, %v3014
        %v4079 = vpack.c.b16 %v3019, %v3017
        %v4080 = vpack.c.b16 %v3020, %v3018
        %v4081 = vpack.c.b16 %v3023, %v3021
        %v4082 = vpack.c.b16 %v3024, %v3022
        %v4083 = vpack.c.b16 %v3027, %v3025
        %v4084 = vpack.c.b16 %v3028, %v3026
        %v4085 = vpack.c.b16 %v3031, %v3029
        %v4086 = vpack.c.b16 %v3032, %v3030
        %v4087 = vpack.c.b16 %v3035, %v3033
        %v4088 = vpack.c.b16 %v3036, %v3034
        %v4089 = vpack.c.b16 %v3039, %v3037
        %v4090 = vpack.c.b16 %v3040, %v3038
        %v4091 = vpack.c.b16 %v3043, %v3041
        %v4092 = vpack.c.b16 %v3044, %v3042
        %v4093 = vpack.c.b16 %v3047, %v3045
        %v4094 = vpack.c.b16 %v3048, %v3046
        %v4095 = vpack.c.b16 %v3051, %v3049
        %v4096 = vpack.c.b16 %v3052, %v3050
        %v4097 = vpack.c.b16 %v3055, %v3053
        %v4098 = vpack.c.b16 %v3056, %v3054
        %v4099 = vpack.c.b16 %v3059, %v3057
        %v4100 = vpack.c.b16 %v3060, %v3058
        %v4101 = vpack.c.b16 %v3063, %v3061
        %v4102 = vpack.c.b16 %v3064, %v3062
        %v4103 = vpack.c.b16 %v3067, %v3065
        %v4104 = vpack.c.b16 %v3068, %v3066
        %v4105 = vpack.c.b16 %v3071, %v3069
        %v4106 = vpack.c.b16 %v3072, %v3070
        %v4107 = vpack.c.b16 %v3075, %v3073
        %v4108 = vpack.c.b16 %v3076, %v3074
        %v4109 = vpack.c.b16 %v3079, %v3077
        %v4110 = vpack.c.b16 %v3080, %v3078
        %v4111 = vpack.c.b16 %v3083, %v3081
        %v4112 = vpack.c.b16 %v3084, %v3082
        %v4113 = vpack.c.b16 %v3087, %v3085
        %v4114 = vpack.c.b16 %v3088, %v3086
        %v4115 = vpack.c.b16 %v3091, %v3089
        %v4116 = vpack.c.b16 %v3092, %v3090
        %v4117 = vpack.c.b16 %v3095, %v3093
        %v4118 = vpack.c.b16 %v3096, %v3094
        %v4119 = vpack.c.b16 %v3099, %v3097
        %v4120 = vpack.c.b16 %v3100, %v3098
        %v4121 = vpack.c.b16 %v3103, %v3101
        %v4122 = vpack.c.b16 %v3104, %v3102
        %v4123 = vpack.c.b16 %v3107, %v3105
        %v4124 = vpack.c.b16 %v3108, %v3106
        %v4125 = vpack.c.b16 %v3111, %v3109
        %v4126 = vpack.c.b16 %v3112, %v3110
        %v4127 = vpack.c.b16 %v3115, %v3113
        %v4128 = vpack.c.b16 %v3116, %v3114
        %v4129 = vpack.c.b16 %v3119, %v3117
        %v4130 = vpack.c.b16 %v3120, %v3118
        %v4131 = vpack.c.b16 %v3123, %v3121
        %v4132 = vpack.c.b16 %v3124, %v3122
        %v4133 = vpack.c.b16 %v3127, %v3125
        %v4134 = vpack.c.b16 %v3128, %v3126
        %v4135 = vpack.c.b16 %v3131, %v3129
        %v4136 = vpack.c.b16 %v3132, %v3130
        %v4137 = vpack.c.b16 %v3135, %v3133
        %v4138 = vpack.c.b16 %v3136, %v3134
        %v4139 = vpack.c.b16 %v3139, %v3137
        %v4140 = vpack.c.b16 %v3140, %v3138
        %v4141 = vpack.c.b16 %v3143, %v3141
        %v4142 = vpack.c.b16 %v3144, %v3142
        %v4143 = vpack.c.b16 %v3147, %v3145
        %v4144 = vpack.c.b16 %v3148, %v3146
        %v4145 = vpack.c.b16 %v3151, %v3149
        %v4146 = vpack.c.b16 %v3152, %v3150
        %v4147 = vpack.c.b16 %v3155, %v3153
        %v4148 = vpack.c.b16 %v3156, %v3154
        %v4149 = vpack.c.b16 %v3159, %v3157
        %v4150 = vpack.c.b16 %v3160, %v3158
        %v4151 = vpack.c.b16 %v3163, %v3161
        %v4152 = vpack.c.b16 %v3164, %v3162
        %v4153 = vpack.c.b16 %v3167, %v3165
        %v4154 = vpack.c.b16 %v3168, %v3166
        %v4155 = vpack.c.b16 %v3171, %v3169
        %v4156 = vpack.c.b16 %v3172, %v3170
        %v4157 = vpack.c.b16 %v3175, %v3173
        %v4158 = vpack.c.b16 %v3176, %v3174
        %v4159 = vpack.c.b16 %v3179, %v3177
        %v4160 = vpack.c.b16 %v3180, %v3178
        %v4161 = vpack.c.b16 %v3183, %v3181
        %v4162 = vpack.c.b16 %v3184, %v3182
        %v4163 = vpack.c.b16 %v3187, %v3185
        %v4164 = vpack.c.b16 %v3188, %v3186
        %v4165 = vpack.c.b16 %v3191, %v3189
        %v4166 = vpack.c.b16 %v3192, %v3190
        %v4167 = vpack.c.b16 %v3195, %v3193
        %v4168 = vpack.c.b16 %v3196, %v3194
        %v4169 = vpack.c.b16 %v3199, %v3197
        %v4170 = vpack.c.b16 %v3200, %v3198
        %v4171 = vpack.c.b16 %v3203, %v3201
        %v4172 = vpack.c.b16 %v3204, %v3202
        %v4173 = vpack.c.b16 %v3207, %v3205
        %v4174 = vpack.c.b16 %v3208, %v3206
        %v4175 = vpack.c.b16 %v3211, %v3209
        %v4176 = vpack.c.b16 %v3212, %v3210
        %v4177 = vpack.c.b16 %v3215, %v3213
        %v4178 = vpack.c.b16 %v3216, %v3214
        %v4179 = vpack.c.b16 %v3219, %v3217
        %v4180 = vpack.c.b16 %v3220, %v3218
        %v4181 = vpack.c.b16 %v3223, %v3221
        %v4182 = vpack.c.b16 %v3224, %v3222
        %v4183 = vpack.c.b16 %v3227, %v3225
        %v4184 = vpack.c.b16 %v3228, %v3226
        %v4185 = vpack.c.b16 %v3231, %v3229
        %v4186 = vpack.c.b16 %v3232, %v3230
        %v4187 = vpack.c.b16 %v3235, %v3233
        %v4188 = vpack.c.b16 %v3236, %v3234
        %v4189 = vpack.c.b16 %v3239, %v3237
        %v4190 = vpack.c.b16 %v3240, %v3238
        %v4191 = vpack.c.b16 %v3243, %v3241
        %v4192 = vpack.c.b16 %v3244, %v3242
        %v4193 = vpack.c.b16 %v3247, %v3245
        %v4194 = vpack.c.b16 %v3248, %v3246
        %v4195 = vpack.c.b16 %v3251, %v3249
        %v4196 = vpack.c.b16 %v3252, %v3250
        %v4197 = vpack.c.b16 %v3255, %v3253
        %v4198 = vpack.c.b16 %v3256, %v3254
        %v4199 = vpack.c.b16 %v3259, %v3257
        %v4200 = vpack.c.b16 %v3260, %v3258
        %v4201 = vpack.c.b16 %v3263, %v3261
        %v4202 = vpack.c.b16 %v3264, %v3262
        %v4203 = vpack.c.b16 %v3267, %v3265
        %v4204 = vpack.c.b16 %v3268, %v3266
        %v4205 = vpack.c.b16 %v3271, %v3269
        %v4206 = vpack.c.b16 %v3272, %v3270
        %v4207 = vpack.c.b16 %v3275, %v3273
        %v4208 = vpack.c.b16 %v3276, %v3274
        %v4209 = vpack.c.b16 %v3279, %v3277
        %v4210 = vpack.c.b16 %v3280, %v3278
        %v4211 = vpack.c.b16 %v3283, %v3281
        %v4212 = vpack.c.b16 %v3284, %v3282
        %v4213 = vpack.c.b16 %v3287, %v3285
        %v4214 = vpack.c.b16 %v3288, %v3286
        %v4215 = vpack.c.b16 %v3291, %v3289
        %v4216 = vpack.c.b16 %v3292, %v3290
        %v4217 = vpack.c.b16 %v3295, %v3293
        %v4218 = vpack.c.b16 %v3296, %v3294
        %v4219 = vpack.c.b16 %v3299, %v3297
        %v4220 = vpack.c.b16 %v3300, %v3298
        %v4221 = vpack.c.b16 %v3303, %v3301
        %v4222 = vpack.c.b16 %v3304, %v3302
        %v4223 = vpack.c.b16 %v3307, %v3305
        %v4224 = vpack.c.b16 %v3308, %v3306
        %v4225 = vpack.c.b16 %v3311, %v3309
        %v4226 = vpack.c.b16 %v3312, %v3310
        %v4227 = vpack.c.b16 %v3315, %v3313
        %v4228 = vpack.c.b16 %v3316, %v3314
        %v4229 = vpack.c.b16 %v3319, %v3317
        %v4230 = vpack.c.b16 %v3320, %v3318
        %v4231 = vpack.c.b16 %v3323, %v3321
        %v4232 = vpack.c.b16 %v3324, %v3322
        %v4233 = vpack.c.b16 %v3327, %v3325
        %v4234 = vpack.c.b16 %v3328, %v3326
        %v4235 = vpack.c.b16 %v3331, %v3329
        %v4236 = vpack.c.b16 %v3332, %v3330
        %v4237 = vpack.c.b16 %v3335, %v3333
        %v4238 = vpack.c.b16 %v3336, %v3334
        %v4239 = vpack.c.b16 %v3339, %v3337
        %v4240 = vpack.c.b16 %v3340, %v3338
        %v4241 = vpack.c.b16 %v3343, %v3341
        %v4242 = vpack.c.b16 %v3344, %v3342
        %v4243 = vpack.c.b16 %v3347, %v3345
        %v4244 = vpack.c.b16 %v3348, %v3346
        %v4245 = vpack.c.b16 %v3351, %v3349
        %v4246 = vpack.c.b16 %v3352, %v3350
        %v4247 = vpack.c.b16 %v3355, %v3353
        %v4248 = vpack.c.b16 %v3356, %v3354
        %v4249 = vpack.c.b16 %v3359, %v3357
        %v4250 = vpack.c.b16 %v3360, %v3358
        %v4251 = vpack.c.b16 %v3363, %v3361
        %v4252 = vpack.c.b16 %v3364, %v3362
        %v4253 = vpack.c.b16 %v3367, %v3365
        %v4254 = vpack.c.b16 %v3368, %v3366
        %v4255 = vpack.c.b16 %v3371, %v3369
        %v4256 = vpack.c.b16 %v3372, %v3370
        %v4257 = vpack.c.b16 %v3375, %v3373
        %v4258 = vpack.c.b16 %v3376, %v3374
        %v4259 = vpack.c.b16 %v3379, %v3377
        %v4260 = vpack.c.b16 %v3380, %v3378
        %v4261 = vpack.c.b16 %v3383, %v3381
        %v4262 = vpack.c.b16 %v3384, %v3382
        %v4263 = vpack.c.b16 %v3387, %v3385
        %v4264 = vpack.c.b16 %v3388, %v3386
        %v4265 = vpack.c.b16 %v3391, %v3389
        %v4266 = vpack.c.b16 %v3392, %v3390
        %v4267 = vpack.c.b16 %v3395, %v3393
        %v4268 = vpack.c.b16 %v3396, %v3394
        %v4269 = vpack.c.b16 %v3399, %v3397
        %v4270 = vpack.c.b16 %v3400, %v3398
        %v4271 = vpack.c.b16 %v3403, %v3401
        %v4272 = vpack.c.b16 %v3404, %v3402
        %v4273 = vpack.c.b16 %v3407, %v3405
        %v4274 = vpack.c.b16 %v3408, %v3406
        %v4275 = vpack.c.b16 %v3411, %v3409
        %v4276 = vpack.c.b16 %v3412, %v3410
        %v4277 = vpack.c.b16 %v3415, %v3413
        %v4278 = vpack.c.b16 %v3416, %v3414
        %v4279 = vpack.c.b16 %v3419, %v3417
        %v4280 = vpack.c.b16 %v3420, %v3418
        %v4281 = vpack.c.b16 %v3423, %v3421
        %v4282 = vpack.c.b16 %v3424, %v3422
        %v4283 = vpack.c.b16 %v3427, %v3425
        %v4284 = vpack.c.b16 %v3428, %v3426
        %v4285 = vpack.c.b16 %v3431, %v3429
        %v4286 = vpack.c.b16 %v3432, %v3430
        %v4287 = vpack.c.b16 %v3435, %v3433
        %v4288 = vpack.c.b16 %v3436, %v3434
        %v4289 = vpack.c.b16 %v3439, %v3437
        %v4290 = vpack.c.b16 %v3440, %v3438
        %v4291 = vpack.c.b16 %v3443, %v3441
        %v4292 = vpack.c.b16 %v3444, %v3442
        %v4293 = vpack.c.b16 %v3447, %v3445
        %v4294 = vpack.c.b16 %v3448, %v3446
        %v4295 = vpack.c.b16 %v3451, %v3449
        %v4296 = vpack.c.b16 %v3452, %v3450
        %v4297 = vpack.c.b16 %v3455, %v3453
        %v4298 = vpack.c.b16 %v3456, %v3454
        %v4299 = vpack.c.b16 %v3459, %v3457
        %v4300 = vpack.c.b16 %v3460, %v3458
        %v4301 = vpack.c.b16 %v3463, %v3461
        %v4302 = vpack.c.b16 %v3464, %v3462
        %v4303 = vpack.c.b16 %v3467, %v3465
        %v4304 = vpack.c.b16 %v3468, %v3466
        %v4305 = vpack.c.b16 %v3471, %v3469
        %v4306 = vpack.c.b16 %v3472, %v3470
        %v4307 = vpack.c.b16 %v3475, %v3473
        %v4308 = vpack.c.b16 %v3476, %v3474
        %v4309 = vpack.c.b16 %v3479, %v3477
        %v4310 = vpack.c.b16 %v3480, %v3478
        %v4311 = vpack.c.b16 %v3483, %v3481
        %v4312 = vpack.c.b16 %v3484, %v3482
        %v4313 = vpack.c.b16 %v3487, %v3485
        %v4314 = vpack.c.b16 %v3488, %v3486
        %v4315 = vpack.c.b16 %v3491, %v3489
        %v4316 = vpack.c.b16 %v3492, %v3490
        %v4317 = vpack.c.b16 %v3495, %v3493
        %v4318 = vpack.c.b16 %v3496, %v3494
        %v4319 = vpack.c.b16 %v3499, %v3497
        %v4320 = vpack.c.b16 %v3500, %v3498
        %v4321 = vpack.c.b16 %v3503, %v3501
        %v4322 = vpack.c.b16 %v3504, %v3502
        %v4323 = vpack.c.b16 %v3507, %v3505
        %v4324 = vpack.c.b16 %v3508, %v3506
        %v4325 = vpack.c.b16 %v3511, %v3509
        %v4326 = vpack.c.b16 %v3512, %v3510
        %v4327 = vpack.c.b16 %v3515, %v3513
        %v4328 = vpack.c.b16 %v3516, %v3514
        %v4329 = vpack.c.b16 %v3519, %v3517
        %v4330 = vpack.c.b16 %v3520, %v3518
        %v4331 = vpack.c.b16 %v3523, %v3521
        %v4332 = vpack.c.b16 %v3524, %v3522
        %v4333 = vpack.c.b16 %v3527, %v3525
        %v4334 = vpack.c.b16 %v3528, %v3526
        %v4335 = vpack.c.b16 %v3531, %v3529
        %v4336 = vpack.c.b16 %v3532, %v3530
        %v4337 = vpack.c.b16 %v3535, %v3533
        %v4338 = vpack.c.b16 %v3536, %v3534
        %v4339 = vpack.c.b16 %v3539, %v3537
        %v4340 = vpack.c.b16 %v3540, %v3538
        %v4341 = vpack.c.b16 %v3543, %v3541
        %v4342 = vpack.c.b16 %v3544, %v3542
        %v4343 = vpack.c.b16 %v3547, %v3545
        %v4344 = vpack.c.b16 %v3548, %v3546
        %v4345 = vpack.c.b16 %v3551, %v3549
        %v4346 = vpack.c.b16 %v3552, %v3550
        %v4347 = vpack.c.b16 %v3555, %v3553
        %v4348 = vpack.c.b16 %v3556, %v3554
        %v4349 = vpack.c.b16 %v3559, %v3557
        %v4350 = vpack.c.b16 %v3560, %v3558
        %v4351 = vpack.c.b16 %v3563, %v3561
        %v4352 = vpack.c.b16 %v3564, %v3562
        %v4353 = vpack.c.b16 %v3567, %v3565
        %v4354 = vpack.c.b16 %v3568, %v3566
        %v4355 = vpack.c.b16 %v3571, %v3569
        %v4356 = vpack.c.b16 %v3572, %v3570
        %v4357 = vpack.c.b16 %v3575, %v3573
        %v4358 = vpack.c.b16 %v3576, %v3574
        %v4359 = vpack.c.b16 %v3579, %v3577
        %v4360 = vpack.c.b16 %v3580, %v3578
        %v4361 = vpack.c.b16 %v3583, %v3581
        %v4362 = vpack.c.b16 %v3584, %v3582
        %v4363 = vpack.c.b16 %v3587, %v3585
        %v4364 = vpack.c.b16 %v3588, %v3586
        %v4365 = vpack.c.b16 %v3591, %v3589
        %v4366 = vpack.c.b16 %v3592, %v3590
        %v4367 = vpack.c.b16 %v3595, %v3593
        %v4368 = vpack.c.b16 %v3596, %v3594
        %v4369 = vpack.c.b16 %v3599, %v3597
        %v4370 = vpack.c.b16 %v3600, %v3598
        %v4371 = vpack.c.b16 %v3603, %v3601
        %v4372 = vpack.c.b16 %v3604, %v3602
        %v4373 = vpack.c.b16 %v3607, %v3605
        %v4374 = vpack.c.b16 %v3608, %v3606
        %v4375 = vpack.c.b16 %v3611, %v3609
        %v4376 = vpack.c.b16 %v3612, %v3610
        %v4377 = vpack.c.b16 %v3615, %v3613
        %v4378 = vpack.c.b16 %v3616, %v3614
        %v4379 = vpack.c.b16 %v3619, %v3617
        %v4380 = vpack.c.b16 %v3620, %v3618
        %v4381 = vpack.c.b16 %v3623, %v3621
        %v4382 = vpack.c.b16 %v3624, %v3622
        %v4383 = vpack.c.b16 %v3627, %v3625
        %v4384 = vpack.c.b16 %v3628, %v3626
        %v4385 = vpack.c.b16 %v3631, %v3629
        %v4386 = vpack.c.b16 %v3632, %v3630
        %v4387 = vpack.c.b16 %v3635, %v3633
        %v4388 = vpack.c.b16 %v3636, %v3634
        %v4389 = vpack.c.b16 %v3639, %v3637
        %v4390 = vpack.c.b16 %v3640, %v3638
        %v4391 = vpack.c.b16 %v3643, %v3641
        %v4392 = vpack.c.b16 %v3644, %v3642
        %v4393 = vpack.c.b16 %v3647, %v3645
        %v4394 = vpack.c.b16 %v3648, %v3646
        %v4395 = vpack.c.b16 %v3651, %v3649
        %v4396 = vpack.c.b16 %v3652, %v3650
        %v4397 = vpack.c.b16 %v3655, %v3653
        %v4398 = vpack.c.b16 %v3656, %v3654
        %v4399 = vpack.c.b16 %v3659, %v3657
        %v4400 = vpack.c.b16 %v3660, %v3658
        %v4401 = vpack.c.b16 %v3663, %v3661
        %v4402 = vpack.c.b16 %v3664, %v3662
        %v4403 = vpack.c.b16 %v3667, %v3665
        %v4404 = vpack.c.b16 %v3668, %v3666
        %v4405 = vpack.c.b16 %v3671, %v3669
        %v4406 = vpack.c.b16 %v3672, %v3670
        %v4407 = vpack.c.b16 %v3675, %v3673
        %v4408 = vpack.c.b16 %v3676, %v3674
        %v4409 = vpack.c.b16 %v3679, %v3677
        %v4410 = vpack.c.b16 %v3680, %v3678
        %v4411 = vpack.c.b16 %v3683, %v3681
        %v4412 = vpack.c.b16 %v3684, %v3682
        %v4413 = vpack.c.b16 %v3687, %v3685
        %v4414 = vpack.c.b16 %v3688, %v3686
        %v4415 = vpack.c.b16 %v3691, %v3689
        %v4416 = vpack.c.b16 %v3692, %v3690
        %v4417 = vpack.c.b16 %v3695, %v3693
        %v4418 = vpack.c.b16 %v3696, %v3694
        %v4419 = vpack.c.b16 %v3699, %v3697
        %v4420 = vpack.c.b16 %v3700, %v3698
        %v4421 = vpack.c.b16 %v3703, %v3701
        %v4422 = vpack.c.b16 %v3704, %v3702
        %v4423 = vpack.c.b16 %v3707, %v3705
        %v4424 = vpack.c.b16 %v3708, %v3706
        %v4425 = vpack.c.b16 %v3711, %v3709
        %v4426 = vpack.c.b16 %v3712, %v3710
        %v4427 = vpack.c.b16 %v3715, %v3713
        %v4428 = vpack.c.b16 %v3716, %v3714
        %v4429 = vpack.c.b16 %v3719, %v3717
        %v4430 = vpack.c.b16 %v3720, %v3718
        %v4431 = vpack.c.b16 %v3723, %v3721
        %v4432 = vpack.c.b16 %v3724, %v3722
        %v4433 = vpack.c.b16 %v3727, %v3725
        %v4434 = vpack.c.b16 %v3728, %v3726
        %v4435 = vpack.c.b16 %v3731, %v3729
        %v4436 = vpack.c.b16 %v3732, %v3730
        %v4437 = vpack.c.b16 %v3735, %v3733
        %v4438 = vpack.c.b16 %v3736, %v3734
        %v4439 = vpack.c.b16 %v3739, %v3737
        %v4440 = vpack.c.b16 %v3740, %v3738
        %v4441 = vpack.c.b16 %v3743, %v3741
        %v4442 = vpack.c.b16 %v3744, %v3742
        %v4443 = vpack.c.b16 %v3747, %v3745
        %v4444 = vpack.c.b16 %v3748, %v3746
        %v4445 = vpack.c.b16 %v3751, %v3749
        %v4446 = vpack.c.b16 %v3752, %v3750
        %v4447 = vpack.c.b16 %v3755, %v3753
        %v4448 = vpack.c.b16 %v3756, %v3754
        %v4449 = vpack.c.b16 %v3759, %v3757
        %v4450 = vpack.c.b16 %v3760, %v3758
        %v4451 = vpack.c.b16 %v3763, %v3761
        %v4452 = vpack.c.b16 %v3764, %v3762
        %v4453 = vpack.c.b16 %v3767, %v3765
        %v4454 = vpack.c.b16 %v3768, %v3766
        %v4455 = vpack.c.b16 %v3771, %v3769
        %v4456 = vpack.c.b16 %v3772, %v3770
        %v4457 = vpack.c.b16 %v3775, %v3773
        %v4458 = vpack.c.b16 %v3776, %v3774
        %v4459 = vpack.c.b16 %v3779, %v3777
        %v4460 = vpack.c.b16 %v3780, %v3778
        %v4461 = vpack.c.b16 %v3783, %v3781
        %v4462 = vpack.c.b16 %v3784, %v3782
        %v4463 = vpack.c.b16 %v3787, %v3785
        %v4464 = vpack.c.b16 %v3788, %v3786
        %v4465 = vpack.c.b16 %v3791, %v3789
        %v4466 = vpack.c.b16 %v3792, %v3790
        %v4467 = vpack.c.b16 %v3795, %v3793
        %v4468 = vpack.c.b16 %v3796, %v3794
        %v4469 = vpack.c.b16 %v3799, %v3797
        %v4470 = vpack.c.b16 %v3800, %v3798
        %v4471 = vpack.c.b16 %v3803, %v3801
        %v4472 = vpack.c.b16 %v3804, %v3802
        %v4473 = vpack.c.b16 %v3807, %v3805
        %v4474 = vpack.c.b16 %v3808, %v3806
        %v4475 = vpack.c.b16 %v3811, %v3809
        %v4476 = vpack.c.b16 %v3812, %v3810
        %v4477 = vpack.c.b16 %v3815, %v3813
        %v4478 = vpack.c.b16 %v3816, %v3814
        %v4479 = vpack.c.b16 %v3819, %v3817
        %v4480 = vpack.c.b16 %v3820, %v3818
        %v4481 = vpack.c.b16 %v3823, %v3821
        %v4482 = vpack.c.b16 %v3824, %v3822
        %v4483 = vpack.c.b16 %v3827, %v3825
        %v4484 = vpack.c.b16 %v3828, %v3826
        %v4485 = vpack.c.b16 %v3831, %v3829
        %v4486 = vpack.c.b16 %v3832, %v3830
        %v4487 = vpack.c.b16 %v3835, %v3833
        %v4488 = vpack.c.b16 %v3836, %v3834
        %v4489 = vpack.c.b16 %v3839, %v3837
        %v4490 = vpack.c.b16 %v3840, %v3838
        %v4491 = vpack.c.b16 %v3843, %v3841
        %v4492 = vpack.c.b16 %v3844, %v3842
        %v4493 = vpack.c.b16 %v3847, %v3845
        %v4494 = vpack.c.b16 %v3848, %v3846
        %v4495 = vpack.c.b16 %v3851, %v3849
        %v4496 = vpack.c.b16 %v3852, %v3850
        %v4497 = vpack.c.b16 %v3855, %v3853
        %v4498 = vpack.c.b16 %v3856, %v3854
        %v4499 = vpack.c.b16 %v3859, %v3857
        %v4500 = vpack.c.b16 %v3860, %v3858
        %v4501 = vpack.c.b16 %v3863, %v3861
        %v4502 = vpack.c.b16 %v3864, %v3862
        %v4503 = vpack.c.b16 %v3867, %v3865
        %v4504 = vpack.c.b16 %v3868, %v3866
        %v4505 = vpack.c.b16 %v3871, %v3869
        %v4506 = vpack.c.b16 %v3872, %v3870
        %v4507 = vpack.c.b16 %v3875, %v3873
        %v4508 = vpack.c.b16 %v3876, %v3874
        %v4509 = vpack.c.b16 %v3879, %v3877
        %v4510 = vpack.c.b16 %v3880, %v3878
        %v4511 = vpack.c.b16 %v3883, %v3881
        %v4512 = vpack.c.b16 %v3884, %v3882
        %v4513 = vpack.c.b16 %v3887, %v3885
        %v4514 = vpack.c.b16 %v3888, %v3886
        %v4515 = vpack.c.b16 %v3891, %v3889
        %v4516 = vpack.c.b16 %v3892, %v3890
        %v4517 = vpack.c.b16 %v3895, %v3893
        %v4518 = vpack.c.b16 %v3896, %v3894
        %v4519 = vpack.c.b16 %v3899, %v3897
        %v4520 = vpack.c.b16 %v3900, %v3898
        %v4521 = vpack.c.b16 %v3903, %v3901
        %v4522 = vpack.c.b16 %v3904, %v3902
        %v4523 = vpack.c.b16 %v3907, %v3905
        %v4524 = vpack.c.b16 %v3908, %v3906
        %v4525 = vpack.c.b16 %v3911, %v3909
        %v4526 = vpack.c.b16 %v3912, %v3910
        %v4527 = vpack.c.b16 %v3915, %v3913
        %v4528 = vpack.c.b16 %v3916, %v3914
        %v4529 = vpack.c.b16 %v3919, %v3917
        %v4530 = vpack.c.b16 %v3920, %v3918
        %v4531 = vpack.c.b16 %v3923, %v3921
        %v4532 = vpack.c.b16 %v3924, %v3922
        %v4533 = vpack.c.b16 %v3927, %v3925
        %v4534 = vpack.c.b16 %v3928, %v3926
        %v4535 = vpack.c.b16 %v3931, %v3929
        %v4536 = vpack.c.b16 %v3932, %v3930
        %v4537 = vpack.c.b16 %v3935, %v3933
        %v4538 = vpack.c.b16 %v3936, %v3934
        %v4539 = vpack.c.b16 %v3939, %v3937
        %v4540 = vpack.c.b16 %v3940, %v3938
        %v4541 = vpack.c.b16 %v3943, %v3941
        %v4542 = vpack.c.b16 %v3944, %v3942
        %v4543 = vpack.c.b16 %v3947, %v3945
        %v4544 = vpack.c.b16 %v3948, %v3946
        %v4545 = vpack.c.b16 %v3951, %v3949
        %v4546 = vpack.c.b16 %v3952, %v3950
        %v4547 = vpack.c.b16 %v3955, %v3953
        %v4548 = vpack.c.b16 %v3956, %v3954
        %v4549 = vpack.c.b16 %v3959, %v3957
        %v4550 = vpack.c.b16 %v3960, %v3958
        %v4551 = vpack.c.b16 %v3963, %v3961
        %v4552 = vpack.c.b16 %v3964, %v3962
        %v4553 = vpack.c.b16 %v3967, %v3965
        %v4554 = vpack.c.b16 %v3968, %v3966
        %v4555 = vpack.c.b16 %v3971, %v3969
        %v4556 = vpack.c.b16 %v3972, %v3970
        %v4557 = vpack.c.b16 %v3975, %v3973
        %v4558 = vpack.c.b16 %v3976, %v3974
        %v4559 = vpack.c.b16 %v3979, %v3977
        %v4560 = vpack.c.b16 %v3980, %v3978
        %v4561 = vpack.c.b16 %v3983, %v3981
        %v4562 = vpack.c.b16 %v3984, %v3982
        %v4563 = vpack.c.b16 %v3987, %v3985
        %v4564 = vpack.c.b16 %v3988, %v3986
        %5141 = vmatprep.subr.bf16.mxu0 %v3990
        %5142 = vmatpush1.bf16.msra.mxu0 %v3989
        %5143 = vmatprep.subr.bf16.mxu0 %v3992
        %5144 = vmatpush1.bf16.msra.mxu0 %v3991
        %5145 = vmatprep.subr.bf16.mxu0 %v3994
        %5146 = vmatpush1.bf16.msra.mxu0 %v3993
        %5147 = vmatprep.subr.bf16.mxu0 %v3996
        %5148 = vmatpush1.bf16.msra.mxu0 %v3995
        %5149 = vmatprep.subr.bf16.mxu0 %v3998
        %5150 = vmatpush1.bf16.msra.mxu0 %v3997
        %5151 = vmatprep.subr.bf16.mxu0 %v4000
        %5152 = vmatpush1.bf16.msra.mxu0 %v3999
        %5153 = vmatprep.subr.bf16.mxu0 %v4002
        %5154 = vmatpush1.bf16.msra.mxu0 %v4001
        %5155 = vmatprep.subr.bf16.mxu0 %v4004
        %5156 = vmatpush1.bf16.msra.mxu0 %v4003
        %5157 = vmatprep.subr.bf16.mxu0 %v4006
        %5158 = vmatpush1.bf16.msra.mxu0 %v4005
        %5159 = vmatprep.subr.bf16.mxu0 %v4008
        %5160 = vmatpush1.bf16.msra.mxu0 %v4007
        %5161 = vmatprep.subr.bf16.mxu0 %v4010
        %5162 = vmatpush1.bf16.msra.mxu0 %v4009
        %5163 = vmatprep.subr.bf16.mxu0 %v4012
        %5164 = vmatpush1.bf16.msra.mxu0 %v4011
        %5165 = vmatprep.subr.bf16.mxu0 %v4014
        %5166 = vmatpush1.bf16.msra.mxu0 %v4013
        %5167 = vmatprep.subr.bf16.mxu0 %v4016
        %5168 = vmatpush1.bf16.msra.mxu0 %v4015
        %5169 = vmatprep.subr.bf16.mxu0 %v4018
        %5170 = vmatpush1.bf16.msra.mxu0 %v4017
        %5171 = vmatprep.subr.bf16.mxu0 %v4020
        %5172 = vmatpush1.bf16.msra.mxu0 %v4019
        %5173 = vmatprep.mubr.bf16.mxu0 %v1758
        %5174 = vmatmul.mubr.bf16.gmra.mrb[0].mxu0 %v1757
        %v5175 = vpop.f32.mrb[0].mxu0
        %v5176 = vadd.f32 0.0, %v5175
        %v5177 = vpop.f32.mrb[0].mxu0
        %v5178 = vadd.f32 0.0, %v5177
        %v5179 = vpop.f32.mrb[0].mxu0
        %v5180 = vadd.f32 0.0, %v5179
        %v5181 = vpop.f32.mrb[0].mxu0
        %v5182 = vadd.f32 0.0, %v5181
        %5183 = vmatprep.mubr.bf16.mxu0 %v1794
        %5184 = vmatmul.mubr.bf16.gmra.mrb[0].mxu0 %v1793
        %v5185 = vpop.f32.mrb[0].mxu0
        %v5186 = vadd.f32 0.0, %v5185
        %v5187 = vpop.f32.mrb[0].mxu0
        %v5188 = vadd.f32 0.0, %v5187
        %v5189 = vpop.f32.mrb[0].mxu0
        %v5190 = vadd.f32 0.0, %v5189
        %v5191 = vpop.f32.mrb[0].mxu0
        %v5192 = vadd.f32 0.0, %v5191
        %5193 = vmatprep.mubr.bf16.mxu0 %v1830
        %5194 = vmatmul.mubr.bf16.gmra.mrb[0].mxu0 %v1829
        %v5195 = vpop.f32.mrb[0].mxu0
        %v5196 = vadd.f32 0.0, %v5195
        %v5197 = vpop.f32.mrb[0].mxu0
        %v5198 = vadd.f32 0.0, %v5197
        %v5199 = vpop.f32.mrb[0].mxu0
        %v5200 = vadd.f32 0.0, %v5199
        %v5201 = vpop.f32.mrb[0].mxu0
        %v5202 = vadd.f32 0.0, %v5201
        %5203 = vmatprep.mubr.bf16.mxu0 %v1866
        %5204 = vmatmul.mubr.bf16.gmra.mrb[0].mxu0 %v1865
        %v5205 = vpop.f32.mrb[0].mxu0
        %v5206 = vadd.f32 0.0, %v5205
        %v5207 = vpop.f32.mrb[0].mxu0
        %v5208 = vadd.f32 0.0, %v5207
        %v5209 = vpop.f32.mrb[0].mxu0
        %v5210 = vadd.f32 0.0, %v5209
        %v5211 = vpop.f32.mrb[0].mxu0
        %v5212 = vadd.f32 0.0, %v5211
        %5213 = vmatprep.mubr.bf16.mxu0 %v1902
        %5214 = vmatmul.mubr.bf16.gmra.mrb[0].mxu0 %v1901
        %v5215 = vpop.f32.mrb[0].mxu0
        %v5216 = vadd.f32 0.0, %v5215
        %v5217 = vpop.f32.mrb[0].mxu0
        %v5218 = vadd.f32 0.0, %v5217
        %v5219 = vpop.f32.mrb[0].mxu0
        %v5220 = vadd.f32 0.0, %v5219
        %v5221 = vpop.f32.mrb[0].mxu0
        %v5222 = vadd.f32 0.0, %v5221
        %5223 = vmatprep.mubr.bf16.mxu0 %v1938
        %5224 = vmatmul.mubr.bf16.gmra.mrb[0].mxu0 %v1937
        %v5225 = vpop.f32.mrb[0].mxu0
        %v5226 = vadd.f32 0.0, %v5225
        %v5227 = vpop.f32.mrb[0].mxu0
        %v5228 = vadd.f32 0.0, %v5227
        %v5229 = vpop.f32.mrb[0].mxu0
        %v5230 = vadd.f32 0.0, %v5229
        %v5231 = vpop.f32.mrb[0].mxu0
        %v5232 = vadd.f32 0.0, %v5231
        %5233 = vmatprep.mubr.bf16.mxu0 %v1974
        %5234 = vmatmul.mubr.bf16.gmra.mrb[0].mxu0 %v1973
        %v5235 = vpop.f32.mrb[0].mxu0
        %v5236 = vadd.f32 0.0, %v5235
        %v5237 = vpop.f32.mrb[0].mxu0
        %v5238 = vadd.f32 0.0, %v5237
        %v5239 = vpop.f32.mrb[0].mxu0
        %v5240 = vpop.f32.mrb[0].mxu0
        %5241 = vdwg.mxu0
        %5242 = vmatprep.subr.bf16.mxu0 %v4022
        %5243 = vmatpush1.bf16.msra.mxu0 %v4021
        %5244 = vmatprep.subr.bf16.mxu0 %v4024
        %5245 = vmatpush1.bf16.msra.mxu0 %v4023
        %5246 = vmatprep.subr.bf16.mxu0 %v4026
        %5247 = vmatpush1.bf16.msra.mxu0 %v4025
        %5248 = vmatprep.subr.bf16.mxu0 %v4028
        %5249 = vmatpush1.bf16.msra.mxu0 %v4027
        %5250 = vmatprep.subr.bf16.mxu0 %v4030
        %5251 = vmatpush1.bf16.msra.mxu0 %v4029
        %5252 = vmatprep.subr.bf16.mxu0 %v4032
        %5253 = vmatpush1.bf16.msra.mxu0 %v4031
        %5254 = vmatprep.subr.bf16.mxu0 %v4034
        %5255 = vmatpush1.bf16.msra.mxu0 %v4033
        %5256 = vmatprep.subr.bf16.mxu0 %v4036
        %5257 = vmatpush1.bf16.msra.mxu0 %v4035
        %5258 = vmatprep.subr.bf16.mxu0 %v4038
        %5259 = vmatpush1.bf16.msra.mxu0 %v4037
        %5260 = vmatprep.subr.bf16.mxu0 %v4040
        %5261 = vmatpush1.bf16.msra.mxu0 %v4039
        %5262 = vmatprep.subr.bf16.mxu0 %v4042
        %5263 = vmatpush1.bf16.msra.mxu0 %v4041
        %5264 = vmatprep.subr.bf16.mxu0 %v4044
        %5265 = vmatpush1.bf16.msra.mxu0 %v4043
        %5266 = vmatprep.subr.bf16.mxu0 %v4046
        %5267 = vmatpush1.bf16.msra.mxu0 %v4045
        %5268 = vmatprep.subr.bf16.mxu0 %v4048
        %5269 = vmatpush1.bf16.msra.mxu0 %v4047
        %5270 = vmatprep.subr.bf16.mxu0 %v4050
        %5271 = vmatpush1.bf16.msra.mxu0 %v4049
        %5272 = vmatprep.subr.bf16.mxu0 %v4052
        %5273 = vmatpush1.bf16.msra.mxu0 %v4051
        %5274 = vmatprep.mubr.bf16.mxu0 %v1760
        %5275 = vmatmul.mubr.bf16.gmra.mrb[0].mxu0 %v1759
        %v5276 = vpop.f32.mrb[0].mxu0
        %v5277 = vadd.f32 %v5176, %v5276
        %v5278 = vpop.f32.mrb[0].mxu0
        %v5279 = vadd.f32 %v5178, %v5278
        %v5280 = vpop.f32.mrb[0].mxu0
        %v5281 = vadd.f32 %v5180, %v5280
        %v5282 = vpop.f32.mrb[0].mxu0
        %v5283 = vadd.f32 %v5182, %v5282
        %5284 = vmatprep.mubr.bf16.mxu0 %v1796
        %5285 = vmatmul.mubr.bf16.gmra.mrb[0].mxu0 %v1795
        %v5286 = vpop.f32.mrb[0].mxu0
        %v5287 = vadd.f32 %v5186, %v5286
        %v5288 = vpop.f32.mrb[0].mxu0
        %v5289 = vadd.f32 %v5188, %v5288
        %v5290 = vpop.f32.mrb[0].mxu0
        %v5291 = vadd.f32 %v5190, %v5290
        %v5292 = vpop.f32.mrb[0].mxu0
        %v5293 = vadd.f32 %v5192, %v5292
        %5294 = vmatprep.mubr.bf16.mxu0 %v1832
        %5295 = vmatmul.mubr.bf16.gmra.mrb[0].mxu0 %v1831
        %v5296 = vpop.f32.mrb[0].mxu0
        %v5297 = vadd.f32 %v5196, %v5296
        %v5298 = vpop.f32.mrb[0].mxu0
        %v5299 = vadd.f32 %v5198, %v5298
        %v5300 = vpop.f32.mrb[0].mxu0
        %v5301 = vadd.f32 %v5200, %v5300
        %v5302 = vpop.f32.mrb[0].mxu0
        %v5303 = vadd.f32 %v5202, %v5302
        %5304 = vmatprep.mubr.bf16.mxu0 %v1868
        %5305 = vmatmul.mubr.bf16.gmra.mrb[0].mxu0 %v1867
        %v5306 = vpop.f32.mrb[0].mxu0
        %v5307 = vadd.f32 %v5206, %v5306
        %v5308 = vpop.f32.mrb[0].mxu0
        %v5309 = vadd.f32 %v5208, %v5308
        %v5310 = vpop.f32.mrb[0].mxu0
        %v5311 = vadd.f32 %v5210, %v5310
        %v5312 = vpop.f32.mrb[0].mxu0
        %v5313 = vadd.f32 %v5212, %v5312
        %5314 = vmatprep.mubr.bf16.mxu0 %v1904
        %5315 = vmatmul.mubr.bf16.gmra.mrb[0].mxu0 %v1903
        %v5316 = vpop.f32.mrb[0].mxu0
        %v5317 = vadd.f32 %v5216, %v5316
        %v5318 = vpop.f32.mrb[0].mxu0
        %v5319 = vadd.f32 %v5218, %v5318
        %v5320 = vpop.f32.mrb[0].mxu0
        %v5321 = vadd.f32 %v5220, %v5320
        %v5322 = vpop.f32.mrb[0].mxu0
        %v5323 = vadd.f32 %v5222, %v5322
        %5324 = vmatprep.mubr.bf16.mxu0 %v1940
        %5325 = vmatmul.mubr.bf16.gmra.mrb[0].mxu0 %v1939
        %v5326 = vpop.f32.mrb[0].mxu0
        %v5327 = vadd.f32 %v5226, %v5326
        %v5328 = vpop.f32.mrb[0].mxu0
        %v5329 = vadd.f32 %v5228, %v5328
        %v5330 = vpop.f32.mrb[0].mxu0
        %v5331 = vadd.f32 %v5230, %v5330
        %v5332 = vpop.f32.mrb[0].mxu0
        %v5333 = vadd.f32 %v5232, %v5332
        %5334 = vmatprep.mubr.bf16.mxu0 %v1976
        %5335 = vmatmul.mubr.bf16.gmra.mrb[0].mxu0 %v1975
        %v5336 = vpop.f32.mrb[0].mxu0
        %v5337 = vadd.f32 %v5236, %v5336
        %v5338 = vpop.f32.mrb[0].mxu0
        %v5339 = vadd.f32 %v5238, %v5338
        %v5340 = vpop.f32.mrb[0].mxu0
        %v5341 = vpop.f32.mrb[0].mxu0
        %5342 = vdwg.mxu0
        %5343 = vmatprep.subr.bf16.mxu0 %v4054
        %5344 = vmatpush1.bf16.msra.mxu0 %v4053
        %5345 = vmatprep.subr.bf16.mxu0 %v4056
        %5346 = vmatpush1.bf16.msra.mxu0 %v4055
        %5347 = vmatprep.subr.bf16.mxu0 %v4058
        %5348 = vmatpush1.bf16.msra.mxu0 %v4057
        %5349 = vmatprep.subr.bf16.mxu0 %v4060
        %5350 = vmatpush1.bf16.msra.mxu0 %v4059
        %5351 = vmatprep.subr.bf16.mxu0 %v4062
        %5352 = vmatpush1.bf16.msra.mxu0 %v4061
        %5353 = vmatprep.subr.bf16.mxu0 %v4064
        %5354 = vmatpush1.bf16.msra.mxu0 %v4063
        %5355 = vmatprep.subr.bf16.mxu0 %v4066
        %5356 = vmatpush1.bf16.msra.mxu0 %v4065
        %5357 = vmatprep.subr.bf16.mxu0 %v4068
        %5358 = vmatpush1.bf16.msra.mxu0 %v4067
        %5359 = vmatprep.subr.bf16.mxu0 %v4070
        %5360 = vmatpush1.bf16.msra.mxu0 %v4069
        %5361 = vmatprep.subr.bf16.mxu0 %v4072
        %5362 = vmatpush1.bf16.msra.mxu0 %v4071
        %5363 = vmatprep.subr.bf16.mxu0 %v4074
        %5364 = vmatpush1.bf16.msra.mxu0 %v4073
        %5365 = vmatprep.subr.bf16.mxu0 %v4076
        %5366 = vmatpush1.bf16.msra.mxu0 %v4075
        %5367 = vmatprep.subr.bf16.mxu0 %v4078
        %5368 = vmatpush1.bf16.msra.mxu0 %v4077
        %5369 = vmatprep.subr.bf16.mxu0 %v4080
        %5370 = vmatpush1.bf16.msra.mxu0 %v4079
        %5371 = vmatprep.subr.bf16.mxu0 %v4082
        %5372 = vmatpush1.bf16.msra.mxu0 %v4081
        %5373 = vmatprep.subr.bf16.mxu0 %v4084
        %5374 = vmatpush1.bf16.msra.mxu0 %v4083
        %5375 = vmatprep.mubr.bf16.mxu0 %v1762
        %5376 = vmatmul.mubr.bf16.gmra.mrb[0].mxu0 %v1761
        %v5377 = vpop.f32.mrb[0].mxu0
        %v5378 = vadd.f32 %v5277, %v5377
        %v5379 = vpop.f32.mrb[0].mxu0
        %v5380 = vadd.f32 %v5279, %v5379
        %v5381 = vpop.f32.mrb[0].mxu0
        %v5382 = vadd.f32 %v5281, %v5381
        %v5383 = vpop.f32.mrb[0].mxu0
        %v5384 = vadd.f32 %v5283, %v5383
        %5385 = vmatprep.mubr.bf16.mxu0 %v1798
        %5386 = vmatmul.mubr.bf16.gmra.mrb[0].mxu0 %v1797
        %v5387 = vpop.f32.mrb[0].mxu0
        %v5388 = vadd.f32 %v5287, %v5387
        %v5389 = vpop.f32.mrb[0].mxu0
        %v5390 = vadd.f32 %v5289, %v5389
        %v5391 = vpop.f32.mrb[0].mxu0
        %v5392 = vadd.f32 %v5291, %v5391
        %v5393 = vpop.f32.mrb[0].mxu0
        %v5394 = vadd.f32 %v5293, %v5393
        %5395 = vmatprep.mubr.bf16.mxu0 %v1834
        %5396 = vmatmul.mubr.bf16.gmra.mrb[0].mxu0 %v1833
        %v5397 = vpop.f32.mrb[0].mxu0
        %v5398 = vadd.f32 %v5297, %v5397
        %v5399 = vpop.f32.mrb[0].mxu0
        %v5400 = vadd.f32 %v5299, %v5399
        %v5401 = vpop.f32.mrb[0].mxu0
        %v5402 = vadd.f32 %v5301, %v5401
        %v5403 = vpop.f32.mrb[0].mxu0
        %v5404 = vadd.f32 %v5303, %v5403
        %5405 = vmatprep.mubr.bf16.mxu0 %v1870
        %5406 = vmatmul.mubr.bf16.gmra.mrb[0].mxu0 %v1869
        %v5407 = vpop.f32.mrb[0].mxu0
        %v5408 = vadd.f32 %v5307, %v5407
        %v5409 = vpop.f32.mrb[0].mxu0
        %v5410 = vadd.f32 %v5309, %v5409
        %v5411 = vpop.f32.mrb[0].mxu0
        %v5412 = vadd.f32 %v5311, %v5411
        %v5413 = vpop.f32.mrb[0].mxu0
        %v5414 = vadd.f32 %v5313, %v5413
        %5415 = vmatprep.mubr.bf16.mxu0 %v1906
        %5416 = vmatmul.mubr.bf16.gmra.mrb[0].mxu0 %v1905
        %v5417 = vpop.f32.mrb[0].mxu0
        %v5418 = vadd.f32 %v5317, %v5417
        %v5419 = vpop.f32.mrb[0].mxu0
        %v5420 = vadd.f32 %v5319, %v5419
        %v5421 = vpop.f32.mrb[0].mxu0
        %v5422 = vadd.f32 %v5321, %v5421
        %v5423 = vpop.f32.mrb[0].mxu0
        %v5424 = vadd.f32 %v5323, %v5423
        %5425 = vmatprep.mubr.bf16.mxu0 %v1942
        %5426 = vmatmul.mubr.bf16.gmra.mrb[0].mxu0 %v1941
        %v5427 = vpop.f32.mrb[0].mxu0
        %v5428 = vadd.f32 %v5327, %v5427
        %v5429 = vpop.f32.mrb[0].mxu0
        %v5430 = vadd.f32 %v5329, %v5429
        %v5431 = vpop.f32.mrb[0].mxu0
        %v5432 = vadd.f32 %v5331, %v5431
        %v5433 = vpop.f32.mrb[0].mxu0
        %v5434 = vadd.f32 %v5333, %v5433
        %5435 = vmatprep.mubr.bf16.mxu0 %v1978
        %5436 = vmatmul.mubr.bf16.gmra.mrb[0].mxu0 %v1977
        %v5437 = vpop.f32.mrb[0].mxu0
        %v5438 = vadd.f32 %v5337, %v5437
        %v5439 = vpop.f32.mrb[0].mxu0
        %v5440 = vadd.f32 %v5339, %v5439
        %v5441 = vpop.f32.mrb[0].mxu0
        %v5442 = vpop.f32.mrb[0].mxu0
        %5443 = vdwg.mxu0
        %5444 = vmatprep.subr.bf16.mxu0 %v4086
        %5445 = vmatpush1.bf16.msra.mxu0 %v4085
        %5446 = vmatprep.subr.bf16.mxu0 %v4088
        %5447 = vmatpush1.bf16.msra.mxu0 %v4087
        %5448 = vmatprep.subr.bf16.mxu0 %v4090
        %5449 = vmatpush1.bf16.msra.mxu0 %v4089
        %5450 = vmatprep.subr.bf16.mxu0 %v4092
        %5451 = vmatpush1.bf16.msra.mxu0 %v4091
        %5452 = vmatprep.subr.bf16.mxu0 %v4094
        %5453 = vmatpush1.bf16.msra.mxu0 %v4093
        %5454 = vmatprep.subr.bf16.mxu0 %v4096
        %5455 = vmatpush1.bf16.msra.mxu0 %v4095
        %5456 = vmatprep.subr.bf16.mxu0 %v4098
        %5457 = vmatpush1.bf16.msra.mxu0 %v4097
        %5458 = vmatprep.subr.bf16.mxu0 %v4100
        %5459 = vmatpush1.bf16.msra.mxu0 %v4099
        %5460 = vmatprep.subr.bf16.mxu0 %v4102
        %5461 = vmatpush1.bf16.msra.mxu0 %v4101
        %5462 = vmatprep.subr.bf16.mxu0 %v4104
        %5463 = vmatpush1.bf16.msra.mxu0 %v4103
        %5464 = vmatprep.subr.bf16.mxu0 %v4106
        %5465 = vmatpush1.bf16.msra.mxu0 %v4105
        %5466 = vmatprep.subr.bf16.mxu0 %v4108
        %5467 = vmatpush1.bf16.msra.mxu0 %v4107
        %5468 = vmatprep.subr.bf16.mxu0 %v4110
        %5469 = vmatpush1.bf16.msra.mxu0 %v4109
        %5470 = vmatprep.subr.bf16.mxu0 %v4112
        %5471 = vmatpush1.bf16.msra.mxu0 %v4111
        %5472 = vmatprep.subr.bf16.mxu0 %v4114
        %5473 = vmatpush1.bf16.msra.mxu0 %v4113
        %5474 = vmatprep.subr.bf16.mxu0 %v4116
        %5475 = vmatpush1.bf16.msra.mxu0 %v4115
        %5476 = vmatprep.mubr.bf16.mxu0 %v1764
        %5477 = vmatmul.mubr.bf16.gmra.mrb[0].mxu0 %v1763
        %v5478 = vpop.f32.mrb[0].mxu0
        %v5479 = vadd.f32 %v5378, %v5478
        %v5480 = vpop.f32.mrb[0].mxu0
        %v5481 = vadd.f32 %v5380, %v5480
        %v5482 = vpop.f32.mrb[0].mxu0
        %v5483 = vadd.f32 %v5382, %v5482
        %v5484 = vpop.f32.mrb[0].mxu0
        %v5485 = vadd.f32 %v5384, %v5484
        %5486 = vmatprep.mubr.bf16.mxu0 %v1800
        %5487 = vmatmul.mubr.bf16.gmra.mrb[0].mxu0 %v1799
        %v5488 = vpop.f32.mrb[0].mxu0
        %v5489 = vadd.f32 %v5388, %v5488
        %v5490 = vpop.f32.mrb[0].mxu0
        %v5491 = vadd.f32 %v5390, %v5490
        %v5492 = vpop.f32.mrb[0].mxu0
        %v5493 = vadd.f32 %v5392, %v5492
        %v5494 = vpop.f32.mrb[0].mxu0
        %v5495 = vadd.f32 %v5394, %v5494
        %5496 = vmatprep.mubr.bf16.mxu0 %v1836
        %5497 = vmatmul.mubr.bf16.gmra.mrb[0].mxu0 %v1835
        %v5498 = vpop.f32.mrb[0].mxu0
        %v5499 = vadd.f32 %v5398, %v5498
        %v5500 = vpop.f32.mrb[0].mxu0
        %v5501 = vadd.f32 %v5400, %v5500
        %v5502 = vpop.f32.mrb[0].mxu0
        %v5503 = vadd.f32 %v5402, %v5502
        %v5504 = vpop.f32.mrb[0].mxu0
        %v5505 = vadd.f32 %v5404, %v5504
        %5506 = vmatprep.mubr.bf16.mxu0 %v1872
        %5507 = vmatmul.mubr.bf16.gmra.mrb[0].mxu0 %v1871
        %v5508 = vpop.f32.mrb[0].mxu0
        %v5509 = vadd.f32 %v5408, %v5508
        %v5510 = vpop.f32.mrb[0].mxu0
        %v5511 = vadd.f32 %v5410, %v5510
        %v5512 = vpop.f32.mrb[0].mxu0
        %v5513 = vadd.f32 %v5412, %v5512
        %v5514 = vpop.f32.mrb[0].mxu0
        %v5515 = vadd.f32 %v5414, %v5514
        %5516 = vmatprep.mubr.bf16.mxu0 %v1908
        %5517 = vmatmul.mubr.bf16.gmra.mrb[0].mxu0 %v1907
        %v5518 = vpop.f32.mrb[0].mxu0
        %v5519 = vadd.f32 %v5418, %v5518
        %v5520 = vpop.f32.mrb[0].mxu0
        %v5521 = vadd.f32 %v5420, %v5520
        %v5522 = vpop.f32.mrb[0].mxu0
        %v5523 = vadd.f32 %v5422, %v5522
        %v5524 = vpop.f32.mrb[0].mxu0
        %v5525 = vadd.f32 %v5424, %v5524
        %5526 = vmatprep.mubr.bf16.mxu0 %v1944
        %5527 = vmatmul.mubr.bf16.gmra.mrb[0].mxu0 %v1943
        %v5528 = vpop.f32.mrb[0].mxu0
        %v5529 = vadd.f32 %v5428, %v5528
        %v5530 = vpop.f32.mrb[0].mxu0
        %v5531 = vadd.f32 %v5430, %v5530
        %v5532 = vpop.f32.mrb[0].mxu0
        %v5533 = vadd.f32 %v5432, %v5532
        %v5534 = vpop.f32.mrb[0].mxu0
        %v5535 = vadd.f32 %v5434, %v5534
        %5536 = vmatprep.mubr.bf16.mxu0 %v1980
        %5537 = vmatmul.mubr.bf16.gmra.mrb[0].mxu0 %v1979
        %v5538 = vpop.f32.mrb[0].mxu0
        %v5539 = vadd.f32 %v5438, %v5538
        %v5540 = vpop.f32.mrb[0].mxu0
        %v5541 = vadd.f32 %v5440, %v5540
        %v5542 = vpop.f32.mrb[0].mxu0
        %v5543 = vpop.f32.mrb[0].mxu0
        %5544 = vdwg.mxu0
        %5545 = vmatprep.subr.bf16.mxu0 %v4118
        %5546 = vmatpush1.bf16.msra.mxu0 %v4117
        %5547 = vmatprep.subr.bf16.mxu0 %v4120
        %5548 = vmatpush1.bf16.msra.mxu0 %v4119
        %5549 = vmatprep.subr.bf16.mxu0 %v4122
        %5550 = vmatpush1.bf16.msra.mxu0 %v4121
        %5551 = vmatprep.subr.bf16.mxu0 %v4124
        %5552 = vmatpush1.bf16.msra.mxu0 %v4123
        %5553 = vmatprep.subr.bf16.mxu0 %v4126
        %5554 = vmatpush1.bf16.msra.mxu0 %v4125
        %5555 = vmatprep.subr.bf16.mxu0 %v4128
        %5556 = vmatpush1.bf16.msra.mxu0 %v4127
        %5557 = vmatprep.subr.bf16.mxu0 %v4130
        %5558 = vmatpush1.bf16.msra.mxu0 %v4129
        %5559 = vmatprep.subr.bf16.mxu0 %v4132
        %5560 = vmatpush1.bf16.msra.mxu0 %v4131
        %5561 = vmatprep.subr.bf16.mxu0 %v4134
        %5562 = vmatpush1.bf16.msra.mxu0 %v4133
        %5563 = vmatprep.subr.bf16.mxu0 %v4136
        %5564 = vmatpush1.bf16.msra.mxu0 %v4135
        %5565 = vmatprep.subr.bf16.mxu0 %v4138
        %5566 = vmatpush1.bf16.msra.mxu0 %v4137
        %5567 = vmatprep.subr.bf16.mxu0 %v4140
        %5568 = vmatpush1.bf16.msra.mxu0 %v4139
        %5569 = vmatprep.subr.bf16.mxu0 %v4142
        %5570 = vmatpush1.bf16.msra.mxu0 %v4141
        %5571 = vmatprep.subr.bf16.mxu0 %v4144
        %5572 = vmatpush1.bf16.msra.mxu0 %v4143
        %5573 = vmatprep.subr.bf16.mxu0 %v4146
        %5574 = vmatpush1.bf16.msra.mxu0 %v4145
        %5575 = vmatprep.subr.bf16.mxu0 %v4148
        %5576 = vmatpush1.bf16.msra.mxu0 %v4147
        %5577 = vmatprep.mubr.bf16.mxu0 %v1766
        %5578 = vmatmul.mubr.bf16.gmra.mrb[0].mxu0 %v1765
        %v5579 = vpop.f32.mrb[0].mxu0
        %v5580 = vadd.f32 %v5479, %v5579
        %v5581 = vpop.f32.mrb[0].mxu0
        %v5582 = vadd.f32 %v5481, %v5581
        %v5583 = vpop.f32.mrb[0].mxu0
        %v5584 = vadd.f32 %v5483, %v5583
        %v5585 = vpop.f32.mrb[0].mxu0
        %v5586 = vadd.f32 %v5485, %v5585
        %5587 = vmatprep.mubr.bf16.mxu0 %v1802
        %5588 = vmatmul.mubr.bf16.gmra.mrb[0].mxu0 %v1801
        %v5589 = vpop.f32.mrb[0].mxu0
        %v5590 = vadd.f32 %v5489, %v5589
        %v5591 = vpop.f32.mrb[0].mxu0
        %v5592 = vadd.f32 %v5491, %v5591
        %v5593 = vpop.f32.mrb[0].mxu0
        %v5594 = vadd.f32 %v5493, %v5593
        %v5595 = vpop.f32.mrb[0].mxu0
        %v5596 = vadd.f32 %v5495, %v5595
        %5597 = vmatprep.mubr.bf16.mxu0 %v1838
        %5598 = vmatmul.mubr.bf16.gmra.mrb[0].mxu0 %v1837
        %v5599 = vpop.f32.mrb[0].mxu0
        %v5600 = vadd.f32 %v5499, %v5599
        %v5601 = vpop.f32.mrb[0].mxu0
        %v5602 = vadd.f32 %v5501, %v5601
        %v5603 = vpop.f32.mrb[0].mxu0
        %v5604 = vadd.f32 %v5503, %v5603
        %v5605 = vpop.f32.mrb[0].mxu0
        %v5606 = vadd.f32 %v5505, %v5605
        %5607 = vmatprep.mubr.bf16.mxu0 %v1874
        %5608 = vmatmul.mubr.bf16.gmra.mrb[0].mxu0 %v1873
        %v5609 = vpop.f32.mrb[0].mxu0
        %v5610 = vadd.f32 %v5509, %v5609
        %v5611 = vpop.f32.mrb[0].mxu0
        %v5612 = vadd.f32 %v5511, %v5611
        %v5613 = vpop.f32.mrb[0].mxu0
        %v5614 = vadd.f32 %v5513, %v5613
        %v5615 = vpop.f32.mrb[0].mxu0
        %v5616 = vadd.f32 %v5515, %v5615
        %5617 = vmatprep.mubr.bf16.mxu0 %v1910
        %5618 = vmatmul.mubr.bf16.gmra.mrb[0].mxu0 %v1909
        %v5619 = vpop.f32.mrb[0].mxu0
        %v5620 = vadd.f32 %v5519, %v5619
        %v5621 = vpop.f32.mrb[0].mxu0
        %v5622 = vadd.f32 %v5521, %v5621
        %v5623 = vpop.f32.mrb[0].mxu0
        %v5624 = vadd.f32 %v5523, %v5623
        %v5625 = vpop.f32.mrb[0].mxu0
        %v5626 = vadd.f32 %v5525, %v5625
        %5627 = vmatprep.mubr.bf16.mxu0 %v1946
        %5628 = vmatmul.mubr.bf16.gmra.mrb[0].mxu0 %v1945
        %v5629 = vpop.f32.mrb[0].mxu0
        %v5630 = vadd.f32 %v5529, %v5629
        %v5631 = vpop.f32.mrb[0].mxu0
        %v5632 = vadd.f32 %v5531, %v5631
        %v5633 = vpop.f32.mrb[0].mxu0
        %v5634 = vadd.f32 %v5533, %v5633
        %v5635 = vpop.f32.mrb[0].mxu0
        %v5636 = vadd.f32 %v5535, %v5635
        %5637 = vmatprep.mubr.bf16.mxu0 %v1982
        %5638 = vmatmul.mubr.bf16.gmra.mrb[0].mxu0 %v1981
        %v5639 = vpop.f32.mrb[0].mxu0
        %v5640 = vadd.f32 %v5539, %v5639
        %v5641 = vpop.f32.mrb[0].mxu0
        %v5642 = vadd.f32 %v5541, %v5641
        %v5643 = vpop.f32.mrb[0].mxu0
        %v5644 = vpop.f32.mrb[0].mxu0
        %5645 = vdwg.mxu0
        %5646 = vmatprep.subr.bf16.mxu0 %v4150
        %5647 = vmatpush1.bf16.msra.mxu0 %v4149
        %5648 = vmatprep.subr.bf16.mxu0 %v4152
        %5649 = vmatpush1.bf16.msra.mxu0 %v4151
        %5650 = vmatprep.subr.bf16.mxu0 %v4154
        %5651 = vmatpush1.bf16.msra.mxu0 %v4153
        %5652 = vmatprep.subr.bf16.mxu0 %v4156
        %5653 = vmatpush1.bf16.msra.mxu0 %v4155
        %5654 = vmatprep.subr.bf16.mxu0 %v4158
        %5655 = vmatpush1.bf16.msra.mxu0 %v4157
        %5656 = vmatprep.subr.bf16.mxu0 %v4160
        %5657 = vmatpush1.bf16.msra.mxu0 %v4159
        %5658 = vmatprep.subr.bf16.mxu0 %v4162
        %5659 = vmatpush1.bf16.msra.mxu0 %v4161
        %5660 = vmatprep.subr.bf16.mxu0 %v4164
        %5661 = vmatpush1.bf16.msra.mxu0 %v4163
        %5662 = vmatprep.subr.bf16.mxu0 %v4166
        %5663 = vmatpush1.bf16.msra.mxu0 %v4165
        %5664 = vmatprep.subr.bf16.mxu0 %v4168
        %5665 = vmatpush1.bf16.msra.mxu0 %v4167
        %5666 = vmatprep.subr.bf16.mxu0 %v4170
        %5667 = vmatpush1.bf16.msra.mxu0 %v4169
        %5668 = vmatprep.subr.bf16.mxu0 %v4172
        %5669 = vmatpush1.bf16.msra.mxu0 %v4171
        %5670 = vmatprep.subr.bf16.mxu0 %v4174
        %5671 = vmatpush1.bf16.msra.mxu0 %v4173
        %5672 = vmatprep.subr.bf16.mxu0 %v4176
        %5673 = vmatpush1.bf16.msra.mxu0 %v4175
        %5674 = vmatprep.subr.bf16.mxu0 %v4178
        %5675 = vmatpush1.bf16.msra.mxu0 %v4177
        %5676 = vmatprep.subr.bf16.mxu0 %v4180
        %5677 = vmatpush1.bf16.msra.mxu0 %v4179
        %5678 = vmatprep.mubr.bf16.mxu0 %v1768
        %5679 = vmatmul.mubr.bf16.gmra.mrb[0].mxu0 %v1767
        %v5680 = vpop.f32.mrb[0].mxu0
        %v5681 = vadd.f32 %v5580, %v5680
        %v5682 = vpop.f32.mrb[0].mxu0
        %v5683 = vadd.f32 %v5582, %v5682
        %v5684 = vpop.f32.mrb[0].mxu0
        %v5685 = vadd.f32 %v5584, %v5684
        %v5686 = vpop.f32.mrb[0].mxu0
        %v5687 = vadd.f32 %v5586, %v5686
        %5688 = vmatprep.mubr.bf16.mxu0 %v1804
        %5689 = vmatmul.mubr.bf16.gmra.mrb[0].mxu0 %v1803
        %v5690 = vpop.f32.mrb[0].mxu0
        %v5691 = vadd.f32 %v5590, %v5690
        %v5692 = vpop.f32.mrb[0].mxu0
        %v5693 = vadd.f32 %v5592, %v5692
        %v5694 = vpop.f32.mrb[0].mxu0
        %v5695 = vadd.f32 %v5594, %v5694
        %v5696 = vpop.f32.mrb[0].mxu0
        %v5697 = vadd.f32 %v5596, %v5696
        %5698 = vmatprep.mubr.bf16.mxu0 %v1840
        %5699 = vmatmul.mubr.bf16.gmra.mrb[0].mxu0 %v1839
        %v5700 = vpop.f32.mrb[0].mxu0
        %v5701 = vadd.f32 %v5600, %v5700
        %v5702 = vpop.f32.mrb[0].mxu0
        %v5703 = vadd.f32 %v5602, %v5702
        %v5704 = vpop.f32.mrb[0].mxu0
        %v5705 = vadd.f32 %v5604, %v5704
        %v5706 = vpop.f32.mrb[0].mxu0
        %v5707 = vadd.f32 %v5606, %v5706
        %5708 = vmatprep.mubr.bf16.mxu0 %v1876
        %5709 = vmatmul.mubr.bf16.gmra.mrb[0].mxu0 %v1875
        %v5710 = vpop.f32.mrb[0].mxu0
        %v5711 = vadd.f32 %v5610, %v5710
        %v5712 = vpop.f32.mrb[0].mxu0
        %v5713 = vadd.f32 %v5612, %v5712
        %v5714 = vpop.f32.mrb[0].mxu0
        %v5715 = vadd.f32 %v5614, %v5714
        %v5716 = vpop.f32.mrb[0].mxu0
        %v5717 = vadd.f32 %v5616, %v5716
        %5718 = vmatprep.mubr.bf16.mxu0 %v1912
        %5719 = vmatmul.mubr.bf16.gmra.mrb[0].mxu0 %v1911
        %v5720 = vpop.f32.mrb[0].mxu0
        %v5721 = vadd.f32 %v5620, %v5720
        %v5722 = vpop.f32.mrb[0].mxu0
        %v5723 = vadd.f32 %v5622, %v5722
        %v5724 = vpop.f32.mrb[0].mxu0
        %v5725 = vadd.f32 %v5624, %v5724
        %v5726 = vpop.f32.mrb[0].mxu0
        %v5727 = vadd.f32 %v5626, %v5726
        %5728 = vmatprep.mubr.bf16.mxu0 %v1948
        %5729 = vmatmul.mubr.bf16.gmra.mrb[0].mxu0 %v1947
        %v5730 = vpop.f32.mrb[0].mxu0
        %v5731 = vadd.f32 %v5630, %v5730
        %v5732 = vpop.f32.mrb[0].mxu0
        %v5733 = vadd.f32 %v5632, %v5732
        %v5734 = vpop.f32.mrb[0].mxu0
        %v5735 = vadd.f32 %v5634, %v5734
        %v5736 = vpop.f32.mrb[0].mxu0
        %v5737 = vadd.f32 %v5636, %v5736
        %5738 = vmatprep.mubr.bf16.mxu0 %v1984
        %5739 = vmatmul.mubr.bf16.gmra.mrb[0].mxu0 %v1983
        %v5740 = vpop.f32.mrb[0].mxu0
        %v5741 = vadd.f32 %v5640, %v5740
        %v5742 = vpop.f32.mrb[0].mxu0
        %v5743 = vadd.f32 %v5642, %v5742
        %v5744 = vpop.f32.mrb[0].mxu0
        %v5745 = vpop.f32.mrb[0].mxu0
        %5746 = vdwg.mxu0
        %5747 = vmatprep.subr.bf16.mxu0 %v4182
        %5748 = vmatpush1.bf16.msra.mxu0 %v4181
        %5749 = vmatprep.subr.bf16.mxu0 %v4184
        %5750 = vmatpush1.bf16.msra.mxu0 %v4183
        %5751 = vmatprep.subr.bf16.mxu0 %v4186
        %5752 = vmatpush1.bf16.msra.mxu0 %v4185
        %5753 = vmatprep.subr.bf16.mxu0 %v4188
        %5754 = vmatpush1.bf16.msra.mxu0 %v4187
        %5755 = vmatprep.subr.bf16.mxu0 %v4190
        %5756 = vmatpush1.bf16.msra.mxu0 %v4189
        %5757 = vmatprep.subr.bf16.mxu0 %v4192
        %5758 = vmatpush1.bf16.msra.mxu0 %v4191
        %5759 = vmatprep.subr.bf16.mxu0 %v4194
        %5760 = vmatpush1.bf16.msra.mxu0 %v4193
        %5761 = vmatprep.subr.bf16.mxu0 %v4196
        %5762 = vmatpush1.bf16.msra.mxu0 %v4195
        %5763 = vmatprep.subr.bf16.mxu0 %v4198
        %5764 = vmatpush1.bf16.msra.mxu0 %v4197
        %5765 = vmatprep.subr.bf16.mxu0 %v4200
        %5766 = vmatpush1.bf16.msra.mxu0 %v4199
        %5767 = vmatprep.subr.bf16.mxu0 %v4202
        %5768 = vmatpush1.bf16.msra.mxu0 %v4201
        %5769 = vmatprep.subr.bf16.mxu0 %v4204
        %5770 = vmatpush1.bf16.msra.mxu0 %v4203
        %5771 = vmatprep.subr.bf16.mxu0 %v4206
        %5772 = vmatpush1.bf16.msra.mxu0 %v4205
        %5773 = vmatprep.subr.bf16.mxu0 %v4208
        %5774 = vmatpush1.bf16.msra.mxu0 %v4207
        %5775 = vmatprep.subr.bf16.mxu0 %v4210
        %5776 = vmatpush1.bf16.msra.mxu0 %v4209
        %5777 = vmatprep.subr.bf16.mxu0 %v4212
        %5778 = vmatpush1.bf16.msra.mxu0 %v4211
        %5779 = vmatprep.mubr.bf16.mxu0 %v1770
        %5780 = vmatmul.mubr.bf16.gmra.mrb[0].mxu0 %v1769
        %v5781 = vpop.f32.mrb[0].mxu0
        %v5782 = vadd.f32 %v5681, %v5781
        %v5783 = vpop.f32.mrb[0].mxu0
        %v5784 = vadd.f32 %v5683, %v5783
        %v5785 = vpop.f32.mrb[0].mxu0
        %v5786 = vadd.f32 %v5685, %v5785
        %v5787 = vpop.f32.mrb[0].mxu0
        %v5788 = vadd.f32 %v5687, %v5787
        %5789 = vmatprep.mubr.bf16.mxu0 %v1806
        %5790 = vmatmul.mubr.bf16.gmra.mrb[0].mxu0 %v1805
        %v5791 = vpop.f32.mrb[0].mxu0
        %v5792 = vadd.f32 %v5691, %v5791
        %v5793 = vpop.f32.mrb[0].mxu0
        %v5794 = vadd.f32 %v5693, %v5793
        %v5795 = vpop.f32.mrb[0].mxu0
        %v5796 = vadd.f32 %v5695, %v5795
        %v5797 = vpop.f32.mrb[0].mxu0
        %v5798 = vadd.f32 %v5697, %v5797
        %5799 = vmatprep.mubr.bf16.mxu0 %v1842
        %5800 = vmatmul.mubr.bf16.gmra.mrb[0].mxu0 %v1841
        %v5801 = vpop.f32.mrb[0].mxu0
        %v5802 = vadd.f32 %v5701, %v5801
        %v5803 = vpop.f32.mrb[0].mxu0
        %v5804 = vadd.f32 %v5703, %v5803
        %v5805 = vpop.f32.mrb[0].mxu0
        %v5806 = vadd.f32 %v5705, %v5805
        %v5807 = vpop.f32.mrb[0].mxu0
        %v5808 = vadd.f32 %v5707, %v5807
        %5809 = vmatprep.mubr.bf16.mxu0 %v1878
        %5810 = vmatmul.mubr.bf16.gmra.mrb[0].mxu0 %v1877
        %v5811 = vpop.f32.mrb[0].mxu0
        %v5812 = vadd.f32 %v5711, %v5811
        %v5813 = vpop.f32.mrb[0].mxu0
        %v5814 = vadd.f32 %v5713, %v5813
        %v5815 = vpop.f32.mrb[0].mxu0
        %v5816 = vadd.f32 %v5715, %v5815
        %v5817 = vpop.f32.mrb[0].mxu0
        %v5818 = vadd.f32 %v5717, %v5817
        %5819 = vmatprep.mubr.bf16.mxu0 %v1914
        %5820 = vmatmul.mubr.bf16.gmra.mrb[0].mxu0 %v1913
        %v5821 = vpop.f32.mrb[0].mxu0
        %v5822 = vadd.f32 %v5721, %v5821
        %v5823 = vpop.f32.mrb[0].mxu0
        %v5824 = vadd.f32 %v5723, %v5823
        %v5825 = vpop.f32.mrb[0].mxu0
        %v5826 = vadd.f32 %v5725, %v5825
        %v5827 = vpop.f32.mrb[0].mxu0
        %v5828 = vadd.f32 %v5727, %v5827
        %5829 = vmatprep.mubr.bf16.mxu0 %v1950
        %5830 = vmatmul.mubr.bf16.gmra.mrb[0].mxu0 %v1949
        %v5831 = vpop.f32.mrb[0].mxu0
        %v5832 = vadd.f32 %v5731, %v5831
        %v5833 = vpop.f32.mrb[0].mxu0
        %v5834 = vadd.f32 %v5733, %v5833
        %v5835 = vpop.f32.mrb[0].mxu0
        %v5836 = vadd.f32 %v5735, %v5835
        %v5837 = vpop.f32.mrb[0].mxu0
        %v5838 = vadd.f32 %v5737, %v5837
        %5839 = vmatprep.mubr.bf16.mxu0 %v1986
        %5840 = vmatmul.mubr.bf16.gmra.mrb[0].mxu0 %v1985
        %v5841 = vpop.f32.mrb[0].mxu0
        %v5842 = vadd.f32 %v5741, %v5841
        %v5843 = vpop.f32.mrb[0].mxu0
        %v5844 = vadd.f32 %v5743, %v5843
        %v5845 = vpop.f32.mrb[0].mxu0
        %v5846 = vpop.f32.mrb[0].mxu0
        %5847 = vdwg.mxu0
        %5848 = vmatprep.subr.bf16.mxu0 %v4214
        %5849 = vmatpush1.bf16.msra.mxu0 %v4213
        %5850 = vmatprep.subr.bf16.mxu0 %v4216
        %5851 = vmatpush1.bf16.msra.mxu0 %v4215
        %5852 = vmatprep.subr.bf16.mxu0 %v4218
        %5853 = vmatpush1.bf16.msra.mxu0 %v4217
        %5854 = vmatprep.subr.bf16.mxu0 %v4220
        %5855 = vmatpush1.bf16.msra.mxu0 %v4219
        %5856 = vmatprep.subr.bf16.mxu0 %v4222
        %5857 = vmatpush1.bf16.msra.mxu0 %v4221
        %5858 = vmatprep.subr.bf16.mxu0 %v4224
        %5859 = vmatpush1.bf16.msra.mxu0 %v4223
        %5860 = vmatprep.subr.bf16.mxu0 %v4226
        %5861 = vmatpush1.bf16.msra.mxu0 %v4225
        %5862 = vmatprep.subr.bf16.mxu0 %v4228
        %5863 = vmatpush1.bf16.msra.mxu0 %v4227
        %5864 = vmatprep.subr.bf16.mxu0 %v4230
        %5865 = vmatpush1.bf16.msra.mxu0 %v4229
        %5866 = vmatprep.subr.bf16.mxu0 %v4232
        %5867 = vmatpush1.bf16.msra.mxu0 %v4231
        %5868 = vmatprep.subr.bf16.mxu0 %v4234
        %5869 = vmatpush1.bf16.msra.mxu0 %v4233
        %5870 = vmatprep.subr.bf16.mxu0 %v4236
        %5871 = vmatpush1.bf16.msra.mxu0 %v4235
        %5872 = vmatprep.subr.bf16.mxu0 %v4238
        %5873 = vmatpush1.bf16.msra.mxu0 %v4237
        %5874 = vmatprep.subr.bf16.mxu0 %v4240
        %5875 = vmatpush1.bf16.msra.mxu0 %v4239
        %5876 = vmatprep.subr.bf16.mxu0 %v4242
        %5877 = vmatpush1.bf16.msra.mxu0 %v4241
        %5878 = vmatprep.subr.bf16.mxu0 %v4244
        %5879 = vmatpush1.bf16.msra.mxu0 %v4243
        %5880 = vmatprep.mubr.bf16.mxu0 %v1772
        %5881 = vmatmul.mubr.bf16.gmra.mrb[0].mxu0 %v1771
        %v5882 = vpop.f32.mrb[0].mxu0
        %v5883 = vadd.f32 %v5782, %v5882
        %v5884 = vpop.f32.mrb[0].mxu0
        %v5885 = vadd.f32 %v5784, %v5884
        %v5886 = vpop.f32.mrb[0].mxu0
        %v5887 = vadd.f32 %v5786, %v5886
        %v5888 = vpop.f32.mrb[0].mxu0
        %v5889 = vadd.f32 %v5788, %v5888
        %5890 = vmatprep.mubr.bf16.mxu0 %v1808
        %5891 = vmatmul.mubr.bf16.gmra.mrb[0].mxu0 %v1807
        %v5892 = vpop.f32.mrb[0].mxu0
        %v5893 = vadd.f32 %v5792, %v5892
        %v5894 = vpop.f32.mrb[0].mxu0
        %v5895 = vadd.f32 %v5794, %v5894
        %v5896 = vpop.f32.mrb[0].mxu0
        %v5897 = vadd.f32 %v5796, %v5896
        %v5898 = vpop.f32.mrb[0].mxu0
        %v5899 = vadd.f32 %v5798, %v5898
        %5900 = vmatprep.mubr.bf16.mxu0 %v1844
        %5901 = vmatmul.mubr.bf16.gmra.mrb[0].mxu0 %v1843
        %v5902 = vpop.f32.mrb[0].mxu0
        %v5903 = vadd.f32 %v5802, %v5902
        %v5904 = vpop.f32.mrb[0].mxu0
        %v5905 = vadd.f32 %v5804, %v5904
        %v5906 = vpop.f32.mrb[0].mxu0
        %v5907 = vadd.f32 %v5806, %v5906
        %v5908 = vpop.f32.mrb[0].mxu0
        %v5909 = vadd.f32 %v5808, %v5908
        %5910 = vmatprep.mubr.bf16.mxu0 %v1880
        %5911 = vmatmul.mubr.bf16.gmra.mrb[0].mxu0 %v1879
        %v5912 = vpop.f32.mrb[0].mxu0
        %v5913 = vadd.f32 %v5812, %v5912
        %v5914 = vpop.f32.mrb[0].mxu0
        %v5915 = vadd.f32 %v5814, %v5914
        %v5916 = vpop.f32.mrb[0].mxu0
        %v5917 = vadd.f32 %v5816, %v5916
        %v5918 = vpop.f32.mrb[0].mxu0
        %v5919 = vadd.f32 %v5818, %v5918
        %5920 = vmatprep.mubr.bf16.mxu0 %v1916
        %5921 = vmatmul.mubr.bf16.gmra.mrb[0].mxu0 %v1915
        %v5922 = vpop.f32.mrb[0].mxu0
        %v5923 = vadd.f32 %v5822, %v5922
        %v5924 = vpop.f32.mrb[0].mxu0
        %v5925 = vadd.f32 %v5824, %v5924
        %v5926 = vpop.f32.mrb[0].mxu0
        %v5927 = vadd.f32 %v5826, %v5926
        %v5928 = vpop.f32.mrb[0].mxu0
        %v5929 = vadd.f32 %v5828, %v5928
        %5930 = vmatprep.mubr.bf16.mxu0 %v1952
        %5931 = vmatmul.mubr.bf16.gmra.mrb[0].mxu0 %v1951
        %v5932 = vpop.f32.mrb[0].mxu0
        %v5933 = vadd.f32 %v5832, %v5932
        %v5934 = vpop.f32.mrb[0].mxu0
        %v5935 = vadd.f32 %v5834, %v5934
        %v5936 = vpop.f32.mrb[0].mxu0
        %v5937 = vadd.f32 %v5836, %v5936
        %v5938 = vpop.f32.mrb[0].mxu0
        %v5939 = vadd.f32 %v5838, %v5938
        %5940 = vmatprep.mubr.bf16.mxu0 %v1988
        %5941 = vmatmul.mubr.bf16.gmra.mrb[0].mxu0 %v1987
        %v5942 = vpop.f32.mrb[0].mxu0
        %v5943 = vadd.f32 %v5842, %v5942
        %v5944 = vpop.f32.mrb[0].mxu0
        %v5945 = vadd.f32 %v5844, %v5944
        %v5946 = vpop.f32.mrb[0].mxu0
        %v5947 = vpop.f32.mrb[0].mxu0
        %5948 = vdwg.mxu0
        %5949 = vmatprep.subr.bf16.mxu0 %v4246
        %5950 = vmatpush1.bf16.msra.mxu0 %v4245
        %5951 = vmatprep.subr.bf16.mxu0 %v4248
        %5952 = vmatpush1.bf16.msra.mxu0 %v4247
        %5953 = vmatprep.subr.bf16.mxu0 %v4250
        %5954 = vmatpush1.bf16.msra.mxu0 %v4249
        %5955 = vmatprep.subr.bf16.mxu0 %v4252
        %5956 = vmatpush1.bf16.msra.mxu0 %v4251
        %5957 = vmatprep.subr.bf16.mxu0 %v4254
        %5958 = vmatpush1.bf16.msra.mxu0 %v4253
        %5959 = vmatprep.subr.bf16.mxu0 %v4256
        %5960 = vmatpush1.bf16.msra.mxu0 %v4255
        %5961 = vmatprep.subr.bf16.mxu0 %v4258
        %5962 = vmatpush1.bf16.msra.mxu0 %v4257
        %5963 = vmatprep.subr.bf16.mxu0 %v4260
        %5964 = vmatpush1.bf16.msra.mxu0 %v4259
        %5965 = vmatprep.subr.bf16.mxu0 %v4262
        %5966 = vmatpush1.bf16.msra.mxu0 %v4261
        %5967 = vmatprep.subr.bf16.mxu0 %v4264
        %5968 = vmatpush1.bf16.msra.mxu0 %v4263
        %5969 = vmatprep.subr.bf16.mxu0 %v4266
        %5970 = vmatpush1.bf16.msra.mxu0 %v4265
        %5971 = vmatprep.subr.bf16.mxu0 %v4268
        %5972 = vmatpush1.bf16.msra.mxu0 %v4267
        %5973 = vmatprep.subr.bf16.mxu0 %v4270
        %5974 = vmatpush1.bf16.msra.mxu0 %v4269
        %5975 = vmatprep.subr.bf16.mxu0 %v4272
        %5976 = vmatpush1.bf16.msra.mxu0 %v4271
        %5977 = vmatprep.subr.bf16.mxu0 %v4274
        %5978 = vmatpush1.bf16.msra.mxu0 %v4273
        %5979 = vmatprep.subr.bf16.mxu0 %v4276
        %5980 = vmatpush1.bf16.msra.mxu0 %v4275
        %5981 = vmatprep.mubr.bf16.mxu0 %v1774
        %5982 = vmatmul.mubr.bf16.gmra.mrb[0].mxu0 %v1773
        %v5983 = vpop.f32.mrb[0].mxu0
        %v5984 = vadd.f32 %v5883, %v5983
        %v5985 = vpop.f32.mrb[0].mxu0
        %v5986 = vadd.f32 %v5885, %v5985
        %v5987 = vpop.f32.mrb[0].mxu0
        %v5988 = vadd.f32 %v5887, %v5987
        %v5989 = vpop.f32.mrb[0].mxu0
        %v5990 = vadd.f32 %v5889, %v5989
        %5991 = vmatprep.mubr.bf16.mxu0 %v1810
        %5992 = vmatmul.mubr.bf16.gmra.mrb[0].mxu0 %v1809
        %v5993 = vpop.f32.mrb[0].mxu0
        %v5994 = vadd.f32 %v5893, %v5993
        %v5995 = vpop.f32.mrb[0].mxu0
        %v5996 = vadd.f32 %v5895, %v5995
        %v5997 = vpop.f32.mrb[0].mxu0
        %v5998 = vadd.f32 %v5897, %v5997
        %v5999 = vpop.f32.mrb[0].mxu0
        %v6000 = vadd.f32 %v5899, %v5999
        %6001 = vmatprep.mubr.bf16.mxu0 %v1846
        %6002 = vmatmul.mubr.bf16.gmra.mrb[0].mxu0 %v1845
        %v6003 = vpop.f32.mrb[0].mxu0
        %v6004 = vadd.f32 %v5903, %v6003
        %v6005 = vpop.f32.mrb[0].mxu0
        %v6006 = vadd.f32 %v5905, %v6005
        %v6007 = vpop.f32.mrb[0].mxu0
        %v6008 = vadd.f32 %v5907, %v6007
        %v6009 = vpop.f32.mrb[0].mxu0
        %v6010 = vadd.f32 %v5909, %v6009
        %6011 = vmatprep.mubr.bf16.mxu0 %v1882
        %6012 = vmatmul.mubr.bf16.gmra.mrb[0].mxu0 %v1881
        %v6013 = vpop.f32.mrb[0].mxu0
        %v6014 = vadd.f32 %v5913, %v6013
        %v6015 = vpop.f32.mrb[0].mxu0
        %v6016 = vadd.f32 %v5915, %v6015
        %v6017 = vpop.f32.mrb[0].mxu0
        %v6018 = vadd.f32 %v5917, %v6017
        %v6019 = vpop.f32.mrb[0].mxu0
        %v6020 = vadd.f32 %v5919, %v6019
        %6021 = vmatprep.mubr.bf16.mxu0 %v1918
        %6022 = vmatmul.mubr.bf16.gmra.mrb[0].mxu0 %v1917
        %v6023 = vpop.f32.mrb[0].mxu0
        %v6024 = vadd.f32 %v5923, %v6023
        %v6025 = vpop.f32.mrb[0].mxu0
        %v6026 = vadd.f32 %v5925, %v6025
        %v6027 = vpop.f32.mrb[0].mxu0
        %v6028 = vadd.f32 %v5927, %v6027
        %v6029 = vpop.f32.mrb[0].mxu0
        %v6030 = vadd.f32 %v5929, %v6029
        %6031 = vmatprep.mubr.bf16.mxu0 %v1954
        %6032 = vmatmul.mubr.bf16.gmra.mrb[0].mxu0 %v1953
        %v6033 = vpop.f32.mrb[0].mxu0
        %v6034 = vadd.f32 %v5933, %v6033
        %v6035 = vpop.f32.mrb[0].mxu0
        %v6036 = vadd.f32 %v5935, %v6035
        %v6037 = vpop.f32.mrb[0].mxu0
        %v6038 = vadd.f32 %v5937, %v6037
        %v6039 = vpop.f32.mrb[0].mxu0
        %v6040 = vadd.f32 %v5939, %v6039
        %6041 = vmatprep.mubr.bf16.mxu0 %v1990
        %6042 = vmatmul.mubr.bf16.gmra.mrb[0].mxu0 %v1989
        %v6043 = vpop.f32.mrb[0].mxu0
        %v6044 = vadd.f32 %v5943, %v6043
        %v6045 = vpop.f32.mrb[0].mxu0
        %v6046 = vadd.f32 %v5945, %v6045
        %v6047 = vpop.f32.mrb[0].mxu0
        %v6048 = vpop.f32.mrb[0].mxu0
        %6049 = vdwg.mxu0
        %6050 = vmatprep.subr.bf16.mxu0 %v4278
        %6051 = vmatpush1.bf16.msra.mxu0 %v4277
        %6052 = vmatprep.subr.bf16.mxu0 %v4280
        %6053 = vmatpush1.bf16.msra.mxu0 %v4279
        %6054 = vmatprep.subr.bf16.mxu0 %v4282
        %6055 = vmatpush1.bf16.msra.mxu0 %v4281
        %6056 = vmatprep.subr.bf16.mxu0 %v4284
        %6057 = vmatpush1.bf16.msra.mxu0 %v4283
        %6058 = vmatprep.subr.bf16.mxu0 %v4286
        %6059 = vmatpush1.bf16.msra.mxu0 %v4285
        %6060 = vmatprep.subr.bf16.mxu0 %v4288
        %6061 = vmatpush1.bf16.msra.mxu0 %v4287
        %6062 = vmatprep.subr.bf16.mxu0 %v4290
        %6063 = vmatpush1.bf16.msra.mxu0 %v4289
        %6064 = vmatprep.subr.bf16.mxu0 %v4292
        %6065 = vmatpush1.bf16.msra.mxu0 %v4291
        %6066 = vmatprep.subr.bf16.mxu0 %v4294
        %6067 = vmatpush1.bf16.msra.mxu0 %v4293
        %6068 = vmatprep.subr.bf16.mxu0 %v4296
        %6069 = vmatpush1.bf16.msra.mxu0 %v4295
        %6070 = vmatprep.subr.bf16.mxu0 %v4298
        %6071 = vmatpush1.bf16.msra.mxu0 %v4297
        %6072 = vmatprep.subr.bf16.mxu0 %v4300
        %6073 = vmatpush1.bf16.msra.mxu0 %v4299
        %6074 = vmatprep.subr.bf16.mxu0 %v4302
        %6075 = vmatpush1.bf16.msra.mxu0 %v4301
        %6076 = vmatprep.subr.bf16.mxu0 %v4304
        %6077 = vmatpush1.bf16.msra.mxu0 %v4303
        %6078 = vmatprep.subr.bf16.mxu0 %v4306
        %6079 = vmatpush1.bf16.msra.mxu0 %v4305
        %6080 = vmatprep.subr.bf16.mxu0 %v4308
        %6081 = vmatpush1.bf16.msra.mxu0 %v4307
        %6082 = vmatprep.mubr.bf16.mxu0 %v1776
        %6083 = vmatmul.mubr.bf16.gmra.mrb[0].mxu0 %v1775
        %v6084 = vpop.f32.mrb[0].mxu0
        %v6085 = vadd.f32 %v5984, %v6084
        %v6086 = vpop.f32.mrb[0].mxu0
        %v6087 = vadd.f32 %v5986, %v6086
        %v6088 = vpop.f32.mrb[0].mxu0
        %v6089 = vadd.f32 %v5988, %v6088
        %v6090 = vpop.f32.mrb[0].mxu0
        %v6091 = vadd.f32 %v5990, %v6090
        %6092 = vmatprep.mubr.bf16.mxu0 %v1812
        %6093 = vmatmul.mubr.bf16.gmra.mrb[0].mxu0 %v1811
        %v6094 = vpop.f32.mrb[0].mxu0
        %v6095 = vadd.f32 %v5994, %v6094
        %v6096 = vpop.f32.mrb[0].mxu0
        %v6097 = vadd.f32 %v5996, %v6096
        %v6098 = vpop.f32.mrb[0].mxu0
        %v6099 = vadd.f32 %v5998, %v6098
        %v6100 = vpop.f32.mrb[0].mxu0
        %v6101 = vadd.f32 %v6000, %v6100
        %6102 = vmatprep.mubr.bf16.mxu0 %v1848
        %6103 = vmatmul.mubr.bf16.gmra.mrb[0].mxu0 %v1847
        %v6104 = vpop.f32.mrb[0].mxu0
        %v6105 = vadd.f32 %v6004, %v6104
        %v6106 = vpop.f32.mrb[0].mxu0
        %v6107 = vadd.f32 %v6006, %v6106
        %v6108 = vpop.f32.mrb[0].mxu0
        %v6109 = vadd.f32 %v6008, %v6108
        %v6110 = vpop.f32.mrb[0].mxu0
        %v6111 = vadd.f32 %v6010, %v6110
        %6112 = vmatprep.mubr.bf16.mxu0 %v1884
        %6113 = vmatmul.mubr.bf16.gmra.mrb[0].mxu0 %v1883
        %v6114 = vpop.f32.mrb[0].mxu0
        %v6115 = vadd.f32 %v6014, %v6114
        %v6116 = vpop.f32.mrb[0].mxu0
        %v6117 = vadd.f32 %v6016, %v6116
        %v6118 = vpop.f32.mrb[0].mxu0
        %v6119 = vadd.f32 %v6018, %v6118
        %v6120 = vpop.f32.mrb[0].mxu0
        %v6121 = vadd.f32 %v6020, %v6120
        %6122 = vmatprep.mubr.bf16.mxu0 %v1920
        %6123 = vmatmul.mubr.bf16.gmra.mrb[0].mxu0 %v1919
        %v6124 = vpop.f32.mrb[0].mxu0
        %v6125 = vadd.f32 %v6024, %v6124
        %v6126 = vpop.f32.mrb[0].mxu0
        %v6127 = vadd.f32 %v6026, %v6126
        %v6128 = vpop.f32.mrb[0].mxu0
        %v6129 = vadd.f32 %v6028, %v6128
        %v6130 = vpop.f32.mrb[0].mxu0
        %v6131 = vadd.f32 %v6030, %v6130
        %6132 = vmatprep.mubr.bf16.mxu0 %v1956
        %6133 = vmatmul.mubr.bf16.gmra.mrb[0].mxu0 %v1955
        %v6134 = vpop.f32.mrb[0].mxu0
        %v6135 = vadd.f32 %v6034, %v6134
        %v6136 = vpop.f32.mrb[0].mxu0
        %v6137 = vadd.f32 %v6036, %v6136
        %v6138 = vpop.f32.mrb[0].mxu0
        %v6139 = vadd.f32 %v6038, %v6138
        %v6140 = vpop.f32.mrb[0].mxu0
        %v6141 = vadd.f32 %v6040, %v6140
        %6142 = vmatprep.mubr.bf16.mxu0 %v1992
        %6143 = vmatmul.mubr.bf16.gmra.mrb[0].mxu0 %v1991
        %v6144 = vpop.f32.mrb[0].mxu0
        %v6145 = vadd.f32 %v6044, %v6144
        %v6146 = vpop.f32.mrb[0].mxu0
        %v6147 = vadd.f32 %v6046, %v6146
        %v6148 = vpop.f32.mrb[0].mxu0
        %v6149 = vpop.f32.mrb[0].mxu0
        %6150 = vdwg.mxu0
        %6151 = vmatprep.subr.bf16.mxu0 %v4310
        %6152 = vmatpush1.bf16.msra.mxu0 %v4309
        %6153 = vmatprep.subr.bf16.mxu0 %v4312
        %6154 = vmatpush1.bf16.msra.mxu0 %v4311
        %6155 = vmatprep.subr.bf16.mxu0 %v4314
        %6156 = vmatpush1.bf16.msra.mxu0 %v4313
        %6157 = vmatprep.subr.bf16.mxu0 %v4316
        %6158 = vmatpush1.bf16.msra.mxu0 %v4315
        %6159 = vmatprep.subr.bf16.mxu0 %v4318
        %6160 = vmatpush1.bf16.msra.mxu0 %v4317
        %6161 = vmatprep.subr.bf16.mxu0 %v4320
        %6162 = vmatpush1.bf16.msra.mxu0 %v4319
        %6163 = vmatprep.subr.bf16.mxu0 %v4322
        %6164 = vmatpush1.bf16.msra.mxu0 %v4321
        %6165 = vmatprep.subr.bf16.mxu0 %v4324
        %6166 = vmatpush1.bf16.msra.mxu0 %v4323
        %6167 = vmatprep.subr.bf16.mxu0 %v4326
        %6168 = vmatpush1.bf16.msra.mxu0 %v4325
        %6169 = vmatprep.subr.bf16.mxu0 %v4328
        %6170 = vmatpush1.bf16.msra.mxu0 %v4327
        %6171 = vmatprep.subr.bf16.mxu0 %v4330
        %6172 = vmatpush1.bf16.msra.mxu0 %v4329
        %6173 = vmatprep.subr.bf16.mxu0 %v4332
        %6174 = vmatpush1.bf16.msra.mxu0 %v4331
        %6175 = vmatprep.subr.bf16.mxu0 %v4334
        %6176 = vmatpush1.bf16.msra.mxu0 %v4333
        %6177 = vmatprep.subr.bf16.mxu0 %v4336
        %6178 = vmatpush1.bf16.msra.mxu0 %v4335
        %6179 = vmatprep.subr.bf16.mxu0 %v4338
        %6180 = vmatpush1.bf16.msra.mxu0 %v4337
        %6181 = vmatprep.subr.bf16.mxu0 %v4340
        %6182 = vmatpush1.bf16.msra.mxu0 %v4339
        %6183 = vmatprep.mubr.bf16.mxu0 %v1778
        %6184 = vmatmul.mubr.bf16.gmra.mrb[0].mxu0 %v1777
        %v6185 = vpop.f32.mrb[0].mxu0
        %v6186 = vadd.f32 %v6085, %v6185
        %v6187 = vpop.f32.mrb[0].mxu0
        %v6188 = vadd.f32 %v6087, %v6187
        %v6189 = vpop.f32.mrb[0].mxu0
        %v6190 = vadd.f32 %v6089, %v6189
        %v6191 = vpop.f32.mrb[0].mxu0
        %v6192 = vadd.f32 %v6091, %v6191
        %6193 = vmatprep.mubr.bf16.mxu0 %v1814
        %6194 = vmatmul.mubr.bf16.gmra.mrb[0].mxu0 %v1813
        %v6195 = vpop.f32.mrb[0].mxu0
        %v6196 = vadd.f32 %v6095, %v6195
        %v6197 = vpop.f32.mrb[0].mxu0
        %v6198 = vadd.f32 %v6097, %v6197
        %v6199 = vpop.f32.mrb[0].mxu0
        %v6200 = vadd.f32 %v6099, %v6199
        %v6201 = vpop.f32.mrb[0].mxu0
        %v6202 = vadd.f32 %v6101, %v6201
        %6203 = vmatprep.mubr.bf16.mxu0 %v1850
        %6204 = vmatmul.mubr.bf16.gmra.mrb[0].mxu0 %v1849
        %v6205 = vpop.f32.mrb[0].mxu0
        %v6206 = vadd.f32 %v6105, %v6205
        %v6207 = vpop.f32.mrb[0].mxu0
        %v6208 = vadd.f32 %v6107, %v6207
        %v6209 = vpop.f32.mrb[0].mxu0
        %v6210 = vadd.f32 %v6109, %v6209
        %v6211 = vpop.f32.mrb[0].mxu0
        %v6212 = vadd.f32 %v6111, %v6211
        %6213 = vmatprep.mubr.bf16.mxu0 %v1886
        %6214 = vmatmul.mubr.bf16.gmra.mrb[0].mxu0 %v1885
        %v6215 = vpop.f32.mrb[0].mxu0
        %v6216 = vadd.f32 %v6115, %v6215
        %v6217 = vpop.f32.mrb[0].mxu0
        %v6218 = vadd.f32 %v6117, %v6217
        %v6219 = vpop.f32.mrb[0].mxu0
        %v6220 = vadd.f32 %v6119, %v6219
        %v6221 = vpop.f32.mrb[0].mxu0
        %v6222 = vadd.f32 %v6121, %v6221
        %6223 = vmatprep.mubr.bf16.mxu0 %v1922
        %6224 = vmatmul.mubr.bf16.gmra.mrb[0].mxu0 %v1921
        %v6225 = vpop.f32.mrb[0].mxu0
        %v6226 = vadd.f32 %v6125, %v6225
        %v6227 = vpop.f32.mrb[0].mxu0
        %v6228 = vadd.f32 %v6127, %v6227
        %v6229 = vpop.f32.mrb[0].mxu0
        %v6230 = vadd.f32 %v6129, %v6229
        %v6231 = vpop.f32.mrb[0].mxu0
        %v6232 = vadd.f32 %v6131, %v6231
        %6233 = vmatprep.mubr.bf16.mxu0 %v1958
        %6234 = vmatmul.mubr.bf16.gmra.mrb[0].mxu0 %v1957
        %v6235 = vpop.f32.mrb[0].mxu0
        %v6236 = vadd.f32 %v6135, %v6235
        %v6237 = vpop.f32.mrb[0].mxu0
        %v6238 = vadd.f32 %v6137, %v6237
        %v6239 = vpop.f32.mrb[0].mxu0
        %v6240 = vadd.f32 %v6139, %v6239
        %v6241 = vpop.f32.mrb[0].mxu0
        %v6242 = vadd.f32 %v6141, %v6241
        %6243 = vmatprep.mubr.bf16.mxu0 %v1994
        %6244 = vmatmul.mubr.bf16.gmra.mrb[0].mxu0 %v1993
        %v6245 = vpop.f32.mrb[0].mxu0
        %v6246 = vadd.f32 %v6145, %v6245
        %v6247 = vpop.f32.mrb[0].mxu0
        %v6248 = vadd.f32 %v6147, %v6247
        %v6249 = vpop.f32.mrb[0].mxu0
        %v6250 = vpop.f32.mrb[0].mxu0
        %6251 = vdwg.mxu0
        %6252 = vmatprep.subr.bf16.mxu0 %v4342
        %6253 = vmatpush1.bf16.msra.mxu0 %v4341
        %6254 = vmatprep.subr.bf16.mxu0 %v4344
        %6255 = vmatpush1.bf16.msra.mxu0 %v4343
        %6256 = vmatprep.subr.bf16.mxu0 %v4346
        %6257 = vmatpush1.bf16.msra.mxu0 %v4345
        %6258 = vmatprep.subr.bf16.mxu0 %v4348
        %6259 = vmatpush1.bf16.msra.mxu0 %v4347
        %6260 = vmatprep.subr.bf16.mxu0 %v4350
        %6261 = vmatpush1.bf16.msra.mxu0 %v4349
        %6262 = vmatprep.subr.bf16.mxu0 %v4352
        %6263 = vmatpush1.bf16.msra.mxu0 %v4351
        %6264 = vmatprep.subr.bf16.mxu0 %v4354
        %6265 = vmatpush1.bf16.msra.mxu0 %v4353
        %6266 = vmatprep.subr.bf16.mxu0 %v4356
        %6267 = vmatpush1.bf16.msra.mxu0 %v4355
        %6268 = vmatprep.subr.bf16.mxu0 %v4358
        %6269 = vmatpush1.bf16.msra.mxu0 %v4357
        %6270 = vmatprep.subr.bf16.mxu0 %v4360
        %6271 = vmatpush1.bf16.msra.mxu0 %v4359
        %6272 = vmatprep.subr.bf16.mxu0 %v4362
        %6273 = vmatpush1.bf16.msra.mxu0 %v4361
        %6274 = vmatprep.subr.bf16.mxu0 %v4364
        %6275 = vmatpush1.bf16.msra.mxu0 %v4363
        %6276 = vmatprep.subr.bf16.mxu0 %v4366
        %6277 = vmatpush1.bf16.msra.mxu0 %v4365
        %6278 = vmatprep.subr.bf16.mxu0 %v4368
        %6279 = vmatpush1.bf16.msra.mxu0 %v4367
        %6280 = vmatprep.subr.bf16.mxu0 %v4370
        %6281 = vmatpush1.bf16.msra.mxu0 %v4369
        %6282 = vmatprep.subr.bf16.mxu0 %v4372
        %6283 = vmatpush1.bf16.msra.mxu0 %v4371
        %6284 = vmatprep.mubr.bf16.mxu0 %v1780
        %6285 = vmatmul.mubr.bf16.gmra.mrb[0].mxu0 %v1779
        %v6286 = vpop.f32.mrb[0].mxu0
        %v6287 = vadd.f32 %v6186, %v6286
        %v6288 = vpop.f32.mrb[0].mxu0
        %v6289 = vadd.f32 %v6188, %v6288
        %v6290 = vpop.f32.mrb[0].mxu0
        %v6291 = vadd.f32 %v6190, %v6290
        %v6292 = vpop.f32.mrb[0].mxu0
        %v6293 = vadd.f32 %v6192, %v6292
        %6294 = vmatprep.mubr.bf16.mxu0 %v1816
        %6295 = vmatmul.mubr.bf16.gmra.mrb[0].mxu0 %v1815
        %v6296 = vpop.f32.mrb[0].mxu0
        %v6297 = vadd.f32 %v6196, %v6296
        %v6298 = vpop.f32.mrb[0].mxu0
        %v6299 = vadd.f32 %v6198, %v6298
        %v6300 = vpop.f32.mrb[0].mxu0
        %v6301 = vadd.f32 %v6200, %v6300
        %v6302 = vpop.f32.mrb[0].mxu0
        %v6303 = vadd.f32 %v6202, %v6302
        %6304 = vmatprep.mubr.bf16.mxu0 %v1852
        %6305 = vmatmul.mubr.bf16.gmra.mrb[0].mxu0 %v1851
        %v6306 = vpop.f32.mrb[0].mxu0
        %v6307 = vadd.f32 %v6206, %v6306
        %v6308 = vpop.f32.mrb[0].mxu0
        %v6309 = vadd.f32 %v6208, %v6308
        %v6310 = vpop.f32.mrb[0].mxu0
        %v6311 = vadd.f32 %v6210, %v6310
        %v6312 = vpop.f32.mrb[0].mxu0
        %v6313 = vadd.f32 %v6212, %v6312
        %6314 = vmatprep.mubr.bf16.mxu0 %v1888
        %6315 = vmatmul.mubr.bf16.gmra.mrb[0].mxu0 %v1887
        %v6316 = vpop.f32.mrb[0].mxu0
        %v6317 = vadd.f32 %v6216, %v6316
        %v6318 = vpop.f32.mrb[0].mxu0
        %v6319 = vadd.f32 %v6218, %v6318
        %v6320 = vpop.f32.mrb[0].mxu0
        %v6321 = vadd.f32 %v6220, %v6320
        %v6322 = vpop.f32.mrb[0].mxu0
        %v6323 = vadd.f32 %v6222, %v6322
        %6324 = vmatprep.mubr.bf16.mxu0 %v1924
        %6325 = vmatmul.mubr.bf16.gmra.mrb[0].mxu0 %v1923
        %v6326 = vpop.f32.mrb[0].mxu0
        %v6327 = vadd.f32 %v6226, %v6326
        %v6328 = vpop.f32.mrb[0].mxu0
        %v6329 = vadd.f32 %v6228, %v6328
        %v6330 = vpop.f32.mrb[0].mxu0
        %v6331 = vadd.f32 %v6230, %v6330
        %v6332 = vpop.f32.mrb[0].mxu0
        %v6333 = vadd.f32 %v6232, %v6332
        %6334 = vmatprep.mubr.bf16.mxu0 %v1960
        %6335 = vmatmul.mubr.bf16.gmra.mrb[0].mxu0 %v1959
        %v6336 = vpop.f32.mrb[0].mxu0
        %v6337 = vadd.f32 %v6236, %v6336
        %v6338 = vpop.f32.mrb[0].mxu0
        %v6339 = vadd.f32 %v6238, %v6338
        %v6340 = vpop.f32.mrb[0].mxu0
        %v6341 = vadd.f32 %v6240, %v6340
        %v6342 = vpop.f32.mrb[0].mxu0
        %v6343 = vadd.f32 %v6242, %v6342
        %6344 = vmatprep.mubr.bf16.mxu0 %v1996
        %6345 = vmatmul.mubr.bf16.gmra.mrb[0].mxu0 %v1995
        %v6346 = vpop.f32.mrb[0].mxu0
        %v6347 = vadd.f32 %v6246, %v6346
        %v6348 = vpop.f32.mrb[0].mxu0
        %v6349 = vadd.f32 %v6248, %v6348
        %v6350 = vpop.f32.mrb[0].mxu0
        %v6351 = vpop.f32.mrb[0].mxu0
        %6352 = vdwg.mxu0
        %6353 = vmatprep.subr.bf16.mxu0 %v4374
        %6354 = vmatpush1.bf16.msra.mxu0 %v4373
        %6355 = vmatprep.subr.bf16.mxu0 %v4376
        %6356 = vmatpush1.bf16.msra.mxu0 %v4375
        %6357 = vmatprep.subr.bf16.mxu0 %v4378
        %6358 = vmatpush1.bf16.msra.mxu0 %v4377
        %6359 = vmatprep.subr.bf16.mxu0 %v4380
        %6360 = vmatpush1.bf16.msra.mxu0 %v4379
        %6361 = vmatprep.subr.bf16.mxu0 %v4382
        %6362 = vmatpush1.bf16.msra.mxu0 %v4381
        %6363 = vmatprep.subr.bf16.mxu0 %v4384
        %6364 = vmatpush1.bf16.msra.mxu0 %v4383
        %6365 = vmatprep.subr.bf16.mxu0 %v4386
        %6366 = vmatpush1.bf16.msra.mxu0 %v4385
        %6367 = vmatprep.subr.bf16.mxu0 %v4388
        %6368 = vmatpush1.bf16.msra.mxu0 %v4387
        %6369 = vmatprep.subr.bf16.mxu0 %v4390
        %6370 = vmatpush1.bf16.msra.mxu0 %v4389
        %6371 = vmatprep.subr.bf16.mxu0 %v4392
        %6372 = vmatpush1.bf16.msra.mxu0 %v4391
        %6373 = vmatprep.subr.bf16.mxu0 %v4394
        %6374 = vmatpush1.bf16.msra.mxu0 %v4393
        %6375 = vmatprep.subr.bf16.mxu0 %v4396
        %6376 = vmatpush1.bf16.msra.mxu0 %v4395
        %6377 = vmatprep.subr.bf16.mxu0 %v4398
        %6378 = vmatpush1.bf16.msra.mxu0 %v4397
        %6379 = vmatprep.subr.bf16.mxu0 %v4400
        %6380 = vmatpush1.bf16.msra.mxu0 %v4399
        %6381 = vmatprep.subr.bf16.mxu0 %v4402
        %6382 = vmatpush1.bf16.msra.mxu0 %v4401
        %6383 = vmatprep.subr.bf16.mxu0 %v4404
        %6384 = vmatpush1.bf16.msra.mxu0 %v4403
        %6385 = vmatprep.mubr.bf16.mxu0 %v1782
        %6386 = vmatmul.mubr.bf16.gmra.mrb[0].mxu0 %v1781
        %v6387 = vpop.f32.mrb[0].mxu0
        %v6388 = vadd.f32 %v6287, %v6387
        %v6389 = vpop.f32.mrb[0].mxu0
        %v6390 = vadd.f32 %v6289, %v6389
        %v6391 = vpop.f32.mrb[0].mxu0
        %v6392 = vadd.f32 %v6291, %v6391
        %v6393 = vpop.f32.mrb[0].mxu0
        %v6394 = vadd.f32 %v6293, %v6393
        %6395 = vmatprep.mubr.bf16.mxu0 %v1818
        %6396 = vmatmul.mubr.bf16.gmra.mrb[0].mxu0 %v1817
        %v6397 = vpop.f32.mrb[0].mxu0
        %v6398 = vadd.f32 %v6297, %v6397
        %v6399 = vpop.f32.mrb[0].mxu0
        %v6400 = vadd.f32 %v6299, %v6399
        %v6401 = vpop.f32.mrb[0].mxu0
        %v6402 = vadd.f32 %v6301, %v6401
        %v6403 = vpop.f32.mrb[0].mxu0
        %v6404 = vadd.f32 %v6303, %v6403
        %6405 = vmatprep.mubr.bf16.mxu0 %v1854
        %6406 = vmatmul.mubr.bf16.gmra.mrb[0].mxu0 %v1853
        %v6407 = vpop.f32.mrb[0].mxu0
        %v6408 = vadd.f32 %v6307, %v6407
        %v6409 = vpop.f32.mrb[0].mxu0
        %v6410 = vadd.f32 %v6309, %v6409
        %v6411 = vpop.f32.mrb[0].mxu0
        %v6412 = vadd.f32 %v6311, %v6411
        %v6413 = vpop.f32.mrb[0].mxu0
        %v6414 = vadd.f32 %v6313, %v6413
        %6415 = vmatprep.mubr.bf16.mxu0 %v1890
        %6416 = vmatmul.mubr.bf16.gmra.mrb[0].mxu0 %v1889
        %v6417 = vpop.f32.mrb[0].mxu0
        %v6418 = vadd.f32 %v6317, %v6417
        %v6419 = vpop.f32.mrb[0].mxu0
        %v6420 = vadd.f32 %v6319, %v6419
        %v6421 = vpop.f32.mrb[0].mxu0
        %v6422 = vadd.f32 %v6321, %v6421
        %v6423 = vpop.f32.mrb[0].mxu0
        %v6424 = vadd.f32 %v6323, %v6423
        %6425 = vmatprep.mubr.bf16.mxu0 %v1926
        %6426 = vmatmul.mubr.bf16.gmra.mrb[0].mxu0 %v1925
        %v6427 = vpop.f32.mrb[0].mxu0
        %v6428 = vadd.f32 %v6327, %v6427
        %v6429 = vpop.f32.mrb[0].mxu0
        %v6430 = vadd.f32 %v6329, %v6429
        %v6431 = vpop.f32.mrb[0].mxu0
        %v6432 = vadd.f32 %v6331, %v6431
        %v6433 = vpop.f32.mrb[0].mxu0
        %v6434 = vadd.f32 %v6333, %v6433
        %6435 = vmatprep.mubr.bf16.mxu0 %v1962
        %6436 = vmatmul.mubr.bf16.gmra.mrb[0].mxu0 %v1961
        %v6437 = vpop.f32.mrb[0].mxu0
        %v6438 = vadd.f32 %v6337, %v6437
        %v6439 = vpop.f32.mrb[0].mxu0
        %v6440 = vadd.f32 %v6339, %v6439
        %v6441 = vpop.f32.mrb[0].mxu0
        %v6442 = vadd.f32 %v6341, %v6441
        %v6443 = vpop.f32.mrb[0].mxu0
        %v6444 = vadd.f32 %v6343, %v6443
        %6445 = vmatprep.mubr.bf16.mxu0 %v1998
        %6446 = vmatmul.mubr.bf16.gmra.mrb[0].mxu0 %v1997
        %v6447 = vpop.f32.mrb[0].mxu0
        %v6448 = vadd.f32 %v6347, %v6447
        %v6449 = vpop.f32.mrb[0].mxu0
        %v6450 = vadd.f32 %v6349, %v6449
        %v6451 = vpop.f32.mrb[0].mxu0
        %v6452 = vpop.f32.mrb[0].mxu0
        %6453 = vdwg.mxu0
        %6454 = vmatprep.subr.bf16.mxu0 %v4406
        %6455 = vmatpush1.bf16.msra.mxu0 %v4405
        %6456 = vmatprep.subr.bf16.mxu0 %v4408
        %6457 = vmatpush1.bf16.msra.mxu0 %v4407
        %6458 = vmatprep.subr.bf16.mxu0 %v4410
        %6459 = vmatpush1.bf16.msra.mxu0 %v4409
        %6460 = vmatprep.subr.bf16.mxu0 %v4412
        %6461 = vmatpush1.bf16.msra.mxu0 %v4411
        %6462 = vmatprep.subr.bf16.mxu0 %v4414
        %6463 = vmatpush1.bf16.msra.mxu0 %v4413
        %6464 = vmatprep.subr.bf16.mxu0 %v4416
        %6465 = vmatpush1.bf16.msra.mxu0 %v4415
        %6466 = vmatprep.subr.bf16.mxu0 %v4418
        %6467 = vmatpush1.bf16.msra.mxu0 %v4417
        %6468 = vmatprep.subr.bf16.mxu0 %v4420
        %6469 = vmatpush1.bf16.msra.mxu0 %v4419
        %6470 = vmatprep.subr.bf16.mxu0 %v4422
        %6471 = vmatpush1.bf16.msra.mxu0 %v4421
        %6472 = vmatprep.subr.bf16.mxu0 %v4424
        %6473 = vmatpush1.bf16.msra.mxu0 %v4423
        %6474 = vmatprep.subr.bf16.mxu0 %v4426
        %6475 = vmatpush1.bf16.msra.mxu0 %v4425
        %6476 = vmatprep.subr.bf16.mxu0 %v4428
        %6477 = vmatpush1.bf16.msra.mxu0 %v4427
        %6478 = vmatprep.subr.bf16.mxu0 %v4430
        %6479 = vmatpush1.bf16.msra.mxu0 %v4429
        %6480 = vmatprep.subr.bf16.mxu0 %v4432
        %6481 = vmatpush1.bf16.msra.mxu0 %v4431
        %6482 = vmatprep.subr.bf16.mxu0 %v4434
        %6483 = vmatpush1.bf16.msra.mxu0 %v4433
        %6484 = vmatprep.subr.bf16.mxu0 %v4436
        %6485 = vmatpush1.bf16.msra.mxu0 %v4435
        %6486 = vmatprep.mubr.bf16.mxu0 %v1784
        %6487 = vmatmul.mubr.bf16.gmra.mrb[0].mxu0 %v1783
        %v6488 = vpop.f32.mrb[0].mxu0
        %v6489 = vadd.f32 %v6388, %v6488
        %v6490 = vpop.f32.mrb[0].mxu0
        %v6491 = vadd.f32 %v6390, %v6490
        %v6492 = vpop.f32.mrb[0].mxu0
        %v6493 = vadd.f32 %v6392, %v6492
        %v6494 = vpop.f32.mrb[0].mxu0
        %v6495 = vadd.f32 %v6394, %v6494
        %6496 = vmatprep.mubr.bf16.mxu0 %v1820
        %6497 = vmatmul.mubr.bf16.gmra.mrb[0].mxu0 %v1819
        %v6498 = vpop.f32.mrb[0].mxu0
        %v6499 = vadd.f32 %v6398, %v6498
        %v6500 = vpop.f32.mrb[0].mxu0
        %v6501 = vadd.f32 %v6400, %v6500
        %v6502 = vpop.f32.mrb[0].mxu0
        %v6503 = vadd.f32 %v6402, %v6502
        %v6504 = vpop.f32.mrb[0].mxu0
        %v6505 = vadd.f32 %v6404, %v6504
        %6506 = vmatprep.mubr.bf16.mxu0 %v1856
        %6507 = vmatmul.mubr.bf16.gmra.mrb[0].mxu0 %v1855
        %v6508 = vpop.f32.mrb[0].mxu0
        %v6509 = vadd.f32 %v6408, %v6508
        %v6510 = vpop.f32.mrb[0].mxu0
        %v6511 = vadd.f32 %v6410, %v6510
        %v6512 = vpop.f32.mrb[0].mxu0
        %v6513 = vadd.f32 %v6412, %v6512
        %v6514 = vpop.f32.mrb[0].mxu0
        %v6515 = vadd.f32 %v6414, %v6514
        %6516 = vmatprep.mubr.bf16.mxu0 %v1892
        %6517 = vmatmul.mubr.bf16.gmra.mrb[0].mxu0 %v1891
        %v6518 = vpop.f32.mrb[0].mxu0
        %v6519 = vadd.f32 %v6418, %v6518
        %v6520 = vpop.f32.mrb[0].mxu0
        %v6521 = vadd.f32 %v6420, %v6520
        %v6522 = vpop.f32.mrb[0].mxu0
        %v6523 = vadd.f32 %v6422, %v6522
        %v6524 = vpop.f32.mrb[0].mxu0
        %v6525 = vadd.f32 %v6424, %v6524
        %6526 = vmatprep.mubr.bf16.mxu0 %v1928
        %6527 = vmatmul.mubr.bf16.gmra.mrb[0].mxu0 %v1927
        %v6528 = vpop.f32.mrb[0].mxu0
        %v6529 = vadd.f32 %v6428, %v6528
        %v6530 = vpop.f32.mrb[0].mxu0
        %v6531 = vadd.f32 %v6430, %v6530
        %v6532 = vpop.f32.mrb[0].mxu0
        %v6533 = vadd.f32 %v6432, %v6532
        %v6534 = vpop.f32.mrb[0].mxu0
        %v6535 = vadd.f32 %v6434, %v6534
        %6536 = vmatprep.mubr.bf16.mxu0 %v1964
        %6537 = vmatmul.mubr.bf16.gmra.mrb[0].mxu0 %v1963
        %v6538 = vpop.f32.mrb[0].mxu0
        %v6539 = vadd.f32 %v6438, %v6538
        %v6540 = vpop.f32.mrb[0].mxu0
        %v6541 = vadd.f32 %v6440, %v6540
        %v6542 = vpop.f32.mrb[0].mxu0
        %v6543 = vadd.f32 %v6442, %v6542
        %v6544 = vpop.f32.mrb[0].mxu0
        %v6545 = vadd.f32 %v6444, %v6544
        %6546 = vmatprep.mubr.bf16.mxu0 %v2000
        %6547 = vmatmul.mubr.bf16.gmra.mrb[0].mxu0 %v1999
        %v6548 = vpop.f32.mrb[0].mxu0
        %v6549 = vadd.f32 %v6448, %v6548
        %v6550 = vpop.f32.mrb[0].mxu0
        %v6551 = vadd.f32 %v6450, %v6550
        %v6552 = vpop.f32.mrb[0].mxu0
        %v6553 = vpop.f32.mrb[0].mxu0
        %6554 = vdwg.mxu0
        %6555 = vmatprep.subr.bf16.mxu0 %v4438
        %6556 = vmatpush1.bf16.msra.mxu0 %v4437
        %6557 = vmatprep.subr.bf16.mxu0 %v4440
        %6558 = vmatpush1.bf16.msra.mxu0 %v4439
        %6559 = vmatprep.subr.bf16.mxu0 %v4442
        %6560 = vmatpush1.bf16.msra.mxu0 %v4441
        %6561 = vmatprep.subr.bf16.mxu0 %v4444
        %6562 = vmatpush1.bf16.msra.mxu0 %v4443
        %6563 = vmatprep.subr.bf16.mxu0 %v4446
        %6564 = vmatpush1.bf16.msra.mxu0 %v4445
        %6565 = vmatprep.subr.bf16.mxu0 %v4448
        %6566 = vmatpush1.bf16.msra.mxu0 %v4447
        %6567 = vmatprep.subr.bf16.mxu0 %v4450
        %6568 = vmatpush1.bf16.msra.mxu0 %v4449
        %6569 = vmatprep.subr.bf16.mxu0 %v4452
        %6570 = vmatpush1.bf16.msra.mxu0 %v4451
        %6571 = vmatprep.subr.bf16.mxu0 %v4454
        %6572 = vmatpush1.bf16.msra.mxu0 %v4453
        %6573 = vmatprep.subr.bf16.mxu0 %v4456
        %6574 = vmatpush1.bf16.msra.mxu0 %v4455
        %6575 = vmatprep.subr.bf16.mxu0 %v4458
        %6576 = vmatpush1.bf16.msra.mxu0 %v4457
        %6577 = vmatprep.subr.bf16.mxu0 %v4460
        %6578 = vmatpush1.bf16.msra.mxu0 %v4459
        %6579 = vmatprep.subr.bf16.mxu0 %v4462
        %6580 = vmatpush1.bf16.msra.mxu0 %v4461
        %6581 = vmatprep.subr.bf16.mxu0 %v4464
        %6582 = vmatpush1.bf16.msra.mxu0 %v4463
        %6583 = vmatprep.subr.bf16.mxu0 %v4466
        %6584 = vmatpush1.bf16.msra.mxu0 %v4465
        %6585 = vmatprep.subr.bf16.mxu0 %v4468
        %6586 = vmatpush1.bf16.msra.mxu0 %v4467
        %6587 = vmatprep.mubr.bf16.mxu0 %v1786
        %6588 = vmatmul.mubr.bf16.gmra.mrb[0].mxu0 %v1785
        %v6589 = vpop.f32.mrb[0].mxu0
        %v6590 = vadd.f32 %v6489, %v6589
        %v6591 = vpop.f32.mrb[0].mxu0
        %v6592 = vadd.f32 %v6491, %v6591
        %v6593 = vpop.f32.mrb[0].mxu0
        %v6594 = vadd.f32 %v6493, %v6593
        %v6595 = vpop.f32.mrb[0].mxu0
        %v6596 = vadd.f32 %v6495, %v6595
        %6597 = vmatprep.mubr.bf16.mxu0 %v1822
        %6598 = vmatmul.mubr.bf16.gmra.mrb[0].mxu0 %v1821
        %v6599 = vpop.f32.mrb[0].mxu0
        %v6600 = vadd.f32 %v6499, %v6599
        %v6601 = vpop.f32.mrb[0].mxu0
        %v6602 = vadd.f32 %v6501, %v6601
        %v6603 = vpop.f32.mrb[0].mxu0
        %v6604 = vadd.f32 %v6503, %v6603
        %v6605 = vpop.f32.mrb[0].mxu0
        %v6606 = vadd.f32 %v6505, %v6605
        %6607 = vmatprep.mubr.bf16.mxu0 %v1858
        %6608 = vmatmul.mubr.bf16.gmra.mrb[0].mxu0 %v1857
        %v6609 = vpop.f32.mrb[0].mxu0
        %v6610 = vadd.f32 %v6509, %v6609
        %v6611 = vpop.f32.mrb[0].mxu0
        %v6612 = vadd.f32 %v6511, %v6611
        %v6613 = vpop.f32.mrb[0].mxu0
        %v6614 = vadd.f32 %v6513, %v6613
        %v6615 = vpop.f32.mrb[0].mxu0
        %v6616 = vadd.f32 %v6515, %v6615
        %6617 = vmatprep.mubr.bf16.mxu0 %v1894
        %6618 = vmatmul.mubr.bf16.gmra.mrb[0].mxu0 %v1893
        %v6619 = vpop.f32.mrb[0].mxu0
        %v6620 = vadd.f32 %v6519, %v6619
        %v6621 = vpop.f32.mrb[0].mxu0
        %v6622 = vadd.f32 %v6521, %v6621
        %v6623 = vpop.f32.mrb[0].mxu0
        %v6624 = vadd.f32 %v6523, %v6623
        %v6625 = vpop.f32.mrb[0].mxu0
        %v6626 = vadd.f32 %v6525, %v6625
        %6627 = vmatprep.mubr.bf16.mxu0 %v1930
        %6628 = vmatmul.mubr.bf16.gmra.mrb[0].mxu0 %v1929
        %v6629 = vpop.f32.mrb[0].mxu0
        %v6630 = vadd.f32 %v6529, %v6629
        %v6631 = vpop.f32.mrb[0].mxu0
        %v6632 = vadd.f32 %v6531, %v6631
        %v6633 = vpop.f32.mrb[0].mxu0
        %v6634 = vadd.f32 %v6533, %v6633
        %v6635 = vpop.f32.mrb[0].mxu0
        %v6636 = vadd.f32 %v6535, %v6635
        %6637 = vmatprep.mubr.bf16.mxu0 %v1966
        %6638 = vmatmul.mubr.bf16.gmra.mrb[0].mxu0 %v1965
        %v6639 = vpop.f32.mrb[0].mxu0
        %v6640 = vadd.f32 %v6539, %v6639
        %v6641 = vpop.f32.mrb[0].mxu0
        %v6642 = vadd.f32 %v6541, %v6641
        %v6643 = vpop.f32.mrb[0].mxu0
        %v6644 = vadd.f32 %v6543, %v6643
        %v6645 = vpop.f32.mrb[0].mxu0
        %v6646 = vadd.f32 %v6545, %v6645
        %6647 = vmatprep.mubr.bf16.mxu0 %v2002
        %6648 = vmatmul.mubr.bf16.gmra.mrb[0].mxu0 %v2001
        %v6649 = vpop.f32.mrb[0].mxu0
        %v6650 = vadd.f32 %v6549, %v6649
        %v6651 = vpop.f32.mrb[0].mxu0
        %v6652 = vadd.f32 %v6551, %v6651
        %v6653 = vpop.f32.mrb[0].mxu0
        %v6654 = vpop.f32.mrb[0].mxu0
        %6655 = vdwg.mxu0
        %6656 = vmatprep.subr.bf16.mxu0 %v4470
        %6657 = vmatpush1.bf16.msra.mxu0 %v4469
        %6658 = vmatprep.subr.bf16.mxu0 %v4472
        %6659 = vmatpush1.bf16.msra.mxu0 %v4471
        %6660 = vmatprep.subr.bf16.mxu0 %v4474
        %6661 = vmatpush1.bf16.msra.mxu0 %v4473
        %6662 = vmatprep.subr.bf16.mxu0 %v4476
        %6663 = vmatpush1.bf16.msra.mxu0 %v4475
        %6664 = vmatprep.subr.bf16.mxu0 %v4478
        %6665 = vmatpush1.bf16.msra.mxu0 %v4477
        %6666 = vmatprep.subr.bf16.mxu0 %v4480
        %6667 = vmatpush1.bf16.msra.mxu0 %v4479
        %6668 = vmatprep.subr.bf16.mxu0 %v4482
        %6669 = vmatpush1.bf16.msra.mxu0 %v4481
        %6670 = vmatprep.subr.bf16.mxu0 %v4484
        %6671 = vmatpush1.bf16.msra.mxu0 %v4483
        %6672 = vmatprep.subr.bf16.mxu0 %v4486
        %6673 = vmatpush1.bf16.msra.mxu0 %v4485
        %6674 = vmatprep.subr.bf16.mxu0 %v4488
        %6675 = vmatpush1.bf16.msra.mxu0 %v4487
        %6676 = vmatprep.subr.bf16.mxu0 %v4490
        %6677 = vmatpush1.bf16.msra.mxu0 %v4489
        %6678 = vmatprep.subr.bf16.mxu0 %v4492
        %6679 = vmatpush1.bf16.msra.mxu0 %v4491
        %6680 = vmatprep.subr.bf16.mxu0 %v4494
        %6681 = vmatpush1.bf16.msra.mxu0 %v4493
        %6682 = vmatprep.subr.bf16.mxu0 %v4496
        %6683 = vmatpush1.bf16.msra.mxu0 %v4495
        %6684 = vmatprep.subr.bf16.mxu0 %v4498
        %6685 = vmatpush1.bf16.msra.mxu0 %v4497
        %6686 = vmatprep.subr.bf16.mxu0 %v4500
        %6687 = vmatpush1.bf16.msra.mxu0 %v4499
        %6688 = vmatprep.mubr.bf16.mxu0 %v1788
        %6689 = vmatmul.mubr.bf16.gmra.mrb[0].mxu0 %v1787
        %v6690 = vpop.f32.mrb[0].mxu0
        %v6691 = vadd.f32 %v6590, %v6690
        %v6692 = vpop.f32.mrb[0].mxu0
        %v6693 = vadd.f32 %v6592, %v6692
        %v6694 = vpop.f32.mrb[0].mxu0
        %v6695 = vadd.f32 %v6594, %v6694
        %v6696 = vpop.f32.mrb[0].mxu0
        %v6697 = vadd.f32 %v6596, %v6696
        %6698 = vmatprep.mubr.bf16.mxu0 %v1824
        %6699 = vmatmul.mubr.bf16.gmra.mrb[0].mxu0 %v1823
        %v6700 = vpop.f32.mrb[0].mxu0
        %v6701 = vadd.f32 %v6600, %v6700
        %v6702 = vpop.f32.mrb[0].mxu0
        %v6703 = vadd.f32 %v6602, %v6702
        %v6704 = vpop.f32.mrb[0].mxu0
        %v6705 = vadd.f32 %v6604, %v6704
        %v6706 = vpop.f32.mrb[0].mxu0
        %v6707 = vadd.f32 %v6606, %v6706
        %6708 = vmatprep.mubr.bf16.mxu0 %v1860
        %6709 = vmatmul.mubr.bf16.gmra.mrb[0].mxu0 %v1859
        %v6710 = vpop.f32.mrb[0].mxu0
        %v6711 = vadd.f32 %v6610, %v6710
        %v6712 = vpop.f32.mrb[0].mxu0
        %v6713 = vadd.f32 %v6612, %v6712
        %v6714 = vpop.f32.mrb[0].mxu0
        %v6715 = vadd.f32 %v6614, %v6714
        %v6716 = vpop.f32.mrb[0].mxu0
        %v6717 = vadd.f32 %v6616, %v6716
        %6718 = vmatprep.mubr.bf16.mxu0 %v1896
        %6719 = vmatmul.mubr.bf16.gmra.mrb[0].mxu0 %v1895
        %v6720 = vpop.f32.mrb[0].mxu0
        %v6721 = vadd.f32 %v6620, %v6720
        %v6722 = vpop.f32.mrb[0].mxu0
        %v6723 = vadd.f32 %v6622, %v6722
        %v6724 = vpop.f32.mrb[0].mxu0
        %v6725 = vadd.f32 %v6624, %v6724
        %v6726 = vpop.f32.mrb[0].mxu0
        %v6727 = vadd.f32 %v6626, %v6726
        %6728 = vmatprep.mubr.bf16.mxu0 %v1932
        %6729 = vmatmul.mubr.bf16.gmra.mrb[0].mxu0 %v1931
        %v6730 = vpop.f32.mrb[0].mxu0
        %v6731 = vadd.f32 %v6630, %v6730
        %v6732 = vpop.f32.mrb[0].mxu0
        %v6733 = vadd.f32 %v6632, %v6732
        %v6734 = vpop.f32.mrb[0].mxu0
        %v6735 = vadd.f32 %v6634, %v6734
        %v6736 = vpop.f32.mrb[0].mxu0
        %v6737 = vadd.f32 %v6636, %v6736
        %6738 = vmatprep.mubr.bf16.mxu0 %v1968
        %6739 = vmatmul.mubr.bf16.gmra.mrb[0].mxu0 %v1967
        %v6740 = vpop.f32.mrb[0].mxu0
        %v6741 = vadd.f32 %v6640, %v6740
        %v6742 = vpop.f32.mrb[0].mxu0
        %v6743 = vadd.f32 %v6642, %v6742
        %v6744 = vpop.f32.mrb[0].mxu0
        %v6745 = vadd.f32 %v6644, %v6744
        %v6746 = vpop.f32.mrb[0].mxu0
        %v6747 = vadd.f32 %v6646, %v6746
        %6748 = vmatprep.mubr.bf16.mxu0 %v2004
        %6749 = vmatmul.mubr.bf16.gmra.mrb[0].mxu0 %v2003
        %v6750 = vpop.f32.mrb[0].mxu0
        %v6751 = vadd.f32 %v6650, %v6750
        %v6752 = vpop.f32.mrb[0].mxu0
        %v6753 = vadd.f32 %v6652, %v6752
        %v6754 = vpop.f32.mrb[0].mxu0
        %v6755 = vpop.f32.mrb[0].mxu0
        %6756 = vdwg.mxu0
        %6757 = vmatprep.subr.bf16.mxu0 %v4502
        %6758 = vmatpush1.bf16.msra.mxu0 %v4501
        %6759 = vmatprep.subr.bf16.mxu0 %v4504
        %6760 = vmatpush1.bf16.msra.mxu0 %v4503
        %6761 = vmatprep.subr.bf16.mxu0 %v4506
        %6762 = vmatpush1.bf16.msra.mxu0 %v4505
        %6763 = vmatprep.subr.bf16.mxu0 %v4508
        %6764 = vmatpush1.bf16.msra.mxu0 %v4507
        %6765 = vmatprep.subr.bf16.mxu0 %v4510
        %6766 = vmatpush1.bf16.msra.mxu0 %v4509
        %6767 = vmatprep.subr.bf16.mxu0 %v4512
        %6768 = vmatpush1.bf16.msra.mxu0 %v4511
        %6769 = vmatprep.subr.bf16.mxu0 %v4514
        %6770 = vmatpush1.bf16.msra.mxu0 %v4513
        %6771 = vmatprep.subr.bf16.mxu0 %v4516
        %6772 = vmatpush1.bf16.msra.mxu0 %v4515
        %6773 = vmatprep.subr.bf16.mxu0 %v4518
        %6774 = vmatpush1.bf16.msra.mxu0 %v4517
        %6775 = vmatprep.subr.bf16.mxu0 %v4520
        %6776 = vmatpush1.bf16.msra.mxu0 %v4519
        %6777 = vmatprep.subr.bf16.mxu0 %v4522
        %6778 = vmatpush1.bf16.msra.mxu0 %v4521
        %6779 = vmatprep.subr.bf16.mxu0 %v4524
        %6780 = vmatpush1.bf16.msra.mxu0 %v4523
        %6781 = vmatprep.subr.bf16.mxu0 %v4526
        %6782 = vmatpush1.bf16.msra.mxu0 %v4525
        %6783 = vmatprep.subr.bf16.mxu0 %v4528
        %6784 = vmatpush1.bf16.msra.mxu0 %v4527
        %6785 = vmatprep.subr.bf16.mxu0 %v4530
        %6786 = vmatpush1.bf16.msra.mxu0 %v4529
        %6787 = vmatprep.subr.bf16.mxu0 %v4532
        %6788 = vmatpush1.bf16.msra.mxu0 %v4531
        %6789 = vmatprep.mubr.bf16.mxu0 %v1790
        %6790 = vmatmul.mubr.bf16.gmra.mrb[0].mxu0 %v1789
        %v6791 = vpop.f32.mrb[0].mxu0
        %v6792 = vadd.f32 %v6691, %v6791
        %v6793 = vpop.f32.mrb[0].mxu0
        %v6794 = vadd.f32 %v6693, %v6793
        %v6795 = vpop.f32.mrb[0].mxu0
        %v6796 = vadd.f32 %v6695, %v6795
        %v6797 = vpop.f32.mrb[0].mxu0
        %v6798 = vadd.f32 %v6697, %v6797
        %6799 = vmatprep.mubr.bf16.mxu0 %v1826
        %6800 = vmatmul.mubr.bf16.gmra.mrb[0].mxu0 %v1825
        %v6801 = vpop.f32.mrb[0].mxu0
        %v6802 = vadd.f32 %v6701, %v6801
        %v6803 = vpop.f32.mrb[0].mxu0
        %v6804 = vadd.f32 %v6703, %v6803
        %v6805 = vpop.f32.mrb[0].mxu0
        %v6806 = vadd.f32 %v6705, %v6805
        %v6807 = vpop.f32.mrb[0].mxu0
        %v6808 = vadd.f32 %v6707, %v6807
        %6809 = vmatprep.mubr.bf16.mxu0 %v1862
        %6810 = vmatmul.mubr.bf16.gmra.mrb[0].mxu0 %v1861
        %v6811 = vpop.f32.mrb[0].mxu0
        %v6812 = vadd.f32 %v6711, %v6811
        %v6813 = vpop.f32.mrb[0].mxu0
        %v6814 = vadd.f32 %v6713, %v6813
        %v6815 = vpop.f32.mrb[0].mxu0
        %v6816 = vadd.f32 %v6715, %v6815
        %v6817 = vpop.f32.mrb[0].mxu0
        %v6818 = vadd.f32 %v6717, %v6817
        %6819 = vmatprep.mubr.bf16.mxu0 %v1898
        %6820 = vmatmul.mubr.bf16.gmra.mrb[0].mxu0 %v1897
        %v6821 = vpop.f32.mrb[0].mxu0
        %v6822 = vadd.f32 %v6721, %v6821
        %v6823 = vpop.f32.mrb[0].mxu0
        %v6824 = vadd.f32 %v6723, %v6823
        %v6825 = vpop.f32.mrb[0].mxu0
        %v6826 = vadd.f32 %v6725, %v6825
        %v6827 = vpop.f32.mrb[0].mxu0
        %v6828 = vadd.f32 %v6727, %v6827
        %6829 = vmatprep.mubr.bf16.mxu0 %v1934
        %6830 = vmatmul.mubr.bf16.gmra.mrb[0].mxu0 %v1933
        %v6831 = vpop.f32.mrb[0].mxu0
        %v6832 = vadd.f32 %v6731, %v6831
        %v6833 = vpop.f32.mrb[0].mxu0
        %v6834 = vadd.f32 %v6733, %v6833
        %v6835 = vpop.f32.mrb[0].mxu0
        %v6836 = vadd.f32 %v6735, %v6835
        %v6837 = vpop.f32.mrb[0].mxu0
        %v6838 = vadd.f32 %v6737, %v6837
        %6839 = vmatprep.mubr.bf16.mxu0 %v1970
        %6840 = vmatmul.mubr.bf16.gmra.mrb[0].mxu0 %v1969
        %v6841 = vpop.f32.mrb[0].mxu0
        %v6842 = vadd.f32 %v6741, %v6841
        %v6843 = vpop.f32.mrb[0].mxu0
        %v6844 = vadd.f32 %v6743, %v6843
        %v6845 = vpop.f32.mrb[0].mxu0
        %v6846 = vadd.f32 %v6745, %v6845
        %v6847 = vpop.f32.mrb[0].mxu0
        %v6848 = vadd.f32 %v6747, %v6847
        %6849 = vmatprep.mubr.bf16.mxu0 %v2006
        %6850 = vmatmul.mubr.bf16.gmra.mrb[0].mxu0 %v2005
        %v6851 = vpop.f32.mrb[0].mxu0
        %v6852 = vadd.f32 %v6751, %v6851
        %v6853 = vpop.f32.mrb[0].mxu0
        %v6854 = vadd.f32 %v6753, %v6853
        %v6855 = vpop.f32.mrb[0].mxu0
        %v6856 = vpop.f32.mrb[0].mxu0
        %6857 = vdwg.mxu0
        %6858 = vmatprep.subr.bf16.mxu0 %v4534
        %6859 = vmatpush1.bf16.msra.mxu0 %v4533
        %6860 = vmatprep.subr.bf16.mxu0 %v4536
        %6861 = vmatpush1.bf16.msra.mxu0 %v4535
        %6862 = vmatprep.subr.bf16.mxu0 %v4538
        %6863 = vmatpush1.bf16.msra.mxu0 %v4537
        %6864 = vmatprep.subr.bf16.mxu0 %v4540
        %6865 = vmatpush1.bf16.msra.mxu0 %v4539
        %6866 = vmatprep.subr.bf16.mxu0 %v4542
        %6867 = vmatpush1.bf16.msra.mxu0 %v4541
        %6868 = vmatprep.subr.bf16.mxu0 %v4544
        %6869 = vmatpush1.bf16.msra.mxu0 %v4543
        %6870 = vmatprep.subr.bf16.mxu0 %v4546
        %6871 = vmatpush1.bf16.msra.mxu0 %v4545
        %6872 = vmatprep.subr.bf16.mxu0 %v4548
        %6873 = vmatpush1.bf16.msra.mxu0 %v4547
        %6874 = vmatprep.subr.bf16.mxu0 %v4550
        %6875 = vmatpush1.bf16.msra.mxu0 %v4549
        %6876 = vmatprep.subr.bf16.mxu0 %v4552
        %6877 = vmatpush1.bf16.msra.mxu0 %v4551
        %6878 = vmatprep.subr.bf16.mxu0 %v4554
        %6879 = vmatpush1.bf16.msra.mxu0 %v4553
        %6880 = vmatprep.subr.bf16.mxu0 %v4556
        %6881 = vmatpush1.bf16.msra.mxu0 %v4555
        %6882 = vmatprep.subr.bf16.mxu0 %v4558
        %6883 = vmatpush1.bf16.msra.mxu0 %v4557
        %6884 = vmatprep.subr.bf16.mxu0 %v4560
        %6885 = vmatpush1.bf16.msra.mxu0 %v4559
        %6886 = vmatprep.subr.bf16.mxu0 %v4562
        %6887 = vmatpush1.bf16.msra.mxu0 %v4561
        %6888 = vmatprep.subr.bf16.mxu0 %v4564
        %6889 = vmatpush1.bf16.msra.mxu0 %v4563
        %6890 = vmatprep.mubr.bf16.mxu0 %v1792
        %6891 = vmatmul.mubr.bf16.gmra.mrb[0].mxu0 %v1791
        %v6892 = vpop.f32.mrb[0].mxu0
        %v6893 = vadd.f32 %v6792, %v6892
        %v6894 = vpop.f32.mrb[0].mxu0
        %v6895 = vadd.f32 %v6794, %v6894
        %v6896 = vpop.f32.mrb[0].mxu0
        %v6897 = vadd.f32 %v6796, %v6896
        %v6898 = vpop.f32.mrb[0].mxu0
        %v6899 = vadd.f32 %v6798, %v6898
        %6900 = vmatprep.mubr.bf16.mxu0 %v1828
        %6901 = vmatmul.mubr.bf16.gmra.mrb[0].mxu0 %v1827
        %v6902 = vpop.f32.mrb[0].mxu0
        %v6903 = vadd.f32 %v6802, %v6902
        %v6904 = vpop.f32.mrb[0].mxu0
        %v6905 = vadd.f32 %v6804, %v6904
        %v6906 = vpop.f32.mrb[0].mxu0
        %v6907 = vadd.f32 %v6806, %v6906
        %v6908 = vpop.f32.mrb[0].mxu0
        %v6909 = vadd.f32 %v6808, %v6908
        %6910 = vmatprep.mubr.bf16.mxu0 %v1864
        %6911 = vmatmul.mubr.bf16.gmra.mrb[0].mxu0 %v1863
        %v6912 = vpop.f32.mrb[0].mxu0
        %v6913 = vadd.f32 %v6812, %v6912
        %v6914 = vpop.f32.mrb[0].mxu0
        %v6915 = vadd.f32 %v6814, %v6914
        %v6916 = vpop.f32.mrb[0].mxu0
        %v6917 = vadd.f32 %v6816, %v6916
        %v6918 = vpop.f32.mrb[0].mxu0
        %v6919 = vadd.f32 %v6818, %v6918
        %6920 = vmatprep.mubr.bf16.mxu0 %v1900
        %6921 = vmatmul.mubr.bf16.gmra.mrb[0].mxu0 %v1899
        %v6922 = vpop.f32.mrb[0].mxu0
        %v6923 = vadd.f32 %v6822, %v6922
        %v6924 = vpop.f32.mrb[0].mxu0
        %v6925 = vadd.f32 %v6824, %v6924
        %v6926 = vpop.f32.mrb[0].mxu0
        %v6927 = vadd.f32 %v6826, %v6926
        %v6928 = vpop.f32.mrb[0].mxu0
        %v6929 = vadd.f32 %v6828, %v6928
        %6930 = vmatprep.mubr.bf16.mxu0 %v1936
        %6931 = vmatmul.mubr.bf16.gmra.mrb[0].mxu0 %v1935
        %v6932 = vpop.f32.mrb[0].mxu0
        %v6933 = vadd.f32 %v6832, %v6932
        %v6934 = vpop.f32.mrb[0].mxu0
        %v6935 = vadd.f32 %v6834, %v6934
        %v6936 = vpop.f32.mrb[0].mxu0
        %v6937 = vadd.f32 %v6836, %v6936
        %v6938 = vpop.f32.mrb[0].mxu0
        %v6939 = vadd.f32 %v6838, %v6938
        %6940 = vmatprep.mubr.bf16.mxu0 %v1972
        %6941 = vmatmul.mubr.bf16.gmra.mrb[0].mxu0 %v1971
        %v6942 = vpop.f32.mrb[0].mxu0
        %v6943 = vadd.f32 %v6842, %v6942
        %v6944 = vpop.f32.mrb[0].mxu0
        %v6945 = vadd.f32 %v6844, %v6944
        %v6946 = vpop.f32.mrb[0].mxu0
        %v6947 = vadd.f32 %v6846, %v6946
        %v6948 = vpop.f32.mrb[0].mxu0
        %v6949 = vadd.f32 %v6848, %v6948
        %6950 = vmatprep.mubr.bf16.mxu0 %v2008
        %6951 = vmatmul.mubr.bf16.gmra.mrb[0].mxu0 %v2007
        %v6952 = vpop.f32.mrb[0].mxu0
        %v6953 = vadd.f32 %v6852, %v6952
        %v6954 = vpop.f32.mrb[0].mxu0
        %v6955 = vadd.f32 %v6854, %v6954
        %v6956 = vpop.f32.mrb[0].mxu0
        %v6957 = vpop.f32.mrb[0].mxu0
        %6958 = vdwg.mxu0
        %6959 = vst [vmem:[%s232] sm:$0xff] %v6893
        %6960 = vst [vmem:[%s232 + $0x8] sm:$0xff] %v6895
        %6961 = vst [vmem:[%s232 + $0x10] sm:$0xff] %v6897
        %6962 = vst [vmem:[%s232 + $0x18] sm:$0xff] %v6899
        %6963 = vst [vmem:[%s232 + $0x20] sm:$0xff] %v6903
        %6964 = vst [vmem:[%s232 + $0x28] sm:$0xff] %v6905
        %6965 = vst [vmem:[%s232 + $0x30] sm:$0xff] %v6907
        %6966 = vst [vmem:[%s232 + $0x38] sm:$0xff] %v6909
        %6967 = vst [vmem:[%s232 + $0x40] sm:$0xff] %v6913
        %6968 = vst [vmem:[%s232 + $0x48] sm:$0xff] %v6915
        %6969 = vst [vmem:[%s232 + $0x50] sm:$0xff] %v6917
        %6970 = vst [vmem:[%s232 + $0x58] sm:$0xff] %v6919
        %6971 = vst [vmem:[%s232 + $0x60] sm:$0xff] %v6923
        %6972 = vst [vmem:[%s232 + $0x68] sm:$0xff] %v6925
        %6973 = vst [vmem:[%s232 + $0x70] sm:$0xff] %v6927
        %6974 = vst [vmem:[%s232 + $0x78] sm:$0xff] %v6929
        %6975 = vst [vmem:[%s232 + $0x80] sm:$0xff] %v6933
        %6976 = vst [vmem:[%s232 + $0x88] sm:$0xff] %v6935
        %6977 = vst [vmem:[%s232 + $0x90] sm:$0xff] %v6937
        %6978 = vst [vmem:[%s232 + $0x98] sm:$0xff] %v6939
        %6979 = vst [vmem:[%s232 + $0xa0] sm:$0xff] %v6943
        %6980 = vst [vmem:[%s232 + $0xa8] sm:$0xff] %v6945
        %6981 = vst [vmem:[%s232 + $0xb0] sm:$0xff] %v6947
        %6982 = vst [vmem:[%s232 + $0xb8] sm:$0xff] %v6949
        %6983 = vst [vmem:[%s232 + $0xc0] sm:$0xff] %v6953
        %6984 = vst [vmem:[%s232 + $0xc8] sm:$0xff] %v6955
        %v6985 = vadd.f32 %v6893, %v6897
        %v6986 = vadd.f32 %v6985, %v6903
        %v6987 = vadd.f32 %v6986, %v6907
        %v6988 = vadd.f32 %v6987, %v6913
        %v6989 = vadd.f32 %v6988, %v6917
        %v6990 = vadd.f32 %v6989, %v6923
        %v6991 = vadd.f32 %v6990, %v6927
        %v6992 = vadd.f32 %v6991, %v6933
        %v6993 = vadd.f32 %v6992, %v6937
        %v6994 = vadd.f32 %v6993, %v6943
        %v6995 = vadd.f32 %v6994, %v6947
        %v6996 = vadd.f32 %v6995, %v6953
        %v6997 = vrot.slane %v6996, 4
        %v6998 = vadd.f32 %v6996, %v6997
        %v6999 = vrot.slane %v6998, 2
        %v7000 = vadd.f32 %v6998, %v6999
        %v7001 = vrot.slane %v7000, 1
        %v7002 = vadd.f32 %v7000, %v7001
        %v7003 = vadd.f32 %v6895, %v6899
        %v7004 = vadd.f32 %v7003, %v6905
        %v7005 = vadd.f32 %v7004, %v6909
        %v7006 = vadd.f32 %v7005, %v6915
        %v7007 = vadd.f32 %v7006, %v6919
        %v7008 = vadd.f32 %v7007, %v6925
        %v7009 = vadd.f32 %v7008, %v6929
        %v7010 = vadd.f32 %v7009, %v6935
        %v7011 = vadd.f32 %v7010, %v6939
        %v7012 = vadd.f32 %v7011, %v6945
        %v7013 = vadd.f32 %v7012, %v6949
        %v7014 = vadd.f32 %v7013, %v6955
        %v7015 = vrot.slane %v7014, 4
        %v7016 = vadd.f32 %v7014, %v7015
        %v7017 = vrot.slane %v7016, 2
        %v7018 = vadd.f32 %v7016, %v7017
        %v7019 = vrot.slane %v7018, 1
        %v7020 = vadd.f32 %v7018, %v7019
        %v7023 = vcombine.low %v7002, %v7020
        %v7025 = vunpack.c.l.s4 1966171168
        %v7026 = vunpack.c.0.s8 %v7025
        %v7027 = vlaneseq
        %v7028 = vshrl.u32 %v7027, 7
        %v7029 = vsub.s32 %v7026, %v7028
        %v7030 = vrot.slane %v7023, %v7029
        %v7032 = vunpack.c.l.s4 1966171168
        %v7033 = vunpack.c.0.s8 %v7032
        %v7034 = vlaneseq
        %v7035 = vshrl.u32 %v7034, 7
        %v7036 = vsub.s32 %v7033, %v7035
        %v7037 = vrot.slane %v7030, %v7036
        %v7039 = vlaneseq
        %vm7040 = vcmp.ge.s32.totalorder %v7039, 0
        %vm7041 = vcmp.lt.s32.totalorder %v7039, 256
        %vm7042 = vmand %vm7040, %vm7041
        %7043 = vst.msk [vmem:[%s239] ss:$2 sm:$0x3] %vm7042, %v7037
        %v7044 = vmul.f32 %v6893, %v6893
        %v7045 = vmul.f32 %v6895, %v6895
        %v7046 = vmul.f32 %v6897, %v6897
        %v7047 = vmul.f32 %v6899, %v6899
        %v7048 = vmul.f32 %v6903, %v6903
        %v7049 = vmul.f32 %v6905, %v6905
        %v7050 = vmul.f32 %v6907, %v6907
        %v7051 = vmul.f32 %v6909, %v6909
        %v7052 = vmul.f32 %v6913, %v6913
        %v7053 = vmul.f32 %v6915, %v6915
        %v7054 = vmul.f32 %v6917, %v6917
        %v7055 = vmul.f32 %v6919, %v6919
        %v7056 = vmul.f32 %v6923, %v6923
        %v7057 = vmul.f32 %v6925, %v6925
        %v7058 = vmul.f32 %v6927, %v6927
        %v7059 = vmul.f32 %v6929, %v6929
        %v7060 = vmul.f32 %v6933, %v6933
        %v7061 = vmul.f32 %v6935, %v6935
        %v7062 = vmul.f32 %v6937, %v6937
        %v7063 = vmul.f32 %v6939, %v6939
        %v7064 = vmul.f32 %v6943, %v6943
        %v7065 = vmul.f32 %v6945, %v6945
        %v7066 = vmul.f32 %v6947, %v6947
        %v7067 = vmul.f32 %v6949, %v6949
        %v7068 = vmul.f32 %v6953, %v6953
        %v7069 = vmul.f32 %v6955, %v6955
        %v7070 = vadd.f32 %v7044, %v7046
        %v7071 = vadd.f32 %v7070, %v7048
        %v7072 = vadd.f32 %v7071, %v7050
        %v7073 = vadd.f32 %v7072, %v7052
        %v7074 = vadd.f32 %v7073, %v7054
        %v7075 = vadd.f32 %v7074, %v7056
        %v7076 = vadd.f32 %v7075, %v7058
        %v7077 = vadd.f32 %v7076, %v7060
        %v7078 = vadd.f32 %v7077, %v7062
        %v7079 = vadd.f32 %v7078, %v7064
        %v7080 = vadd.f32 %v7079, %v7066
        %v7081 = vadd.f32 %v7080, %v7068
        %v7082 = vrot.slane %v7081, 4
        %v7083 = vadd.f32 %v7081, %v7082
        %v7084 = vrot.slane %v7083, 2
        %v7085 = vadd.f32 %v7083, %v7084
        %v7086 = vrot.slane %v7085, 1
        %v7087 = vadd.f32 %v7085, %v7086
        %v7088 = vadd.f32 %v7045, %v7047
        %v7089 = vadd.f32 %v7088, %v7049
        %v7090 = vadd.f32 %v7089, %v7051
        %v7091 = vadd.f32 %v7090, %v7053
        %v7092 = vadd.f32 %v7091, %v7055
        %v7093 = vadd.f32 %v7092, %v7057
        %v7094 = vadd.f32 %v7093, %v7059
        %v7095 = vadd.f32 %v7094, %v7061
        %v7096 = vadd.f32 %v7095, %v7063
        %v7097 = vadd.f32 %v7096, %v7065
        %v7098 = vadd.f32 %v7097, %v7067
        %v7099 = vadd.f32 %v7098, %v7069
        %v7100 = vrot.slane %v7099, 4
        %v7101 = vadd.f32 %v7099, %v7100
        %v7102 = vrot.slane %v7101, 2
        %v7103 = vadd.f32 %v7101, %v7102
        %v7104 = vrot.slane %v7103, 1
        %v7105 = vadd.f32 %v7103, %v7104
        %v7108 = vcombine.low %v7087, %v7105
        %v7110 = vunpack.c.l.s4 1966171168
        %v7111 = vunpack.c.0.s8 %v7110
        %v7112 = vlaneseq
        %v7113 = vshrl.u32 %v7112, 7
        %v7114 = vsub.s32 %v7111, %v7113
        %v7115 = vrot.slane %v7108, %v7114
        %v7117 = vunpack.c.l.s4 1966171168
        %v7118 = vunpack.c.0.s8 %v7117
        %v7119 = vlaneseq
        %v7120 = vshrl.u32 %v7119, 7
        %v7121 = vsub.s32 %v7118, %v7120
        %v7122 = vrot.slane %v7115, %v7121
        %s7124 = scalar_lea.vmem %s239, 1 [#allocation8]
        %7125 = vst.msk [vmem:[%s7124] ss:$2 sm:$0x3] %vm7042, %v7122
        %s7126 = sand.u32 %s99, 1
        %s7127 = scalar_lea.sflag [#allocation4], %s7126
        %s7128 = sand.u32 %s99, 1
        %s7129 = smul.addr %s7128, 208
        %s7130 = scalar_lea.vmem [#allocation7], %s7129
        %s7131 = sand.u32 %s127, 1
        %s7132 = scalar_lea.sflag [#allocation9], %s7131
        %s7133 = sand.u32 %s127, 1
        %s7134 = smul.addr %s7133, 4
        %s7135 = scalar_lea.vmem [#allocation8], %s7134
        // Predicated region
        $region37: #{tpu_custom_call.1} parent=27 // pred_check
          %p7136 = pneg %p109
        $region38: #{tpu_custom_call.1} parent=27 // pred_check_branch
          %7138 = sbr.rel (%p7136) target = $region40
        $region39: #{tpu_custom_call.1} parent=27 // pred_region
          %s7139 = smul.u32 13, %s30
          %s7140 = smul.u32 2, %s29
          %s7142 = ssub.s32 3328, 3328
          %7143 = vsyncadd %s7127, %s7142
          %s7144 = smul.addr %s7139, 4
          %s7145 = sadd.s32 %s7140, %s7144
          %s7146 = smul.addr %s7145, 128
          %s7147 = scalar_lea.hbm %s2, %s7146
          %s7148 = sshll.u32 %s7130, 4
          %s7149 = int_to_ptr.vmem [resolvable:$true] %s7148
          %7154 = dma.vmem_to_hbm [thread:$0]  %s7149, 3328, %s7147, %s7127, 256, 512, 16
        $region40: #{tpu_custom_call.1} parent=27 // pred_fallthru
          _
        // Predicated region
        $region41: #{tpu_custom_call.1} parent=27 // pred_check
          %p7155 = pneg %p137
        $region42: #{tpu_custom_call.1} parent=27 // pred_check_branch
          %7157 = sbr.rel (%p7155) target = $region44
        $region43: #{tpu_custom_call.1} parent=27 // pred_region
          %s7158 = smul.u32 2, %s29
          %s7160 = ssub.s32 64, 64
          %7161 = vsyncadd %s7132, %s7160
          %s7162 = smul.addr %s30, 4
          %s7163 = sadd.s32 %s7158, %s7162
          %s7164 = smul.addr %s7163, 32
          %s7165 = scalar_lea.hbm %s3, %s7164
          %s7167 = sshll.u32 %s7135, 4
          %s7168 = int_to_ptr.vmem [resolvable:$true] %s7167
          %7170 = dma.vmem_to_hbm [thread:$0]  %s7168, 64, %s7165, %s7132
        $region44: #{tpu_custom_call.1} parent=27 // pred_fallthru
          _
      $region28: #{tpu_custom_call.1} parent=5 // pred_fallthru
        _
      %p7171 = scmp.le.s32.totalorder 2, %s20
      // Predicated region
      $region45: #{tpu_custom_call.1} parent=5 // pred_check
        %p7172 = pneg %p7171
      $region46: #{tpu_custom_call.1} parent=5 // pred_check_branch
        %7174 = sbr.rel (%p7172) target = $region48
      $region47: #{tpu_custom_call.1} parent=5 // pred_region
        %s7175 = ssub.s32 %s20, 2
        // Predicated region
        $region49: #{tpu_custom_call.1} parent=47 // pred_check
          %p7176 = pneg %p115
        $region50: #{tpu_custom_call.1} parent=47 // pred_check_branch
          %7178 = sbr.rel (%p7176) target = $region52
        $region51: #{tpu_custom_call.1} parent=47 // pred_region
          %s7179 = sand.u32 %s100, 1
          %s7180 = scalar_lea.sflag [#allocation4], %s7179
          %s7181 = sand.u32 %s100, 1
          %s7182 = smul.addr %s7181, 208
          %s7183 = scalar_lea.vmem [#allocation7], %s7182
          %7184 = dma.done %s7180, 3328
        $region52: #{tpu_custom_call.1} parent=47 // pred_fallthru
          _
        // Predicated region
        $region53: #{tpu_custom_call.1} parent=47 // pred_check
          %p7185 = pneg %p143
        $region54: #{tpu_custom_call.1} parent=47 // pred_check_branch
          %7187 = sbr.rel (%p7185) target = $region56
        $region55: #{tpu_custom_call.1} parent=47 // pred_region
          %s7188 = sand.u32 %s128, 1
          %s7189 = scalar_lea.sflag [#allocation9], %s7188
          %s7190 = sand.u32 %s128, 1
          %s7191 = smul.addr %s7190, 4
          %s7192 = scalar_lea.vmem [#allocation8], %s7191
          %7193 = dma.done %s7189, 64
        $region56: #{tpu_custom_call.1} parent=47 // pred_fallthru
          _
      $region48: #{tpu_custom_call.1} parent=5 // pred_fallthru
        _
    $region6: #{tpu_custom_call.1} parent=1 // loop_footer
      %s24 = sadd.s32 1, %s20
    $region7: #{tpu_custom_call.1} parent=1 // loop_footer_branch
      %19 = sbr.rel target = $region3
    $region8: #{tpu_custom_call.1} parent=1 // loop_exit
      _
    %7194 = vsyncpa [#allocation3], 1
    %s7195 = scalar_lea.sflag [#allocation3], 1
    %7196 = vsyncpa %s7195, 1
    %7197 = vsyncpa [#allocation6], 1
    %s7198 = scalar_lea.sflag [#allocation6], 1
    %7199 = vsyncpa %s7198, 1
    %7200 = vsyncpa [#allocation4], 1
    %s7201 = scalar_lea.sflag [#allocation4], 1
    %7202 = vsyncpa %s7201, 1
    %7203 = vsyncpa [#allocation9], 1
    %s7204 = scalar_lea.sflag [#allocation9], 1
    %7205 = vsyncpa %s7204, 1

</llo_original>
